<compile_context>
chip_gen: v5e
topology: v5e:2x2
jax: 0.10.0
libtpu: 0.0.40
codegen_flags: <defaults>
</compile_context>

<pallas_src>
import jax
import jax.numpy as jnp
from jax.experimental import pallas as pl
from jax.experimental.pallas import tpu as pltpu

ALPHABET_SIZE = 126 - 31 + 1        # 96
SIZE = 100
IN_FEATURES = SIZE * ALPHABET_SIZE  # 9600 (already a multiple of 128)
HIDDEN = 100
OUT_FEATURES = 1

HIDDEN_PAD = 128                    # pad hidden width to the 128-lane vreg
OUT_PAD = 128                       # lane-dense output block; column 0 is real


def _round_up(n, m):
    return ((n + m - 1) // m) * m


def mlp_kernel(x_ref, w1_ref, b1_ref, w2_ref, b2_ref,
               w3_ref, b3_ref, w4_ref, b4_ref, o_ref):
    # Cast the f32 x tile to bf16 in-kernel (free on the VPU; avoids a separate
    # XLA convert pass over the whole array in HBM).
    x = x_ref[...].astype(jnp.bfloat16)
    # Layer 1: Linear(9600 -> 128[=100 padded]) + ReLU. bf16 MXU, f32 accumulate.
    h = jnp.dot(x, w1_ref[...], preferred_element_type=jnp.float32) + b1_ref[...]
    h = jnp.maximum(h, 0.0)
    # Layer 2: Linear(128 -> 128) + Tanh.
    h = jnp.dot(h.astype(jnp.bfloat16), w2_ref[...],
                preferred_element_type=jnp.float32) + b2_ref[...]
    h = jnp.tanh(h)
    # Layer 3: Linear(128 -> 128) + ReLU.
    h = jnp.dot(h.astype(jnp.bfloat16), w3_ref[...],
                preferred_element_type=jnp.float32) + b3_ref[...]
    h = jnp.maximum(h, 0.0)
    # Layer 4: Linear(128 -> 128[=1 padded]) + Sigmoid; only column 0 matters.
    z = jnp.dot(h.astype(jnp.bfloat16), w4_ref[...],
                preferred_element_type=jnp.float32) + b4_ref[...]
    o_ref[...] = jax.nn.sigmoid(z).astype(o_ref.dtype)


def pack_params(params):
    """Zero-pad hidden/output dims to 128 and cast weights to bf16.

    Padded lanes have zero weight AND zero bias; ReLU(0)=0 and tanh(0)=0, so
    they stay exactly zero and never leak into the real lanes.
    """
    w1, b1, w2, b2, w3, b3, w4, b4 = params
    ph = HIDDEN_PAD - HIDDEN
    po = OUT_PAD - OUT_FEATURES
    w1p = jnp.pad(w1, ((0, 0), (0, ph))).astype(jnp.bfloat16)
    b1p = jnp.pad(b1.reshape(1, -1), ((0, 0), (0, ph))).astype(jnp.float32)
    w2p = jnp.pad(w2, ((0, ph), (0, ph))).astype(jnp.bfloat16)
    b2p = jnp.pad(b2.reshape(1, -1), ((0, 0), (0, ph))).astype(jnp.float32)
    w3p = jnp.pad(w3, ((0, ph), (0, ph))).astype(jnp.bfloat16)
    b3p = jnp.pad(b3.reshape(1, -1), ((0, 0), (0, ph))).astype(jnp.float32)
    w4p = jnp.pad(w4, ((0, ph), (0, po))).astype(jnp.bfloat16)
    b4p = jnp.pad(b4.reshape(1, -1), ((0, 0), (0, po))).astype(jnp.float32)
    return (w1p, b1p, w2p, b2p, w3p, b3p, w4p, b4p)


def _pick_tiling():
    """Pick (batch tile, scoped VMEM limit) based on the local TPU generation."""
    vmem_bytes = None
    try:
        vmem_bytes = getattr(pltpu.get_tpu_info(), "vmem_capacity_bytes", None)
    except Exception:
        vmem_bytes = None
    if vmem_bytes is not None and vmem_bytes >= 100 * 1024 * 1024:
        # v5e / v6e (128 MiB VMEM): big tiles amortize the ~0.35 us/step
        # overhead.  f32 x tile @ TB=512 is ~19.7 MiB; double-buffered ~39 MiB
        # + ~5 MiB resident weights fits well under a 96 MiB scoped limit.
        return 512, 96 * 1024 * 1024
    # v7x (64 MiB per TensorCore) or unknown: stay conservative with f32 tiles.
    return 256, 48 * 1024 * 1024


def net_forward(x, params, *, tb=None, vmem_limit_bytes=None):
    """x: [B, 9600] float32 -> [B, 1] float32."""
    B = x.shape[0]
    tb_auto, vmem_auto = _pick_tiling()
    if tb is None:
        tb = tb_auto
    if vmem_limit_bytes is None:
        vmem_limit_bytes = vmem_auto

    # Batch tile: multiple of 8 sublanes, never larger than needed for B.
    TB = min(tb, _round_up(B, 8))
    grid = (pl.cdiv(B, TB),)   # no batch-pad copy: Pallas handles a ragged tail

    packed = pack_params(params)

    x_spec = pl.BlockSpec((TB, IN_FEATURES), lambda i: (i, 0))
    out_spec = pl.BlockSpec((TB, OUT_PAD), lambda i: (i, 0))
    # Weights / biases: full-array blocks with a constant block index -> DMA'd
    # once and VMEM-resident across the whole batch grid.  (Single-buffering
    # them would save ~2.5 MiB more, but the budgets above already leave ample
    # headroom, so keep the robust default.)
    in_specs = [x_spec] + [pl.BlockSpec(p.shape, lambda i: (0, 0)) for p in packed]

    flops = 2 * B * (IN_FEATURES * HIDDEN_PAD
                     + 2 * HIDDEN_PAD * HIDDEN_PAD
                     + HIDDEN_PAD * OUT_PAD)
    bytes_accessed = (x.size * x.dtype.itemsize
                      + sum(p.size * p.dtype.itemsize for p in packed)
                      + B * OUT_PAD * 2)
    cost = pl.CostEstimate(flops=flops,
                           transcendentals=B * (HIDDEN_PAD + OUT_PAD),
                           bytes_accessed=bytes_accessed)

    out = pl.pallas_call(
        mlp_kernel,
        out_shape=jax.ShapeDtypeStruct((B, OUT_PAD), jnp.bfloat16),
        grid_spec=pltpu.PrefetchScalarGridSpec(
            num_scalar_prefetch=0,
            grid=grid,
            in_specs=in_specs,
            out_specs=out_spec,
        ),
        compiler_params=pltpu.CompilerParams(
            dimension_semantics=("parallel",),
            vmem_limit_bytes=vmem_limit_bytes,
        ),
        cost_estimate=cost,
    )(x, *packed)
    # Slice away the 127 padded output lanes; tiny array, cast back to f32.
    return out[:B, :OUT_FEATURES].astype(jnp.float32)


def init_params(key):
    """Deterministic init mimicking PyTorch Linear's U(-1/sqrt(fan_in), +...)."""
    def linear(k, fan_in, fan_out):
        kw, kb = jax.random.split(k)
        bound = 1.0 / jnp.sqrt(fan_in)
        w = jax.random.uniform(kw, (fan_in, fan_out), jnp.float32, -bound, bound)
        b = jax.random.uniform(kb, (fan_out,), jnp.float32, -bound, bound)
        return w, b

    k1, k2, k3, k4 = jax.random.split(key, 4)
    w1, b1 = linear(k1, IN_FEATURES, HIDDEN)
    w2, b2 = linear(k2, HIDDEN, HIDDEN)
    w3, b3 = linear(k3, HIDDEN, HIDDEN)
    w4, b4 = linear(k4, HIDDEN, OUT_FEATURES)
    return (w1, b1, w2, b2, w3, b3, w4, b4)


def reference_forward(x, params):
    w1, b1, w2, b2, w3, b3, w4, b4 = params
    h = jnp.maximum(x @ w1 + b1, 0.0)
    h = jnp.tanh(h @ w2 + b2)
    h = jnp.maximum(h @ w3 + b3, 0.0)
    return jax.nn.sigmoid(h @ w4 + b4)


if __name__ == "__main__":
    key = jax.random.PRNGKey(0)
    kx, kp = jax.random.split(key)
    B = 8
    x = jax.random.normal(kx, (B, IN_FEATURES), dtype=jnp.float32)
    params = init_params(kp)

    out = net_forward(x, params)
    out = jax.block_until_ready(out)

    ref = reference_forward(x, params)
    assert out.shape == (B, OUT_FEATURES), out.shape
    # bf16 weights/activations with f32 accumulation: relaxed tolerance vs f32.
    assert jnp.allclose(out, ref, atol=2e-2), "mismatch vs reference"
    print("KERNEL_OK")
</pallas_src>

<mosaic_0001>
module attributes {stable_mosaic.version = 11 : i64} {
  func.func @mlp_kernel(%arg0: i32, %arg1: memref<8x9600xf32, #tpu.memory_space<vmem>>, %arg2: memref<9600x128xbf16, #tpu.memory_space<vmem>>, %arg3: memref<1x128xf32, #tpu.memory_space<vmem>>, %arg4: memref<128x128xbf16, #tpu.memory_space<vmem>>, %arg5: memref<1x128xf32, #tpu.memory_space<vmem>>, %arg6: memref<128x128xbf16, #tpu.memory_space<vmem>>, %arg7: memref<1x128xf32, #tpu.memory_space<vmem>>, %arg8: memref<128x128xbf16, #tpu.memory_space<vmem>>, %arg9: memref<1x128xf32, #tpu.memory_space<vmem>>, %arg10: memref<8x128xbf16, #tpu.memory_space<vmem>>) attributes {dimension_semantics = [#tpu.dimension_semantics<parallel>], iteration_bounds = array<i64: 1>, scalar_prefetch = 0 : i64, scratch_operands = 0 : i64, tpu.core_type = #tpu.core_type<tc>, window_params = [{transform_indices = @transform_0, window_bounds = array<i64: 8, 9600>}, {pipeline_mode = #tpu.pipeline_mode<synchronous>, transform_indices = @transform_1, window_bounds = array<i64: 9600, 128>}, {pipeline_mode = #tpu.pipeline_mode<synchronous>, transform_indices = @transform_2, window_bounds = array<i64: 1, 128>}, {pipeline_mode = #tpu.pipeline_mode<synchronous>, transform_indices = @transform_3, window_bounds = array<i64: 128, 128>}, {pipeline_mode = #tpu.pipeline_mode<synchronous>, transform_indices = @transform_4, window_bounds = array<i64: 1, 128>}, {pipeline_mode = #tpu.pipeline_mode<synchronous>, transform_indices = @transform_5, window_bounds = array<i64: 128, 128>}, {pipeline_mode = #tpu.pipeline_mode<synchronous>, transform_indices = @transform_6, window_bounds = array<i64: 1, 128>}, {pipeline_mode = #tpu.pipeline_mode<synchronous>, transform_indices = @transform_7, window_bounds = array<i64: 128, 128>}, {pipeline_mode = #tpu.pipeline_mode<synchronous>, transform_indices = @transform_8, window_bounds = array<i64: 1, 128>}, {transform_indices = @transform_9, window_bounds = array<i64: 8, 128>}]} {
    %c0 = arith.constant 0 : index
    %c0_0 = arith.constant 0 : index
    %0 = vector.load %arg1[%c0, %c0_0] : memref<8x9600xf32, #tpu.memory_space<vmem>>, vector<8x9600xf32>
    %1 = arith.truncf %0 : vector<8x9600xf32> to vector<8x9600xbf16>
    %c0_1 = arith.constant 0 : index
    %c0_2 = arith.constant 0 : index
    %2 = vector.load %arg2[%c0_1, %c0_2] : memref<9600x128xbf16, #tpu.memory_space<vmem>>, vector<9600x128xbf16>
    %cst = arith.constant dense<0.000000e+00> : vector<8x128xf32>
    %3 = tpu.matmul %1, %2, %cst {dimension_numbers = #tpu.dot_dimension_numbers<[1], [0], [0], [1], [0, 0, 1, 1], [], []>} : vector<8x9600xbf16>, vector<9600x128xbf16>, vector<8x128xf32> -> vector<8x128xf32>
    %c0_3 = arith.constant 0 : index
    %c0_4 = arith.constant 0 : index
    %4 = vector.load %arg3[%c0_3, %c0_4] : memref<1x128xf32, #tpu.memory_space<vmem>>, vector<1x128xf32>
    %5 = vector.broadcast %4 : vector<1x128xf32> to vector<8x128xf32>
    %6 = arith.addf %3, %5 : vector<8x128xf32>
    %cst_5 = arith.constant 0.000000e+00 : f32
    %7 = vector.broadcast %cst_5 : f32 to vector<8x128xf32>
    %8 = arith.maximumf %6, %7 : vector<8x128xf32>
    %9 = arith.truncf %8 : vector<8x128xf32> to vector<8x128xbf16>
    %c0_6 = arith.constant 0 : index
    %c0_7 = arith.constant 0 : index
    %10 = vector.load %arg4[%c0_6, %c0_7] : memref<128x128xbf16, #tpu.memory_space<vmem>>, vector<128x128xbf16>
    %cst_8 = arith.constant dense<0.000000e+00> : vector<8x128xf32>
    %11 = tpu.matmul %9, %10, %cst_8 {dimension_numbers = #tpu.dot_dimension_numbers<[1], [0], [0], [1], [0, 0, 1, 1], [], []>} : vector<8x128xbf16>, vector<128x128xbf16>, vector<8x128xf32> -> vector<8x128xf32>
    %c0_9 = arith.constant 0 : index
    %c0_10 = arith.constant 0 : index
    %12 = vector.load %arg5[%c0_9, %c0_10] : memref<1x128xf32, #tpu.memory_space<vmem>>, vector<1x128xf32>
    %13 = vector.broadcast %12 : vector<1x128xf32> to vector<8x128xf32>
    %14 = arith.addf %11, %13 : vector<8x128xf32>
    %15 = math.tanh %14 : vector<8x128xf32>
    %16 = arith.truncf %15 : vector<8x128xf32> to vector<8x128xbf16>
    %c0_11 = arith.constant 0 : index
    %c0_12 = arith.constant 0 : index
    %17 = vector.load %arg6[%c0_11, %c0_12] : memref<128x128xbf16, #tpu.memory_space<vmem>>, vector<128x128xbf16>
    %cst_13 = arith.constant dense<0.000000e+00> : vector<8x128xf32>
    %18 = tpu.matmul %16, %17, %cst_13 {dimension_numbers = #tpu.dot_dimension_numbers<[1], [0], [0], [1], [0, 0, 1, 1], [], []>} : vector<8x128xbf16>, vector<128x128xbf16>, vector<8x128xf32> -> vector<8x128xf32>
    %c0_14 = arith.constant 0 : index
    %c0_15 = arith.constant 0 : index
    %19 = vector.load %arg7[%c0_14, %c0_15] : memref<1x128xf32, #tpu.memory_space<vmem>>, vector<1x128xf32>
    %20 = vector.broadcast %19 : vector<1x128xf32> to vector<8x128xf32>
    %21 = arith.addf %18, %20 : vector<8x128xf32>
    %cst_16 = arith.constant 0.000000e+00 : f32
    %22 = vector.broadcast %cst_16 : f32 to vector<8x128xf32>
    %23 = arith.maximumf %21, %22 : vector<8x128xf32>
    %24 = arith.truncf %23 : vector<8x128xf32> to vector<8x128xbf16>
    %c0_17 = arith.constant 0 : index
    %c0_18 = arith.constant 0 : index
    %25 = vector.load %arg8[%c0_17, %c0_18] : memref<128x128xbf16, #tpu.memory_space<vmem>>, vector<128x128xbf16>
    %cst_19 = arith.constant dense<0.000000e+00> : vector<8x128xf32>
    %26 = tpu.matmul %24, %25, %cst_19 {dimension_numbers = #tpu.dot_dimension_numbers<[1], [0], [0], [1], [0, 0, 1, 1], [], []>} : vector<8x128xbf16>, vector<128x128xbf16>, vector<8x128xf32> -> vector<8x128xf32>
    %c0_20 = arith.constant 0 : index
    %c0_21 = arith.constant 0 : index
    %27 = vector.load %arg9[%c0_20, %c0_21] : memref<1x128xf32, #tpu.memory_space<vmem>>, vector<1x128xf32>
    %28 = vector.broadcast %27 : vector<1x128xf32> to vector<8x128xf32>
    %29 = arith.addf %26, %28 : vector<8x128xf32>
    %30 = arith.negf %29 : vector<8x128xf32>
    %31 = math.exp %30 : vector<8x128xf32>
    %cst_22 = arith.constant 1.000000e+00 : f32
    %32 = vector.broadcast %cst_22 : f32 to vector<8x128xf32>
    %33 = arith.addf %32, %31 : vector<8x128xf32>
    %34 = arith.divf %32, %33 : vector<8x128xf32>
    %35 = arith.truncf %34 : vector<8x128xf32> to vector<8x128xbf16>
    %c0_23 = arith.constant 0 : index
    %c0_24 = arith.constant 0 : index
    %36 = vector.load %arg10[%c0_23, %c0_24] : memref<8x128xbf16, #tpu.memory_space<vmem>>, vector<8x128xbf16>
    tpu.vector_store %arg10[%c0_23, %c0_24], %35 {strides = array<i32>} : memref<8x128xbf16, #tpu.memory_space<vmem>>, vector<8x128xbf16>,
    return
  }
  func.func @transform_0(%arg0: i32) -> (i32, i32) {
    %c0_i32 = arith.constant 0 : i32
    %c0_i32_0 = arith.constant 0 : i32
    return %arg0, %c0_i32 : i32, i32
  }
  func.func @transform_1(%arg0: i32) -> (i32, i32) {
    %c0_i32 = arith.constant 0 : i32
    %c0_i32_0 = arith.constant 0 : i32
    %c0_i32_1 = arith.constant 0 : i32
    return %c0_i32, %c0_i32_0 : i32, i32
  }
  func.func @transform_2(%arg0: i32) -> (i32, i32) {
    %c0_i32 = arith.constant 0 : i32
    %c0_i32_0 = arith.constant 0 : i32
    %c0_i32_1 = arith.constant 0 : i32
    return %c0_i32, %c0_i32_0 : i32, i32
  }
  func.func @transform_3(%arg0: i32) -> (i32, i32) {
    %c0_i32 = arith.constant 0 : i32
    %c0_i32_0 = arith.constant 0 : i32
    %c0_i32_1 = arith.constant 0 : i32
    return %c0_i32, %c0_i32_0 : i32, i32
  }
  func.func @transform_4(%arg0: i32) -> (i32, i32) {
    %c0_i32 = arith.constant 0 : i32
    %c0_i32_0 = arith.constant 0 : i32
    %c0_i32_1 = arith.constant 0 : i32
    return %c0_i32, %c0_i32_0 : i32, i32
  }
  func.func @transform_5(%arg0: i32) -> (i32, i32) {
    %c0_i32 = arith.constant 0 : i32
    %c0_i32_0 = arith.constant 0 : i32
    %c0_i32_1 = arith.constant 0 : i32
    return %c0_i32, %c0_i32_0 : i32, i32
  }
  func.func @transform_6(%arg0: i32) -> (i32, i32) {
    %c0_i32 = arith.constant 0 : i32
    %c0_i32_0 = arith.constant 0 : i32
    %c0_i32_1 = arith.constant 0 : i32
    return %c0_i32, %c0_i32_0 : i32, i32
  }
  func.func @transform_7(%arg0: i32) -> (i32, i32) {
    %c0_i32 = arith.constant 0 : i32
    %c0_i32_0 = arith.constant 0 : i32
    %c0_i32_1 = arith.constant 0 : i32
    return %c0_i32, %c0_i32_0 : i32, i32
  }
  func.func @transform_8(%arg0: i32) -> (i32, i32) {
    %c0_i32 = arith.constant 0 : i32
    %c0_i32_0 = arith.constant 0 : i32
    %c0_i32_1 = arith.constant 0 : i32
    return %c0_i32, %c0_i32_0 : i32, i32
  }
  func.func @transform_9(%arg0: i32) -> (i32, i32) {
    %c0_i32 = arith.constant 0 : i32
    %c0_i32_0 = arith.constant 0 : i32
    return %arg0, %c0_i32 : i32, i32
  }
}

</mosaic_0001>

<llo_original>
// kernel: tpu_custom_call.1
$region0: #{tpu_custom_call.1}
  #allocation0 [shape = 'u32[]', space=smem, size = 0x4, offset = 0x4, fixed_abs, tag = 'smem constant byte address 0x4 - core index']
  #allocation1 [shape = 'u32[72,128]{1,0:T(1,128)}', space=vmem, size = 0x9000, scoped, tag = 'internal scratch']
  %s0 = inlined_call_operand.hbm [shape: f32[8,9600], index: 0, kind: input, shape index: {}]
  %s1 = inlined_call_operand.hbm [shape: bf16[9600,128], index: 1, kind: input, shape index: {}]
  %s2 = inlined_call_operand.hbm [shape: f32[1,128], index: 2, kind: input, shape index: {}]
  %s3 = inlined_call_operand.hbm [shape: bf16[128,128], index: 3, kind: input, shape index: {}]
  %s4 = inlined_call_operand.hbm [shape: f32[1,128], index: 4, kind: input, shape index: {}]
  %s5 = inlined_call_operand.hbm [shape: bf16[128,128], index: 5, kind: input, shape index: {}]
  %s6 = inlined_call_operand.hbm [shape: f32[1,128], index: 6, kind: input, shape index: {}]
  %s7 = inlined_call_operand.hbm [shape: bf16[128,128], index: 7, kind: input, shape index: {}]
  %s8 = inlined_call_operand.hbm [shape: f32[1,128], index: 8, kind: input, shape index: {}]
  %s9 = inlined_call_operand.hbm [shape: bf16[8,128], index: 9, kind: output, shape index: {}]
  %s10 = sld [smem:[#allocation0]]
  $region82: #{tpu_custom_call.1} parent=0
    _
  %s12 = ssub.s32 1, %s10
  %s13 = scalar_select 0, %s12, %s10
  $region1: #{tpu_custom_call.1} parent=0
    #allocation2 [shape = 'u8[307200]{0}', space=vmem, size = 0x4b000, scoped, tag = 'input window, operand 0, single buffered']
    #allocation3 [shape = 's32[1]{0}', space=sflag, size = 0x4, scoped, tag = 'scoped memory for tpu_custom_call.1']
    #allocation4 [shape = 's32[1]{0}', space=sflag, size = 0x4, scoped, tag = 'scoped memory for tpu_custom_call.1']
    #allocation5 [shape = 'u8[2457600]{0}', space=vmem, size = 0x258000, scoped, tag = 'input window, operand 1, single buffered']
    #allocation6 [shape = 's32[1]{0}', space=sflag, size = 0x4, scoped, tag = 'scoped memory for tpu_custom_call.1']
    #allocation7 [shape = 'u8[512]{0}', space=vmem, size = 0x400, scoped, tag = 'input window, operand 2, single buffered']
    #allocation8 [shape = 'u8[32768]{0}', space=vmem, size = 0x8000, scoped, tag = 'input window, operand 3, single buffered']
    #allocation9 [shape = 's32[1]{0}', space=sflag, size = 0x4, scoped, tag = 'scoped memory for tpu_custom_call.1']
    #allocation10 [shape = 'u8[512]{0}', space=vmem, size = 0x400, scoped, tag = 'input window, operand 4, single buffered']
    #allocation11 [shape = 'u8[32768]{0}', space=vmem, size = 0x8000, scoped, tag = 'input window, operand 5, single buffered']
    #allocation12 [shape = 's32[1]{0}', space=sflag, size = 0x4, scoped, tag = 'scoped memory for tpu_custom_call.1']
    #allocation13 [shape = 'u8[512]{0}', space=vmem, size = 0x400, scoped, tag = 'input window, operand 6, single buffered']
    #allocation14 [shape = 'u8[32768]{0}', space=vmem, size = 0x8000, scoped, tag = 'input window, operand 7, single buffered']
    #allocation15 [shape = 's32[1]{0}', space=sflag, size = 0x4, scoped, tag = 'scoped memory for tpu_custom_call.1']
    #allocation16 [shape = 'u8[512]{0}', space=vmem, size = 0x400, scoped, tag = 'input window, operand 8, single buffered']
    #allocation17 [shape = 'u8[2048]{0}', space=vmem, size = 0x800, scoped, tag = 'output window, operand 0, single buffered']
    %14 = vsyncpa [#allocation3], 0
    %15 = vsyncpa [#allocation6], 0
    %16 = vsyncpa [#allocation9], 0
    %17 = vsyncpa [#allocation12], 0
    %18 = vsyncpa [#allocation15], 0
    %19 = vsyncpa [#allocation4], 0
    // Predicated region
    $region2: #{tpu_custom_call.1} parent=1 // pred_check
      _
    $region3: #{tpu_custom_call.1} parent=1 // pred_check_branch
      %21 = sbr.rel (0) target = $region5
    $region4: #{tpu_custom_call.1} parent=1 // pred_region
      %23 = vsyncadd [#allocation3], 0
      %s25 = sshll.u32 %s0, 4
      %s26 = int_to_ptr.hbm [resolvable:$true] %s25
      %s27 = sshll.u32 [#allocation2], 4
      %s28 = int_to_ptr.vmem [resolvable:$true] %s27
      %30 = dma.hbm_to_vmem [thread:$0]  %s26, 9600, %s28, [#allocation3]
    $region5: #{tpu_custom_call.1} parent=1 // pred_fallthru
      _
    // Predicated region
    $region6: #{tpu_custom_call.1} parent=1 // pred_check
      _
    $region7: #{tpu_custom_call.1} parent=1 // pred_check_branch
      %32 = sbr.rel (0) target = $region9
    $region8: #{tpu_custom_call.1} parent=1 // pred_region
      %34 = vsyncadd [#allocation6], 0
      %s35 = sshll.u32 %s1, 4
      %s36 = int_to_ptr.hbm [resolvable:$true] %s35
      %s37 = sshll.u32 [#allocation5], 4
      %s38 = int_to_ptr.vmem [resolvable:$true] %s37
      %43 = dma.hbm_to_vmem [thread:$0]  %s36, 76800, %s38, [#allocation6], 64, 64, 4
    $region9: #{tpu_custom_call.1} parent=1 // pred_fallthru
      _
    // Predicated region
    $region10: #{tpu_custom_call.1} parent=1 // pred_check
      _
    $region11: #{tpu_custom_call.1} parent=1 // pred_check_branch
      %45 = sbr.rel (0) target = $region13
    $region12: #{tpu_custom_call.1} parent=1 // pred_region
      %47 = vsyncadd [#allocation6], 0
      %s49 = sshll.u32 %s2, 4
      %s50 = int_to_ptr.hbm [resolvable:$true] %s49
      %s51 = sshll.u32 [#allocation7], 4
      %s52 = int_to_ptr.vmem [resolvable:$true] %s51
      %54 = dma.hbm_to_vmem [thread:$0]  %s50, 16, %s52, [#allocation6]
    $region13: #{tpu_custom_call.1} parent=1 // pred_fallthru
      _
    // Predicated region
    $region14: #{tpu_custom_call.1} parent=1 // pred_check
      _
    $region15: #{tpu_custom_call.1} parent=1 // pred_check_branch
      %56 = sbr.rel (0) target = $region17
    $region16: #{tpu_custom_call.1} parent=1 // pred_region
      %58 = vsyncadd [#allocation9], 0
      %s59 = sshll.u32 %s3, 4
      %s60 = int_to_ptr.hbm [resolvable:$true] %s59
      %s61 = sshll.u32 [#allocation8], 4
      %s62 = int_to_ptr.vmem [resolvable:$true] %s61
      %67 = dma.hbm_to_vmem [thread:$0]  %s60, 1024, %s62, [#allocation9], 64, 64, 4
    $region17: #{tpu_custom_call.1} parent=1 // pred_fallthru
      _
    // Predicated region
    $region18: #{tpu_custom_call.1} parent=1 // pred_check
      _
    $region19: #{tpu_custom_call.1} parent=1 // pred_check_branch
      %69 = sbr.rel (0) target = $region21
    $region20: #{tpu_custom_call.1} parent=1 // pred_region
      %71 = vsyncadd [#allocation9], 0
      %s73 = sshll.u32 %s4, 4
      %s74 = int_to_ptr.hbm [resolvable:$true] %s73
      %s75 = sshll.u32 [#allocation10], 4
      %s76 = int_to_ptr.vmem [resolvable:$true] %s75
      %78 = dma.hbm_to_vmem [thread:$0]  %s74, 16, %s76, [#allocation9]
    $region21: #{tpu_custom_call.1} parent=1 // pred_fallthru
      _
    // Predicated region
    $region22: #{tpu_custom_call.1} parent=1 // pred_check
      _
    $region23: #{tpu_custom_call.1} parent=1 // pred_check_branch
      %80 = sbr.rel (0) target = $region25
    $region24: #{tpu_custom_call.1} parent=1 // pred_region
      %82 = vsyncadd [#allocation12], 0
      %s83 = sshll.u32 %s5, 4
      %s84 = int_to_ptr.hbm [resolvable:$true] %s83
      %s85 = sshll.u32 [#allocation11], 4
      %s86 = int_to_ptr.vmem [resolvable:$true] %s85
      %91 = dma.hbm_to_vmem [thread:$0]  %s84, 1024, %s86, [#allocation12], 64, 64, 4
    $region25: #{tpu_custom_call.1} parent=1 // pred_fallthru
      _
    // Predicated region
    $region26: #{tpu_custom_call.1} parent=1 // pred_check
      _
    $region27: #{tpu_custom_call.1} parent=1 // pred_check_branch
      %93 = sbr.rel (0) target = $region29
    $region28: #{tpu_custom_call.1} parent=1 // pred_region
      %95 = vsyncadd [#allocation12], 0
      %s97 = sshll.u32 %s6, 4
      %s98 = int_to_ptr.hbm [resolvable:$true] %s97
      %s99 = sshll.u32 [#allocation13], 4
      %s100 = int_to_ptr.vmem [resolvable:$true] %s99
      %102 = dma.hbm_to_vmem [thread:$0]  %s98, 16, %s100, [#allocation12]
    $region29: #{tpu_custom_call.1} parent=1 // pred_fallthru
      _
    // Predicated region
    $region30: #{tpu_custom_call.1} parent=1 // pred_check
      _
    $region31: #{tpu_custom_call.1} parent=1 // pred_check_branch
      %104 = sbr.rel (0) target = $region33
    $region32: #{tpu_custom_call.1} parent=1 // pred_region
      %106 = vsyncadd [#allocation15], 0
      %s107 = sshll.u32 %s7, 4
      %s108 = int_to_ptr.hbm [resolvable:$true] %s107
      %s109 = sshll.u32 [#allocation14], 4
      %s110 = int_to_ptr.vmem [resolvable:$true] %s109
      %115 = dma.hbm_to_vmem [thread:$0]  %s108, 1024, %s110, [#allocation15], 64, 64, 4
    $region33: #{tpu_custom_call.1} parent=1 // pred_fallthru
      _
    // Predicated region
    $region34: #{tpu_custom_call.1} parent=1 // pred_check
      _
    $region35: #{tpu_custom_call.1} parent=1 // pred_check_branch
      %117 = sbr.rel (0) target = $region37
    $region36: #{tpu_custom_call.1} parent=1 // pred_region
      %119 = vsyncadd [#allocation15], 0
      %s121 = sshll.u32 %s8, 4
      %s122 = int_to_ptr.hbm [resolvable:$true] %s121
      %s123 = sshll.u32 [#allocation16], 4
      %s124 = int_to_ptr.vmem [resolvable:$true] %s123
      %126 = dma.hbm_to_vmem [thread:$0]  %s122, 16, %s124, [#allocation15]
    $region37: #{tpu_custom_call.1} parent=1 // pred_fallthru
      _
    // Predicated region
    $region38: #{tpu_custom_call.1} parent=1 // pred_check
      _
    $region39: #{tpu_custom_call.1} parent=1 // pred_check_branch
      %128 = sbr.rel (0) target = $region41
    $region40: #{tpu_custom_call.1} parent=1 // pred_region
      %130 = dma.done [#allocation3], 9600
    $region41: #{tpu_custom_call.1} parent=1 // pred_fallthru
      _
    // Predicated region
    $region42: #{tpu_custom_call.1} parent=1 // pred_check
      _
    $region43: #{tpu_custom_call.1} parent=1 // pred_check_branch
      %132 = sbr.rel (0) target = $region45
    $region44: #{tpu_custom_call.1} parent=1 // pred_region
      %134 = dma.done [#allocation6], 76800
    $region45: #{tpu_custom_call.1} parent=1 // pred_fallthru
      _
    // Predicated region
    $region46: #{tpu_custom_call.1} parent=1 // pred_check
      _
    $region47: #{tpu_custom_call.1} parent=1 // pred_check_branch
      %136 = sbr.rel (0) target = $region49
    $region48: #{tpu_custom_call.1} parent=1 // pred_region
      %138 = dma.done [#allocation6], 16
    $region49: #{tpu_custom_call.1} parent=1 // pred_fallthru
      _
    // Predicated region
    $region50: #{tpu_custom_call.1} parent=1 // pred_check
      _
    $region51: #{tpu_custom_call.1} parent=1 // pred_check_branch
      %140 = sbr.rel (0) target = $region53
    $region52: #{tpu_custom_call.1} parent=1 // pred_region
      %142 = dma.done [#allocation9], 1024
    $region53: #{tpu_custom_call.1} parent=1 // pred_fallthru
      _
    // Predicated region
    $region54: #{tpu_custom_call.1} parent=1 // pred_check
      _
    $region55: #{tpu_custom_call.1} parent=1 // pred_check_branch
      %144 = sbr.rel (0) target = $region57
    $region56: #{tpu_custom_call.1} parent=1 // pred_region
      %146 = dma.done [#allocation9], 16
    $region57: #{tpu_custom_call.1} parent=1 // pred_fallthru
      _
    // Predicated region
    $region58: #{tpu_custom_call.1} parent=1 // pred_check
      _
    $region59: #{tpu_custom_call.1} parent=1 // pred_check_branch
      %148 = sbr.rel (0) target = $region61
    $region60: #{tpu_custom_call.1} parent=1 // pred_region
      %150 = dma.done [#allocation12], 1024
    $region61: #{tpu_custom_call.1} parent=1 // pred_fallthru
      _
    // Predicated region
    $region62: #{tpu_custom_call.1} parent=1 // pred_check
      _
    $region63: #{tpu_custom_call.1} parent=1 // pred_check_branch
      %152 = sbr.rel (0) target = $region65
    $region64: #{tpu_custom_call.1} parent=1 // pred_region
      %154 = dma.done [#allocation12], 16
    $region65: #{tpu_custom_call.1} parent=1 // pred_fallthru
      _
    // Predicated region
    $region66: #{tpu_custom_call.1} parent=1 // pred_check
      _
    $region67: #{tpu_custom_call.1} parent=1 // pred_check_branch
      %156 = sbr.rel (0) target = $region69
    $region68: #{tpu_custom_call.1} parent=1 // pred_region
      %158 = dma.done [#allocation15], 1024
    $region69: #{tpu_custom_call.1} parent=1 // pred_fallthru
      _
    // Predicated region
    $region70: #{tpu_custom_call.1} parent=1 // pred_check
      _
    $region71: #{tpu_custom_call.1} parent=1 // pred_check_branch
      %160 = sbr.rel (0) target = $region73
    $region72: #{tpu_custom_call.1} parent=1 // pred_region
      %162 = dma.done [#allocation15], 16
    $region73: #{tpu_custom_call.1} parent=1 // pred_fallthru
      _
    %v163 = vld [vmem:[#allocation2] sm:$0xff]
    %v164 = vld [vmem:[#allocation2 + $0x8] sm:$0xff]
    %v165 = vld [vmem:[#allocation2 + $0x10] sm:$0xff]
    %v166 = vld [vmem:[#allocation2 + $0x18] sm:$0xff]
    %v167 = vld [vmem:[#allocation2 + $0x20] sm:$0xff]
    %v168 = vld [vmem:[#allocation2 + $0x28] sm:$0xff]
    %v169 = vld [vmem:[#allocation2 + $0x30] sm:$0xff]
    %v170 = vld [vmem:[#allocation2 + $0x38] sm:$0xff]
    %v171 = vld [vmem:[#allocation2 + $0x40] sm:$0xff]
    %v172 = vld [vmem:[#allocation2 + $0x48] sm:$0xff]
    %v173 = vld [vmem:[#allocation2 + $0x50] sm:$0xff]
    %v174 = vld [vmem:[#allocation2 + $0x58] sm:$0xff]
    %v175 = vld [vmem:[#allocation2 + $0x60] sm:$0xff]
    %v176 = vld [vmem:[#allocation2 + $0x68] sm:$0xff]
    %v177 = vld [vmem:[#allocation2 + $0x70] sm:$0xff]
    %v178 = vld [vmem:[#allocation2 + $0x78] sm:$0xff]
    %v179 = vld [vmem:[#allocation2 + $0x80] sm:$0xff]
    %v180 = vld [vmem:[#allocation2 + $0x88] sm:$0xff]
    %v181 = vld [vmem:[#allocation2 + $0x90] sm:$0xff]
    %v182 = vld [vmem:[#allocation2 + $0x98] sm:$0xff]
    %v183 = vld [vmem:[#allocation2 + $0xa0] sm:$0xff]
    %v184 = vld [vmem:[#allocation2 + $0xa8] sm:$0xff]
    %v185 = vld [vmem:[#allocation2 + $0xb0] sm:$0xff]
    %v186 = vld [vmem:[#allocation2 + $0xb8] sm:$0xff]
    %v187 = vld [vmem:[#allocation2 + $0xc0] sm:$0xff]
    %v188 = vld [vmem:[#allocation2 + $0xc8] sm:$0xff]
    %v189 = vld [vmem:[#allocation2 + $0xd0] sm:$0xff]
    %v190 = vld [vmem:[#allocation2 + $0xd8] sm:$0xff]
    %v191 = vld [vmem:[#allocation2 + $0xe0] sm:$0xff]
    %v192 = vld [vmem:[#allocation2 + $0xe8] sm:$0xff]
    %v193 = vld [vmem:[#allocation2 + $0xf0] sm:$0xff]
    %v194 = vld [vmem:[#allocation2 + $0xf8] sm:$0xff]
    %v195 = vld [vmem:[#allocation2 + $0x100] sm:$0xff]
    %v196 = vld [vmem:[#allocation2 + $0x108] sm:$0xff]
    %v197 = vld [vmem:[#allocation2 + $0x110] sm:$0xff]
    %v198 = vld [vmem:[#allocation2 + $0x118] sm:$0xff]
    %v199 = vld [vmem:[#allocation2 + $0x120] sm:$0xff]
    %v200 = vld [vmem:[#allocation2 + $0x128] sm:$0xff]
    %v201 = vld [vmem:[#allocation2 + $0x130] sm:$0xff]
    %v202 = vld [vmem:[#allocation2 + $0x138] sm:$0xff]
    %v203 = vld [vmem:[#allocation2 + $0x140] sm:$0xff]
    %v204 = vld [vmem:[#allocation2 + $0x148] sm:$0xff]
    %v205 = vld [vmem:[#allocation2 + $0x150] sm:$0xff]
    %v206 = vld [vmem:[#allocation2 + $0x158] sm:$0xff]
    %v207 = vld [vmem:[#allocation2 + $0x160] sm:$0xff]
    %v208 = vld [vmem:[#allocation2 + $0x168] sm:$0xff]
    %v209 = vld [vmem:[#allocation2 + $0x170] sm:$0xff]
    %v210 = vld [vmem:[#allocation2 + $0x178] sm:$0xff]
    %v211 = vld [vmem:[#allocation2 + $0x180] sm:$0xff]
    %v212 = vld [vmem:[#allocation2 + $0x188] sm:$0xff]
    %v213 = vld [vmem:[#allocation2 + $0x190] sm:$0xff]
    %v214 = vld [vmem:[#allocation2 + $0x198] sm:$0xff]
    %v215 = vld [vmem:[#allocation2 + $0x1a0] sm:$0xff]
    %v216 = vld [vmem:[#allocation2 + $0x1a8] sm:$0xff]
    %v217 = vld [vmem:[#allocation2 + $0x1b0] sm:$0xff]
    %v218 = vld [vmem:[#allocation2 + $0x1b8] sm:$0xff]
    %v219 = vld [vmem:[#allocation2 + $0x1c0] sm:$0xff]
    %v220 = vld [vmem:[#allocation2 + $0x1c8] sm:$0xff]
    %v221 = vld [vmem:[#allocation2 + $0x1d0] sm:$0xff]
    %v222 = vld [vmem:[#allocation2 + $0x1d8] sm:$0xff]
    %v223 = vld [vmem:[#allocation2 + $0x1e0] sm:$0xff]
    %v224 = vld [vmem:[#allocation2 + $0x1e8] sm:$0xff]
    %v225 = vld [vmem:[#allocation2 + $0x1f0] sm:$0xff]
    %v226 = vld [vmem:[#allocation2 + $0x1f8] sm:$0xff]
    %v227 = vld [vmem:[#allocation2 + $0x200] sm:$0xff]
    %v228 = vld [vmem:[#allocation2 + $0x208] sm:$0xff]
    %v229 = vld [vmem:[#allocation2 + $0x210] sm:$0xff]
    %v230 = vld [vmem:[#allocation2 + $0x218] sm:$0xff]
    %v231 = vld [vmem:[#allocation2 + $0x220] sm:$0xff]
    %v232 = vld [vmem:[#allocation2 + $0x228] sm:$0xff]
    %v233 = vld [vmem:[#allocation2 + $0x230] sm:$0xff]
    %v234 = vld [vmem:[#allocation2 + $0x238] sm:$0xff]
    %v235 = vld [vmem:[#allocation2 + $0x240] sm:$0xff]
    %v236 = vld [vmem:[#allocation2 + $0x248] sm:$0xff]
    %v237 = vld [vmem:[#allocation2 + $0x250] sm:$0xff]
    %v238 = vpack.c.bf16 %v163, %v163
    %v239 = vpack.c.bf16 %v164, %v164
    %v240 = vpack.c.bf16 %v165, %v165
    %v241 = vpack.c.bf16 %v166, %v166
    %v242 = vpack.c.bf16 %v167, %v167
    %v243 = vpack.c.bf16 %v168, %v168
    %v244 = vpack.c.bf16 %v169, %v169
    %v245 = vpack.c.bf16 %v170, %v170
    %v246 = vpack.c.bf16 %v171, %v171
    %v247 = vpack.c.bf16 %v172, %v172
    %v248 = vpack.c.bf16 %v173, %v173
    %v249 = vpack.c.bf16 %v174, %v174
    %v250 = vpack.c.bf16 %v175, %v175
    %v251 = vpack.c.bf16 %v176, %v176
    %v252 = vpack.c.bf16 %v177, %v177
    %v253 = vpack.c.bf16 %v178, %v178
    %v254 = vpack.c.bf16 %v179, %v179
    %v255 = vpack.c.bf16 %v180, %v180
    %v256 = vpack.c.bf16 %v181, %v181
    %v257 = vpack.c.bf16 %v182, %v182
    %v258 = vpack.c.bf16 %v183, %v183
    %v259 = vpack.c.bf16 %v184, %v184
    %v260 = vpack.c.bf16 %v185, %v185
    %v261 = vpack.c.bf16 %v186, %v186
    %v262 = vpack.c.bf16 %v187, %v187
    %v263 = vpack.c.bf16 %v188, %v188
    %v264 = vpack.c.bf16 %v189, %v189
    %v265 = vpack.c.bf16 %v190, %v190
    %v266 = vpack.c.bf16 %v191, %v191
    %v267 = vpack.c.bf16 %v192, %v192
    %v268 = vpack.c.bf16 %v193, %v193
    %v269 = vpack.c.bf16 %v194, %v194
    %v270 = vpack.c.bf16 %v195, %v195
    %v271 = vpack.c.bf16 %v196, %v196
    %v272 = vpack.c.bf16 %v197, %v197
    %v273 = vpack.c.bf16 %v198, %v198
    %v274 = vpack.c.bf16 %v199, %v199
    %v275 = vpack.c.bf16 %v200, %v200
    %v276 = vpack.c.bf16 %v201, %v201
    %v277 = vpack.c.bf16 %v202, %v202
    %v278 = vpack.c.bf16 %v203, %v203
    %v279 = vpack.c.bf16 %v204, %v204
    %v280 = vpack.c.bf16 %v205, %v205
    %v281 = vpack.c.bf16 %v206, %v206
    %v282 = vpack.c.bf16 %v207, %v207
    %v283 = vpack.c.bf16 %v208, %v208
    %v284 = vpack.c.bf16 %v209, %v209
    %v285 = vpack.c.bf16 %v210, %v210
    %v286 = vpack.c.bf16 %v211, %v211
    %v287 = vpack.c.bf16 %v212, %v212
    %v288 = vpack.c.bf16 %v213, %v213
    %v289 = vpack.c.bf16 %v214, %v214
    %v290 = vpack.c.bf16 %v215, %v215
    %v291 = vpack.c.bf16 %v216, %v216
    %v292 = vpack.c.bf16 %v217, %v217
    %v293 = vpack.c.bf16 %v218, %v218
    %v294 = vpack.c.bf16 %v219, %v219
    %v295 = vpack.c.bf16 %v220, %v220
    %v296 = vpack.c.bf16 %v221, %v221
    %v297 = vpack.c.bf16 %v222, %v222
    %v298 = vpack.c.bf16 %v223, %v223
    %v299 = vpack.c.bf16 %v224, %v224
    %v300 = vpack.c.bf16 %v225, %v225
    %v301 = vpack.c.bf16 %v226, %v226
    %v302 = vpack.c.bf16 %v227, %v227
    %v303 = vpack.c.bf16 %v228, %v228
    %v304 = vpack.c.bf16 %v229, %v229
    %v305 = vpack.c.bf16 %v230, %v230
    %v306 = vpack.c.bf16 %v231, %v231
    %v307 = vpack.c.bf16 %v232, %v232
    %v308 = vpack.c.bf16 %v233, %v233
    %v309 = vpack.c.bf16 %v234, %v234
    %v310 = vpack.c.bf16 %v235, %v235
    %v311 = vpack.c.bf16 %v236, %v236
    %v312 = vpack.c.bf16 %v237, %v237
    %v313 = vld [vmem:[#allocation5] sm:$0xf]
    %v314 = vld [vmem:[#allocation5 + $0x4] sm:$0xf]
    %v315 = vld [vmem:[#allocation5 + $0x8] sm:$0xf]
    %v316 = vld [vmem:[#allocation5 + $0xc] sm:$0xf]
    %v317 = vld [vmem:[#allocation5 + $0x10] sm:$0xf]
    %v318 = vld [vmem:[#allocation5 + $0x14] sm:$0xf]
    %v319 = vld [vmem:[#allocation5 + $0x18] sm:$0xf]
    %v320 = vld [vmem:[#allocation5 + $0x1c] sm:$0xf]
    %v321 = vld [vmem:[#allocation5 + $0x20] sm:$0xf]
    %v322 = vld [vmem:[#allocation5 + $0x24] sm:$0xf]
    %v323 = vld [vmem:[#allocation5 + $0x28] sm:$0xf]
    %v324 = vld [vmem:[#allocation5 + $0x2c] sm:$0xf]
    %v325 = vld [vmem:[#allocation5 + $0x30] sm:$0xf]
    %v326 = vld [vmem:[#allocation5 + $0x34] sm:$0xf]
    %v327 = vld [vmem:[#allocation5 + $0x38] sm:$0xf]
    %v328 = vld [vmem:[#allocation5 + $0x3c] sm:$0xf]
    %v329 = vld [vmem:[#allocation5 + $0x40] sm:$0xf]
    %v330 = vld [vmem:[#allocation5 + $0x44] sm:$0xf]
    %v331 = vld [vmem:[#allocation5 + $0x48] sm:$0xf]
    %v332 = vld [vmem:[#allocation5 + $0x4c] sm:$0xf]
    %v333 = vld [vmem:[#allocation5 + $0x50] sm:$0xf]
    %v334 = vld [vmem:[#allocation5 + $0x54] sm:$0xf]
    %v335 = vld [vmem:[#allocation5 + $0x58] sm:$0xf]
    %v336 = vld [vmem:[#allocation5 + $0x5c] sm:$0xf]
    %v337 = vld [vmem:[#allocation5 + $0x60] sm:$0xf]
    %v338 = vld [vmem:[#allocation5 + $0x64] sm:$0xf]
    %v339 = vld [vmem:[#allocation5 + $0x68] sm:$0xf]
    %v340 = vld [vmem:[#allocation5 + $0x6c] sm:$0xf]
    %v341 = vld [vmem:[#allocation5 + $0x70] sm:$0xf]
    %v342 = vld [vmem:[#allocation5 + $0x74] sm:$0xf]
    %v343 = vld [vmem:[#allocation5 + $0x78] sm:$0xf]
    %v344 = vld [vmem:[#allocation5 + $0x7c] sm:$0xf]
    %v345 = vld [vmem:[#allocation5 + $0x80] sm:$0xf]
    %v346 = vld [vmem:[#allocation5 + $0x84] sm:$0xf]
    %v347 = vld [vmem:[#allocation5 + $0x88] sm:$0xf]
    %v348 = vld [vmem:[#allocation5 + $0x8c] sm:$0xf]
    %v349 = vld [vmem:[#allocation5 + $0x90] sm:$0xf]
    %v350 = vld [vmem:[#allocation5 + $0x94] sm:$0xf]
    %v351 = vld [vmem:[#allocation5 + $0x98] sm:$0xf]
    %v352 = vld [vmem:[#allocation5 + $0x9c] sm:$0xf]
    %v353 = vld [vmem:[#allocation5 + $0xa0] sm:$0xf]
    %v354 = vld [vmem:[#allocation5 + $0xa4] sm:$0xf]
    %v355 = vld [vmem:[#allocation5 + $0xa8] sm:$0xf]
    %v356 = vld [vmem:[#allocation5 + $0xac] sm:$0xf]
    %v357 = vld [vmem:[#allocation5 + $0xb0] sm:$0xf]
    %v358 = vld [vmem:[#allocation5 + $0xb4] sm:$0xf]
    %v359 = vld [vmem:[#allocation5 + $0xb8] sm:$0xf]
    %v360 = vld [vmem:[#allocation5 + $0xbc] sm:$0xf]
    %v361 = vld [vmem:[#allocation5 + $0xc0] sm:$0xf]
    %v362 = vld [vmem:[#allocation5 + $0xc4] sm:$0xf]
    %v363 = vld [vmem:[#allocation5 + $0xc8] sm:$0xf]
    %v364 = vld [vmem:[#allocation5 + $0xcc] sm:$0xf]
    %v365 = vld [vmem:[#allocation5 + $0xd0] sm:$0xf]
    %v366 = vld [vmem:[#allocation5 + $0xd4] sm:$0xf]
    %v367 = vld [vmem:[#allocation5 + $0xd8] sm:$0xf]
    %v368 = vld [vmem:[#allocation5 + $0xdc] sm:$0xf]
    %v369 = vld [vmem:[#allocation5 + $0xe0] sm:$0xf]
    %v370 = vld [vmem:[#allocation5 + $0xe4] sm:$0xf]
    %v371 = vld [vmem:[#allocation5 + $0xe8] sm:$0xf]
    %v372 = vld [vmem:[#allocation5 + $0xec] sm:$0xf]
    %v373 = vld [vmem:[#allocation5 + $0xf0] sm:$0xf]
    %v374 = vld [vmem:[#allocation5 + $0xf4] sm:$0xf]
    %v375 = vld [vmem:[#allocation5 + $0xf8] sm:$0xf]
    %v376 = vld [vmem:[#allocation5 + $0xfc] sm:$0xf]
    %v377 = vld [vmem:[#allocation5 + $0x100] sm:$0xf]
    %v378 = vld [vmem:[#allocation5 + $0x104] sm:$0xf]
    %v379 = vld [vmem:[#allocation5 + $0x108] sm:$0xf]
    %v380 = vld [vmem:[#allocation5 + $0x10c] sm:$0xf]
    %v381 = vld [vmem:[#allocation5 + $0x110] sm:$0xf]
    %v382 = vld [vmem:[#allocation5 + $0x114] sm:$0xf]
    %v383 = vld [vmem:[#allocation5 + $0x118] sm:$0xf]
    %v384 = vld [vmem:[#allocation5 + $0x11c] sm:$0xf]
    %v385 = vld [vmem:[#allocation5 + $0x120] sm:$0xf]
    %v386 = vld [vmem:[#allocation5 + $0x124] sm:$0xf]
    %v387 = vld [vmem:[#allocation5 + $0x128] sm:$0xf]
    %v388 = vld [vmem:[#allocation5 + $0x12c] sm:$0xf]
    %v389 = vld [vmem:[#allocation5 + $0x130] sm:$0xf]
    %v390 = vld [vmem:[#allocation5 + $0x134] sm:$0xf]
    %v391 = vld [vmem:[#allocation5 + $0x138] sm:$0xf]
    %v392 = vld [vmem:[#allocation5 + $0x13c] sm:$0xf]
    %v393 = vld [vmem:[#allocation5 + $0x140] sm:$0xf]
    %v394 = vld [vmem:[#allocation5 + $0x144] sm:$0xf]
    %v395 = vld [vmem:[#allocation5 + $0x148] sm:$0xf]
    %v396 = vld [vmem:[#allocation5 + $0x14c] sm:$0xf]
    %v397 = vld [vmem:[#allocation5 + $0x150] sm:$0xf]
    %v398 = vld [vmem:[#allocation5 + $0x154] sm:$0xf]
    %v399 = vld [vmem:[#allocation5 + $0x158] sm:$0xf]
    %v400 = vld [vmem:[#allocation5 + $0x15c] sm:$0xf]
    %v401 = vld [vmem:[#allocation5 + $0x160] sm:$0xf]
    %v402 = vld [vmem:[#allocation5 + $0x164] sm:$0xf]
    %v403 = vld [vmem:[#allocation5 + $0x168] sm:$0xf]
    %v404 = vld [vmem:[#allocation5 + $0x16c] sm:$0xf]
    %v405 = vld [vmem:[#allocation5 + $0x170] sm:$0xf]
    %v406 = vld [vmem:[#allocation5 + $0x174] sm:$0xf]
    %v407 = vld [vmem:[#allocation5 + $0x178] sm:$0xf]
    %v408 = vld [vmem:[#allocation5 + $0x17c] sm:$0xf]
    %v409 = vld [vmem:[#allocation5 + $0x180] sm:$0xf]
    %v410 = vld [vmem:[#allocation5 + $0x184] sm:$0xf]
    %v411 = vld [vmem:[#allocation5 + $0x188] sm:$0xf]
    %v412 = vld [vmem:[#allocation5 + $0x18c] sm:$0xf]
    %v413 = vld [vmem:[#allocation5 + $0x190] sm:$0xf]
    %v414 = vld [vmem:[#allocation5 + $0x194] sm:$0xf]
    %v415 = vld [vmem:[#allocation5 + $0x198] sm:$0xf]
    %v416 = vld [vmem:[#allocation5 + $0x19c] sm:$0xf]
    %v417 = vld [vmem:[#allocation5 + $0x1a0] sm:$0xf]
    %v418 = vld [vmem:[#allocation5 + $0x1a4] sm:$0xf]
    %v419 = vld [vmem:[#allocation5 + $0x1a8] sm:$0xf]
    %v420 = vld [vmem:[#allocation5 + $0x1ac] sm:$0xf]
    %v421 = vld [vmem:[#allocation5 + $0x1b0] sm:$0xf]
    %v422 = vld [vmem:[#allocation5 + $0x1b4] sm:$0xf]
    %v423 = vld [vmem:[#allocation5 + $0x1b8] sm:$0xf]
    %v424 = vld [vmem:[#allocation5 + $0x1bc] sm:$0xf]
    %v425 = vld [vmem:[#allocation5 + $0x1c0] sm:$0xf]
    %v426 = vld [vmem:[#allocation5 + $0x1c4] sm:$0xf]
    %v427 = vld [vmem:[#allocation5 + $0x1c8] sm:$0xf]
    %v428 = vld [vmem:[#allocation5 + $0x1cc] sm:$0xf]
    %v429 = vld [vmem:[#allocation5 + $0x1d0] sm:$0xf]
    %v430 = vld [vmem:[#allocation5 + $0x1d4] sm:$0xf]
    %v431 = vld [vmem:[#allocation5 + $0x1d8] sm:$0xf]
    %v432 = vld [vmem:[#allocation5 + $0x1dc] sm:$0xf]
    %v433 = vld [vmem:[#allocation5 + $0x1e0] sm:$0xf]
    %v434 = vld [vmem:[#allocation5 + $0x1e4] sm:$0xf]
    %v435 = vld [vmem:[#allocation5 + $0x1e8] sm:$0xf]
    %v436 = vld [vmem:[#allocation5 + $0x1ec] sm:$0xf]
    %v437 = vld [vmem:[#allocation5 + $0x1f0] sm:$0xf]
    %v438 = vld [vmem:[#allocation5 + $0x1f4] sm:$0xf]
    %v439 = vld [vmem:[#allocation5 + $0x1f8] sm:$0xf]
    %v440 = vld [vmem:[#allocation5 + $0x1fc] sm:$0xf]
    %v441 = vld [vmem:[#allocation5 + $0x200] sm:$0xf]
    %v442 = vld [vmem:[#allocation5 + $0x204] sm:$0xf]
    %v443 = vld [vmem:[#allocation5 + $0x208] sm:$0xf]
    %v444 = vld [vmem:[#allocation5 + $0x20c] sm:$0xf]
    %v445 = vld [vmem:[#allocation5 + $0x210] sm:$0xf]
    %v446 = vld [vmem:[#allocation5 + $0x214] sm:$0xf]
    %v447 = vld [vmem:[#allocation5 + $0x218] sm:$0xf]
    %v448 = vld [vmem:[#allocation5 + $0x21c] sm:$0xf]
    %v449 = vld [vmem:[#allocation5 + $0x220] sm:$0xf]
    %v450 = vld [vmem:[#allocation5 + $0x224] sm:$0xf]
    %v451 = vld [vmem:[#allocation5 + $0x228] sm:$0xf]
    %v452 = vld [vmem:[#allocation5 + $0x22c] sm:$0xf]
    %v453 = vld [vmem:[#allocation5 + $0x230] sm:$0xf]
    %v454 = vld [vmem:[#allocation5 + $0x234] sm:$0xf]
    %v455 = vld [vmem:[#allocation5 + $0x238] sm:$0xf]
    %v456 = vld [vmem:[#allocation5 + $0x23c] sm:$0xf]
    %v457 = vld [vmem:[#allocation5 + $0x240] sm:$0xf]
    %v458 = vld [vmem:[#allocation5 + $0x244] sm:$0xf]
    %v459 = vld [vmem:[#allocation5 + $0x248] sm:$0xf]
    %v460 = vld [vmem:[#allocation5 + $0x24c] sm:$0xf]
    %v461 = vld [vmem:[#allocation5 + $0x250] sm:$0xf]
    %v462 = vld [vmem:[#allocation5 + $0x254] sm:$0xf]
    %v463 = vld [vmem:[#allocation5 + $0x258] sm:$0xf]
    %v464 = vld [vmem:[#allocation5 + $0x25c] sm:$0xf]
    %v465 = vld [vmem:[#allocation5 + $0x260] sm:$0xf]
    %v466 = vld [vmem:[#allocation5 + $0x264] sm:$0xf]
    %v467 = vld [vmem:[#allocation5 + $0x268] sm:$0xf]
    %v468 = vld [vmem:[#allocation5 + $0x26c] sm:$0xf]
    %v469 = vld [vmem:[#allocation5 + $0x270] sm:$0xf]
    %v470 = vld [vmem:[#allocation5 + $0x274] sm:$0xf]
    %v471 = vld [vmem:[#allocation5 + $0x278] sm:$0xf]
    %v472 = vld [vmem:[#allocation5 + $0x27c] sm:$0xf]
    %v473 = vld [vmem:[#allocation5 + $0x280] sm:$0xf]
    %v474 = vld [vmem:[#allocation5 + $0x284] sm:$0xf]
    %v475 = vld [vmem:[#allocation5 + $0x288] sm:$0xf]
    %v476 = vld [vmem:[#allocation5 + $0x28c] sm:$0xf]
    %v477 = vld [vmem:[#allocation5 + $0x290] sm:$0xf]
    %v478 = vld [vmem:[#allocation5 + $0x294] sm:$0xf]
    %v479 = vld [vmem:[#allocation5 + $0x298] sm:$0xf]
    %v480 = vld [vmem:[#allocation5 + $0x29c] sm:$0xf]
    %v481 = vld [vmem:[#allocation5 + $0x2a0] sm:$0xf]
    %v482 = vld [vmem:[#allocation5 + $0x2a4] sm:$0xf]
    %v483 = vld [vmem:[#allocation5 + $0x2a8] sm:$0xf]
    %v484 = vld [vmem:[#allocation5 + $0x2ac] sm:$0xf]
    %v485 = vld [vmem:[#allocation5 + $0x2b0] sm:$0xf]
    %v486 = vld [vmem:[#allocation5 + $0x2b4] sm:$0xf]
    %v487 = vld [vmem:[#allocation5 + $0x2b8] sm:$0xf]
    %v488 = vld [vmem:[#allocation5 + $0x2bc] sm:$0xf]
    %v489 = vld [vmem:[#allocation5 + $0x2c0] sm:$0xf]
    %v490 = vld [vmem:[#allocation5 + $0x2c4] sm:$0xf]
    %v491 = vld [vmem:[#allocation5 + $0x2c8] sm:$0xf]
    %v492 = vld [vmem:[#allocation5 + $0x2cc] sm:$0xf]
    %v493 = vld [vmem:[#allocation5 + $0x2d0] sm:$0xf]
    %v494 = vld [vmem:[#allocation5 + $0x2d4] sm:$0xf]
    %v495 = vld [vmem:[#allocation5 + $0x2d8] sm:$0xf]
    %v496 = vld [vmem:[#allocation5 + $0x2dc] sm:$0xf]
    %v497 = vld [vmem:[#allocation5 + $0x2e0] sm:$0xf]
    %v498 = vld [vmem:[#allocation5 + $0x2e4] sm:$0xf]
    %v499 = vld [vmem:[#allocation5 + $0x2e8] sm:$0xf]
    %v500 = vld [vmem:[#allocation5 + $0x2ec] sm:$0xf]
    %v501 = vld [vmem:[#allocation5 + $0x2f0] sm:$0xf]
    %v502 = vld [vmem:[#allocation5 + $0x2f4] sm:$0xf]
    %v503 = vld [vmem:[#allocation5 + $0x2f8] sm:$0xf]
    %v504 = vld [vmem:[#allocation5 + $0x2fc] sm:$0xf]
    %v505 = vld [vmem:[#allocation5 + $0x300] sm:$0xf]
    %v506 = vld [vmem:[#allocation5 + $0x304] sm:$0xf]
    %v507 = vld [vmem:[#allocation5 + $0x308] sm:$0xf]
    %v508 = vld [vmem:[#allocation5 + $0x30c] sm:$0xf]
    %v509 = vld [vmem:[#allocation5 + $0x310] sm:$0xf]
    %v510 = vld [vmem:[#allocation5 + $0x314] sm:$0xf]
    %v511 = vld [vmem:[#allocation5 + $0x318] sm:$0xf]
    %v512 = vld [vmem:[#allocation5 + $0x31c] sm:$0xf]
    %v513 = vld [vmem:[#allocation5 + $0x320] sm:$0xf]
    %v514 = vld [vmem:[#allocation5 + $0x324] sm:$0xf]
    %v515 = vld [vmem:[#allocation5 + $0x328] sm:$0xf]
    %v516 = vld [vmem:[#allocation5 + $0x32c] sm:$0xf]
    %v517 = vld [vmem:[#allocation5 + $0x330] sm:$0xf]
    %v518 = vld [vmem:[#allocation5 + $0x334] sm:$0xf]
    %v519 = vld [vmem:[#allocation5 + $0x338] sm:$0xf]
    %v520 = vld [vmem:[#allocation5 + $0x33c] sm:$0xf]
    %v521 = vld [vmem:[#allocation5 + $0x340] sm:$0xf]
    %v522 = vld [vmem:[#allocation5 + $0x344] sm:$0xf]
    %v523 = vld [vmem:[#allocation5 + $0x348] sm:$0xf]
    %v524 = vld [vmem:[#allocation5 + $0x34c] sm:$0xf]
    %v525 = vld [vmem:[#allocation5 + $0x350] sm:$0xf]
    %v526 = vld [vmem:[#allocation5 + $0x354] sm:$0xf]
    %v527 = vld [vmem:[#allocation5 + $0x358] sm:$0xf]
    %v528 = vld [vmem:[#allocation5 + $0x35c] sm:$0xf]
    %v529 = vld [vmem:[#allocation5 + $0x360] sm:$0xf]
    %v530 = vld [vmem:[#allocation5 + $0x364] sm:$0xf]
    %v531 = vld [vmem:[#allocation5 + $0x368] sm:$0xf]
    %v532 = vld [vmem:[#allocation5 + $0x36c] sm:$0xf]
    %v533 = vld [vmem:[#allocation5 + $0x370] sm:$0xf]
    %v534 = vld [vmem:[#allocation5 + $0x374] sm:$0xf]
    %v535 = vld [vmem:[#allocation5 + $0x378] sm:$0xf]
    %v536 = vld [vmem:[#allocation5 + $0x37c] sm:$0xf]
    %v537 = vld [vmem:[#allocation5 + $0x380] sm:$0xf]
    %v538 = vld [vmem:[#allocation5 + $0x384] sm:$0xf]
    %v539 = vld [vmem:[#allocation5 + $0x388] sm:$0xf]
    %v540 = vld [vmem:[#allocation5 + $0x38c] sm:$0xf]
    %v541 = vld [vmem:[#allocation5 + $0x390] sm:$0xf]
    %v542 = vld [vmem:[#allocation5 + $0x394] sm:$0xf]
    %v543 = vld [vmem:[#allocation5 + $0x398] sm:$0xf]
    %v544 = vld [vmem:[#allocation5 + $0x39c] sm:$0xf]
    %v545 = vld [vmem:[#allocation5 + $0x3a0] sm:$0xf]
    %v546 = vld [vmem:[#allocation5 + $0x3a4] sm:$0xf]
    %v547 = vld [vmem:[#allocation5 + $0x3a8] sm:$0xf]
    %v548 = vld [vmem:[#allocation5 + $0x3ac] sm:$0xf]
    %v549 = vld [vmem:[#allocation5 + $0x3b0] sm:$0xf]
    %v550 = vld [vmem:[#allocation5 + $0x3b4] sm:$0xf]
    %v551 = vld [vmem:[#allocation5 + $0x3b8] sm:$0xf]
    %v552 = vld [vmem:[#allocation5 + $0x3bc] sm:$0xf]
    %v553 = vld [vmem:[#allocation5 + $0x3c0] sm:$0xf]
    %v554 = vld [vmem:[#allocation5 + $0x3c4] sm:$0xf]
    %v555 = vld [vmem:[#allocation5 + $0x3c8] sm:$0xf]
    %v556 = vld [vmem:[#allocation5 + $0x3cc] sm:$0xf]
    %v557 = vld [vmem:[#allocation5 + $0x3d0] sm:$0xf]
    %v558 = vld [vmem:[#allocation5 + $0x3d4] sm:$0xf]
    %v559 = vld [vmem:[#allocation5 + $0x3d8] sm:$0xf]
    %v560 = vld [vmem:[#allocation5 + $0x3dc] sm:$0xf]
    %v561 = vld [vmem:[#allocation5 + $0x3e0] sm:$0xf]
    %v562 = vld [vmem:[#allocation5 + $0x3e4] sm:$0xf]
    %v563 = vld [vmem:[#allocation5 + $0x3e8] sm:$0xf]
    %v564 = vld [vmem:[#allocation5 + $0x3ec] sm:$0xf]
    %v565 = vld [vmem:[#allocation5 + $0x3f0] sm:$0xf]
    %v566 = vld [vmem:[#allocation5 + $0x3f4] sm:$0xf]
    %v567 = vld [vmem:[#allocation5 + $0x3f8] sm:$0xf]
    %v568 = vld [vmem:[#allocation5 + $0x3fc] sm:$0xf]
    %v569 = vld [vmem:[#allocation5 + $0x400] sm:$0xf]
    %v570 = vld [vmem:[#allocation5 + $0x404] sm:$0xf]
    %v571 = vld [vmem:[#allocation5 + $0x408] sm:$0xf]
    %v572 = vld [vmem:[#allocation5 + $0x40c] sm:$0xf]
    %v573 = vld [vmem:[#allocation5 + $0x410] sm:$0xf]
    %v574 = vld [vmem:[#allocation5 + $0x414] sm:$0xf]
    %v575 = vld [vmem:[#allocation5 + $0x418] sm:$0xf]
    %v576 = vld [vmem:[#allocation5 + $0x41c] sm:$0xf]
    %v577 = vld [vmem:[#allocation5 + $0x420] sm:$0xf]
    %v578 = vld [vmem:[#allocation5 + $0x424] sm:$0xf]
    %v579 = vld [vmem:[#allocation5 + $0x428] sm:$0xf]
    %v580 = vld [vmem:[#allocation5 + $0x42c] sm:$0xf]
    %v581 = vld [vmem:[#allocation5 + $0x430] sm:$0xf]
    %v582 = vld [vmem:[#allocation5 + $0x434] sm:$0xf]
    %v583 = vld [vmem:[#allocation5 + $0x438] sm:$0xf]
    %v584 = vld [vmem:[#allocation5 + $0x43c] sm:$0xf]
    %v585 = vld [vmem:[#allocation5 + $0x440] sm:$0xf]
    %v586 = vld [vmem:[#allocation5 + $0x444] sm:$0xf]
    %v587 = vld [vmem:[#allocation5 + $0x448] sm:$0xf]
    %v588 = vld [vmem:[#allocation5 + $0x44c] sm:$0xf]
    %v589 = vld [vmem:[#allocation5 + $0x450] sm:$0xf]
    %v590 = vld [vmem:[#allocation5 + $0x454] sm:$0xf]
    %v591 = vld [vmem:[#allocation5 + $0x458] sm:$0xf]
    %v592 = vld [vmem:[#allocation5 + $0x45c] sm:$0xf]
    %v593 = vld [vmem:[#allocation5 + $0x460] sm:$0xf]
    %v594 = vld [vmem:[#allocation5 + $0x464] sm:$0xf]
    %v595 = vld [vmem:[#allocation5 + $0x468] sm:$0xf]
    %v596 = vld [vmem:[#allocation5 + $0x46c] sm:$0xf]
    %v597 = vld [vmem:[#allocation5 + $0x470] sm:$0xf]
    %v598 = vld [vmem:[#allocation5 + $0x474] sm:$0xf]
    %v599 = vld [vmem:[#allocation5 + $0x478] sm:$0xf]
    %v600 = vld [vmem:[#allocation5 + $0x47c] sm:$0xf]
    %v601 = vld [vmem:[#allocation5 + $0x480] sm:$0xf]
    %v602 = vld [vmem:[#allocation5 + $0x484] sm:$0xf]
    %v603 = vld [vmem:[#allocation5 + $0x488] sm:$0xf]
    %v604 = vld [vmem:[#allocation5 + $0x48c] sm:$0xf]
    %v605 = vld [vmem:[#allocation5 + $0x490] sm:$0xf]
    %v606 = vld [vmem:[#allocation5 + $0x494] sm:$0xf]
    %v607 = vld [vmem:[#allocation5 + $0x498] sm:$0xf]
    %v608 = vld [vmem:[#allocation5 + $0x49c] sm:$0xf]
    %v609 = vld [vmem:[#allocation5 + $0x4a0] sm:$0xf]
    %v610 = vld [vmem:[#allocation5 + $0x4a4] sm:$0xf]
    %v611 = vld [vmem:[#allocation5 + $0x4a8] sm:$0xf]
    %v612 = vld [vmem:[#allocation5 + $0x4ac] sm:$0xf]
    %v613 = vld [vmem:[#allocation5 + $0x4b0] sm:$0xf]
    %v614 = vld [vmem:[#allocation5 + $0x4b4] sm:$0xf]
    %v615 = vld [vmem:[#allocation5 + $0x4b8] sm:$0xf]
    %v616 = vld [vmem:[#allocation5 + $0x4bc] sm:$0xf]
    %v617 = vld [vmem:[#allocation5 + $0x4c0] sm:$0xf]
    %v618 = vld [vmem:[#allocation5 + $0x4c4] sm:$0xf]
    %v619 = vld [vmem:[#allocation5 + $0x4c8] sm:$0xf]
    %v620 = vld [vmem:[#allocation5 + $0x4cc] sm:$0xf]
    %v621 = vld [vmem:[#allocation5 + $0x4d0] sm:$0xf]
    %v622 = vld [vmem:[#allocation5 + $0x4d4] sm:$0xf]
    %v623 = vld [vmem:[#allocation5 + $0x4d8] sm:$0xf]
    %v624 = vld [vmem:[#allocation5 + $0x4dc] sm:$0xf]
    %v625 = vld [vmem:[#allocation5 + $0x4e0] sm:$0xf]
    %v626 = vld [vmem:[#allocation5 + $0x4e4] sm:$0xf]
    %v627 = vld [vmem:[#allocation5 + $0x4e8] sm:$0xf]
    %v628 = vld [vmem:[#allocation5 + $0x4ec] sm:$0xf]
    %v629 = vld [vmem:[#allocation5 + $0x4f0] sm:$0xf]
    %v630 = vld [vmem:[#allocation5 + $0x4f4] sm:$0xf]
    %v631 = vld [vmem:[#allocation5 + $0x4f8] sm:$0xf]
    %v632 = vld [vmem:[#allocation5 + $0x4fc] sm:$0xf]
    %v633 = vld [vmem:[#allocation5 + $0x500] sm:$0xf]
    %v634 = vld [vmem:[#allocation5 + $0x504] sm:$0xf]
    %v635 = vld [vmem:[#allocation5 + $0x508] sm:$0xf]
    %v636 = vld [vmem:[#allocation5 + $0x50c] sm:$0xf]
    %v637 = vld [vmem:[#allocation5 + $0x510] sm:$0xf]
    %v638 = vld [vmem:[#allocation5 + $0x514] sm:$0xf]
    %v639 = vld [vmem:[#allocation5 + $0x518] sm:$0xf]
    %v640 = vld [vmem:[#allocation5 + $0x51c] sm:$0xf]
    %v641 = vld [vmem:[#allocation5 + $0x520] sm:$0xf]
    %v642 = vld [vmem:[#allocation5 + $0x524] sm:$0xf]
    %v643 = vld [vmem:[#allocation5 + $0x528] sm:$0xf]
    %v644 = vld [vmem:[#allocation5 + $0x52c] sm:$0xf]
    %v645 = vld [vmem:[#allocation5 + $0x530] sm:$0xf]
    %v646 = vld [vmem:[#allocation5 + $0x534] sm:$0xf]
    %v647 = vld [vmem:[#allocation5 + $0x538] sm:$0xf]
    %v648 = vld [vmem:[#allocation5 + $0x53c] sm:$0xf]
    %v649 = vld [vmem:[#allocation5 + $0x540] sm:$0xf]
    %v650 = vld [vmem:[#allocation5 + $0x544] sm:$0xf]
    %v651 = vld [vmem:[#allocation5 + $0x548] sm:$0xf]
    %v652 = vld [vmem:[#allocation5 + $0x54c] sm:$0xf]
    %v653 = vld [vmem:[#allocation5 + $0x550] sm:$0xf]
    %v654 = vld [vmem:[#allocation5 + $0x554] sm:$0xf]
    %v655 = vld [vmem:[#allocation5 + $0x558] sm:$0xf]
    %v656 = vld [vmem:[#allocation5 + $0x55c] sm:$0xf]
    %v657 = vld [vmem:[#allocation5 + $0x560] sm:$0xf]
    %v658 = vld [vmem:[#allocation5 + $0x564] sm:$0xf]
    %v659 = vld [vmem:[#allocation5 + $0x568] sm:$0xf]
    %v660 = vld [vmem:[#allocation5 + $0x56c] sm:$0xf]
    %v661 = vld [vmem:[#allocation5 + $0x570] sm:$0xf]
    %v662 = vld [vmem:[#allocation5 + $0x574] sm:$0xf]
    %v663 = vld [vmem:[#allocation5 + $0x578] sm:$0xf]
    %v664 = vld [vmem:[#allocation5 + $0x57c] sm:$0xf]
    %v665 = vld [vmem:[#allocation5 + $0x580] sm:$0xf]
    %v666 = vld [vmem:[#allocation5 + $0x584] sm:$0xf]
    %v667 = vld [vmem:[#allocation5 + $0x588] sm:$0xf]
    %v668 = vld [vmem:[#allocation5 + $0x58c] sm:$0xf]
    %v669 = vld [vmem:[#allocation5 + $0x590] sm:$0xf]
    %v670 = vld [vmem:[#allocation5 + $0x594] sm:$0xf]
    %v671 = vld [vmem:[#allocation5 + $0x598] sm:$0xf]
    %v672 = vld [vmem:[#allocation5 + $0x59c] sm:$0xf]
    %v673 = vld [vmem:[#allocation5 + $0x5a0] sm:$0xf]
    %v674 = vld [vmem:[#allocation5 + $0x5a4] sm:$0xf]
    %v675 = vld [vmem:[#allocation5 + $0x5a8] sm:$0xf]
    %v676 = vld [vmem:[#allocation5 + $0x5ac] sm:$0xf]
    %v677 = vld [vmem:[#allocation5 + $0x5b0] sm:$0xf]
    %v678 = vld [vmem:[#allocation5 + $0x5b4] sm:$0xf]
    %v679 = vld [vmem:[#allocation5 + $0x5b8] sm:$0xf]
    %v680 = vld [vmem:[#allocation5 + $0x5bc] sm:$0xf]
    %v681 = vld [vmem:[#allocation5 + $0x5c0] sm:$0xf]
    %v682 = vld [vmem:[#allocation5 + $0x5c4] sm:$0xf]
    %v683 = vld [vmem:[#allocation5 + $0x5c8] sm:$0xf]
    %v684 = vld [vmem:[#allocation5 + $0x5cc] sm:$0xf]
    %v685 = vld [vmem:[#allocation5 + $0x5d0] sm:$0xf]
    %v686 = vld [vmem:[#allocation5 + $0x5d4] sm:$0xf]
    %v687 = vld [vmem:[#allocation5 + $0x5d8] sm:$0xf]
    %v688 = vld [vmem:[#allocation5 + $0x5dc] sm:$0xf]
    %v689 = vld [vmem:[#allocation5 + $0x5e0] sm:$0xf]
    %v690 = vld [vmem:[#allocation5 + $0x5e4] sm:$0xf]
    %v691 = vld [vmem:[#allocation5 + $0x5e8] sm:$0xf]
    %v692 = vld [vmem:[#allocation5 + $0x5ec] sm:$0xf]
    %v693 = vld [vmem:[#allocation5 + $0x5f0] sm:$0xf]
    %v694 = vld [vmem:[#allocation5 + $0x5f4] sm:$0xf]
    %v695 = vld [vmem:[#allocation5 + $0x5f8] sm:$0xf]
    %v696 = vld [vmem:[#allocation5 + $0x5fc] sm:$0xf]
    %v697 = vld [vmem:[#allocation5 + $0x600] sm:$0xf]
    %v698 = vld [vmem:[#allocation5 + $0x604] sm:$0xf]
    %v699 = vld [vmem:[#allocation5 + $0x608] sm:$0xf]
    %v700 = vld [vmem:[#allocation5 + $0x60c] sm:$0xf]
    %v701 = vld [vmem:[#allocation5 + $0x610] sm:$0xf]
    %v702 = vld [vmem:[#allocation5 + $0x614] sm:$0xf]
    %v703 = vld [vmem:[#allocation5 + $0x618] sm:$0xf]
    %v704 = vld [vmem:[#allocation5 + $0x61c] sm:$0xf]
    %v705 = vld [vmem:[#allocation5 + $0x620] sm:$0xf]
    %v706 = vld [vmem:[#allocation5 + $0x624] sm:$0xf]
    %v707 = vld [vmem:[#allocation5 + $0x628] sm:$0xf]
    %v708 = vld [vmem:[#allocation5 + $0x62c] sm:$0xf]
    %v709 = vld [vmem:[#allocation5 + $0x630] sm:$0xf]
    %v710 = vld [vmem:[#allocation5 + $0x634] sm:$0xf]
    %v711 = vld [vmem:[#allocation5 + $0x638] sm:$0xf]
    %v712 = vld [vmem:[#allocation5 + $0x63c] sm:$0xf]
    %v713 = vld [vmem:[#allocation5 + $0x640] sm:$0xf]
    %v714 = vld [vmem:[#allocation5 + $0x644] sm:$0xf]
    %v715 = vld [vmem:[#allocation5 + $0x648] sm:$0xf]
    %v716 = vld [vmem:[#allocation5 + $0x64c] sm:$0xf]
    %v717 = vld [vmem:[#allocation5 + $0x650] sm:$0xf]
    %v718 = vld [vmem:[#allocation5 + $0x654] sm:$0xf]
    %v719 = vld [vmem:[#allocation5 + $0x658] sm:$0xf]
    %v720 = vld [vmem:[#allocation5 + $0x65c] sm:$0xf]
    %v721 = vld [vmem:[#allocation5 + $0x660] sm:$0xf]
    %v722 = vld [vmem:[#allocation5 + $0x664] sm:$0xf]
    %v723 = vld [vmem:[#allocation5 + $0x668] sm:$0xf]
    %v724 = vld [vmem:[#allocation5 + $0x66c] sm:$0xf]
    %v725 = vld [vmem:[#allocation5 + $0x670] sm:$0xf]
    %v726 = vld [vmem:[#allocation5 + $0x674] sm:$0xf]
    %v727 = vld [vmem:[#allocation5 + $0x678] sm:$0xf]
    %v728 = vld [vmem:[#allocation5 + $0x67c] sm:$0xf]
    %v729 = vld [vmem:[#allocation5 + $0x680] sm:$0xf]
    %v730 = vld [vmem:[#allocation5 + $0x684] sm:$0xf]
    %v731 = vld [vmem:[#allocation5 + $0x688] sm:$0xf]
    %v732 = vld [vmem:[#allocation5 + $0x68c] sm:$0xf]
    %v733 = vld [vmem:[#allocation5 + $0x690] sm:$0xf]
    %v734 = vld [vmem:[#allocation5 + $0x694] sm:$0xf]
    %v735 = vld [vmem:[#allocation5 + $0x698] sm:$0xf]
    %v736 = vld [vmem:[#allocation5 + $0x69c] sm:$0xf]
    %v737 = vld [vmem:[#allocation5 + $0x6a0] sm:$0xf]
    %v738 = vld [vmem:[#allocation5 + $0x6a4] sm:$0xf]
    %v739 = vld [vmem:[#allocation5 + $0x6a8] sm:$0xf]
    %v740 = vld [vmem:[#allocation5 + $0x6ac] sm:$0xf]
    %v741 = vld [vmem:[#allocation5 + $0x6b0] sm:$0xf]
    %v742 = vld [vmem:[#allocation5 + $0x6b4] sm:$0xf]
    %v743 = vld [vmem:[#allocation5 + $0x6b8] sm:$0xf]
    %v744 = vld [vmem:[#allocation5 + $0x6bc] sm:$0xf]
    %v745 = vld [vmem:[#allocation5 + $0x6c0] sm:$0xf]
    %v746 = vld [vmem:[#allocation5 + $0x6c4] sm:$0xf]
    %v747 = vld [vmem:[#allocation5 + $0x6c8] sm:$0xf]
    %v748 = vld [vmem:[#allocation5 + $0x6cc] sm:$0xf]
    %v749 = vld [vmem:[#allocation5 + $0x6d0] sm:$0xf]
    %v750 = vld [vmem:[#allocation5 + $0x6d4] sm:$0xf]
    %v751 = vld [vmem:[#allocation5 + $0x6d8] sm:$0xf]
    %v752 = vld [vmem:[#allocation5 + $0x6dc] sm:$0xf]
    %v753 = vld [vmem:[#allocation5 + $0x6e0] sm:$0xf]
    %v754 = vld [vmem:[#allocation5 + $0x6e4] sm:$0xf]
    %v755 = vld [vmem:[#allocation5 + $0x6e8] sm:$0xf]
    %v756 = vld [vmem:[#allocation5 + $0x6ec] sm:$0xf]
    %v757 = vld [vmem:[#allocation5 + $0x6f0] sm:$0xf]
    %v758 = vld [vmem:[#allocation5 + $0x6f4] sm:$0xf]
    %v759 = vld [vmem:[#allocation5 + $0x6f8] sm:$0xf]
    %v760 = vld [vmem:[#allocation5 + $0x6fc] sm:$0xf]
    %v761 = vld [vmem:[#allocation5 + $0x700] sm:$0xf]
    %v762 = vld [vmem:[#allocation5 + $0x704] sm:$0xf]
    %v763 = vld [vmem:[#allocation5 + $0x708] sm:$0xf]
    %v764 = vld [vmem:[#allocation5 + $0x70c] sm:$0xf]
    %v765 = vld [vmem:[#allocation5 + $0x710] sm:$0xf]
    %v766 = vld [vmem:[#allocation5 + $0x714] sm:$0xf]
    %v767 = vld [vmem:[#allocation5 + $0x718] sm:$0xf]
    %v768 = vld [vmem:[#allocation5 + $0x71c] sm:$0xf]
    %v769 = vld [vmem:[#allocation5 + $0x720] sm:$0xf]
    %v770 = vld [vmem:[#allocation5 + $0x724] sm:$0xf]
    %v771 = vld [vmem:[#allocation5 + $0x728] sm:$0xf]
    %v772 = vld [vmem:[#allocation5 + $0x72c] sm:$0xf]
    %v773 = vld [vmem:[#allocation5 + $0x730] sm:$0xf]
    %v774 = vld [vmem:[#allocation5 + $0x734] sm:$0xf]
    %v775 = vld [vmem:[#allocation5 + $0x738] sm:$0xf]
    %v776 = vld [vmem:[#allocation5 + $0x73c] sm:$0xf]
    %v777 = vld [vmem:[#allocation5 + $0x740] sm:$0xf]
    %v778 = vld [vmem:[#allocation5 + $0x744] sm:$0xf]
    %v779 = vld [vmem:[#allocation5 + $0x748] sm:$0xf]
    %v780 = vld [vmem:[#allocation5 + $0x74c] sm:$0xf]
    %v781 = vld [vmem:[#allocation5 + $0x750] sm:$0xf]
    %v782 = vld [vmem:[#allocation5 + $0x754] sm:$0xf]
    %v783 = vld [vmem:[#allocation5 + $0x758] sm:$0xf]
    %v784 = vld [vmem:[#allocation5 + $0x75c] sm:$0xf]
    %v785 = vld [vmem:[#allocation5 + $0x760] sm:$0xf]
    %v786 = vld [vmem:[#allocation5 + $0x764] sm:$0xf]
    %v787 = vld [vmem:[#allocation5 + $0x768] sm:$0xf]
    %v788 = vld [vmem:[#allocation5 + $0x76c] sm:$0xf]
    %v789 = vld [vmem:[#allocation5 + $0x770] sm:$0xf]
    %v790 = vld [vmem:[#allocation5 + $0x774] sm:$0xf]
    %v791 = vld [vmem:[#allocation5 + $0x778] sm:$0xf]
    %v792 = vld [vmem:[#allocation5 + $0x77c] sm:$0xf]
    %v793 = vld [vmem:[#allocation5 + $0x780] sm:$0xf]
    %v794 = vld [vmem:[#allocation5 + $0x784] sm:$0xf]
    %v795 = vld [vmem:[#allocation5 + $0x788] sm:$0xf]
    %v796 = vld [vmem:[#allocation5 + $0x78c] sm:$0xf]
    %v797 = vld [vmem:[#allocation5 + $0x790] sm:$0xf]
    %v798 = vld [vmem:[#allocation5 + $0x794] sm:$0xf]
    %v799 = vld [vmem:[#allocation5 + $0x798] sm:$0xf]
    %v800 = vld [vmem:[#allocation5 + $0x79c] sm:$0xf]
    %v801 = vld [vmem:[#allocation5 + $0x7a0] sm:$0xf]
    %v802 = vld [vmem:[#allocation5 + $0x7a4] sm:$0xf]
    %v803 = vld [vmem:[#allocation5 + $0x7a8] sm:$0xf]
    %v804 = vld [vmem:[#allocation5 + $0x7ac] sm:$0xf]
    %v805 = vld [vmem:[#allocation5 + $0x7b0] sm:$0xf]
    %v806 = vld [vmem:[#allocation5 + $0x7b4] sm:$0xf]
    %v807 = vld [vmem:[#allocation5 + $0x7b8] sm:$0xf]
    %v808 = vld [vmem:[#allocation5 + $0x7bc] sm:$0xf]
    %v809 = vld [vmem:[#allocation5 + $0x7c0] sm:$0xf]
    %v810 = vld [vmem:[#allocation5 + $0x7c4] sm:$0xf]
    %v811 = vld [vmem:[#allocation5 + $0x7c8] sm:$0xf]
    %v812 = vld [vmem:[#allocation5 + $0x7cc] sm:$0xf]
    %v813 = vld [vmem:[#allocation5 + $0x7d0] sm:$0xf]
    %v814 = vld [vmem:[#allocation5 + $0x7d4] sm:$0xf]
    %v815 = vld [vmem:[#allocation5 + $0x7d8] sm:$0xf]
    %v816 = vld [vmem:[#allocation5 + $0x7dc] sm:$0xf]
    %v817 = vld [vmem:[#allocation5 + $0x7e0] sm:$0xf]
    %v818 = vld [vmem:[#allocation5 + $0x7e4] sm:$0xf]
    %v819 = vld [vmem:[#allocation5 + $0x7e8] sm:$0xf]
    %v820 = vld [vmem:[#allocation5 + $0x7ec] sm:$0xf]
    %v821 = vld [vmem:[#allocation5 + $0x7f0] sm:$0xf]
    %v822 = vld [vmem:[#allocation5 + $0x7f4] sm:$0xf]
    %v823 = vld [vmem:[#allocation5 + $0x7f8] sm:$0xf]
    %v824 = vld [vmem:[#allocation5 + $0x7fc] sm:$0xf]
    %v825 = vld [vmem:[#allocation5 + $0x800] sm:$0xf]
    %v826 = vld [vmem:[#allocation5 + $0x804] sm:$0xf]
    %v827 = vld [vmem:[#allocation5 + $0x808] sm:$0xf]
    %v828 = vld [vmem:[#allocation5 + $0x80c] sm:$0xf]
    %v829 = vld [vmem:[#allocation5 + $0x810] sm:$0xf]
    %v830 = vld [vmem:[#allocation5 + $0x814] sm:$0xf]
    %v831 = vld [vmem:[#allocation5 + $0x818] sm:$0xf]
    %v832 = vld [vmem:[#allocation5 + $0x81c] sm:$0xf]
    %v833 = vld [vmem:[#allocation5 + $0x820] sm:$0xf]
    %v834 = vld [vmem:[#allocation5 + $0x824] sm:$0xf]
    %v835 = vld [vmem:[#allocation5 + $0x828] sm:$0xf]
    %v836 = vld [vmem:[#allocation5 + $0x82c] sm:$0xf]
    %v837 = vld [vmem:[#allocation5 + $0x830] sm:$0xf]
    %v838 = vld [vmem:[#allocation5 + $0x834] sm:$0xf]
    %v839 = vld [vmem:[#allocation5 + $0x838] sm:$0xf]
    %v840 = vld [vmem:[#allocation5 + $0x83c] sm:$0xf]
    %v841 = vld [vmem:[#allocation5 + $0x840] sm:$0xf]
    %v842 = vld [vmem:[#allocation5 + $0x844] sm:$0xf]
    %v843 = vld [vmem:[#allocation5 + $0x848] sm:$0xf]
    %v844 = vld [vmem:[#allocation5 + $0x84c] sm:$0xf]
    %v845 = vld [vmem:[#allocation5 + $0x850] sm:$0xf]
    %v846 = vld [vmem:[#allocation5 + $0x854] sm:$0xf]
    %v847 = vld [vmem:[#allocation5 + $0x858] sm:$0xf]
    %v848 = vld [vmem:[#allocation5 + $0x85c] sm:$0xf]
    %v849 = vld [vmem:[#allocation5 + $0x860] sm:$0xf]
    %v850 = vld [vmem:[#allocation5 + $0x864] sm:$0xf]
    %v851 = vld [vmem:[#allocation5 + $0x868] sm:$0xf]
    %v852 = vld [vmem:[#allocation5 + $0x86c] sm:$0xf]
    %v853 = vld [vmem:[#allocation5 + $0x870] sm:$0xf]
    %v854 = vld [vmem:[#allocation5 + $0x874] sm:$0xf]
    %v855 = vld [vmem:[#allocation5 + $0x878] sm:$0xf]
    %v856 = vld [vmem:[#allocation5 + $0x87c] sm:$0xf]
    %v857 = vld [vmem:[#allocation5 + $0x880] sm:$0xf]
    %v858 = vld [vmem:[#allocation5 + $0x884] sm:$0xf]
    %v859 = vld [vmem:[#allocation5 + $0x888] sm:$0xf]
    %v860 = vld [vmem:[#allocation5 + $0x88c] sm:$0xf]
    %v861 = vld [vmem:[#allocation5 + $0x890] sm:$0xf]
    %v862 = vld [vmem:[#allocation5 + $0x894] sm:$0xf]
    %v863 = vld [vmem:[#allocation5 + $0x898] sm:$0xf]
    %v864 = vld [vmem:[#allocation5 + $0x89c] sm:$0xf]
    %v865 = vld [vmem:[#allocation5 + $0x8a0] sm:$0xf]
    %v866 = vld [vmem:[#allocation5 + $0x8a4] sm:$0xf]
    %v867 = vld [vmem:[#allocation5 + $0x8a8] sm:$0xf]
    %v868 = vld [vmem:[#allocation5 + $0x8ac] sm:$0xf]
    %v869 = vld [vmem:[#allocation5 + $0x8b0] sm:$0xf]
    %v870 = vld [vmem:[#allocation5 + $0x8b4] sm:$0xf]
    %v871 = vld [vmem:[#allocation5 + $0x8b8] sm:$0xf]
    %v872 = vld [vmem:[#allocation5 + $0x8bc] sm:$0xf]
    %v873 = vld [vmem:[#allocation5 + $0x8c0] sm:$0xf]
    %v874 = vld [vmem:[#allocation5 + $0x8c4] sm:$0xf]
    %v875 = vld [vmem:[#allocation5 + $0x8c8] sm:$0xf]
    %v876 = vld [vmem:[#allocation5 + $0x8cc] sm:$0xf]
    %v877 = vld [vmem:[#allocation5 + $0x8d0] sm:$0xf]
    %v878 = vld [vmem:[#allocation5 + $0x8d4] sm:$0xf]
    %v879 = vld [vmem:[#allocation5 + $0x8d8] sm:$0xf]
    %v880 = vld [vmem:[#allocation5 + $0x8dc] sm:$0xf]
    %v881 = vld [vmem:[#allocation5 + $0x8e0] sm:$0xf]
    %v882 = vld [vmem:[#allocation5 + $0x8e4] sm:$0xf]
    %v883 = vld [vmem:[#allocation5 + $0x8e8] sm:$0xf]
    %v884 = vld [vmem:[#allocation5 + $0x8ec] sm:$0xf]
    %v885 = vld [vmem:[#allocation5 + $0x8f0] sm:$0xf]
    %v886 = vld [vmem:[#allocation5 + $0x8f4] sm:$0xf]
    %v887 = vld [vmem:[#allocation5 + $0x8f8] sm:$0xf]
    %v888 = vld [vmem:[#allocation5 + $0x8fc] sm:$0xf]
    %v889 = vld [vmem:[#allocation5 + $0x900] sm:$0xf]
    %v890 = vld [vmem:[#allocation5 + $0x904] sm:$0xf]
    %v891 = vld [vmem:[#allocation5 + $0x908] sm:$0xf]
    %v892 = vld [vmem:[#allocation5 + $0x90c] sm:$0xf]
    %v893 = vld [vmem:[#allocation5 + $0x910] sm:$0xf]
    %v894 = vld [vmem:[#allocation5 + $0x914] sm:$0xf]
    %v895 = vld [vmem:[#allocation5 + $0x918] sm:$0xf]
    %v896 = vld [vmem:[#allocation5 + $0x91c] sm:$0xf]
    %v897 = vld [vmem:[#allocation5 + $0x920] sm:$0xf]
    %v898 = vld [vmem:[#allocation5 + $0x924] sm:$0xf]
    %v899 = vld [vmem:[#allocation5 + $0x928] sm:$0xf]
    %v900 = vld [vmem:[#allocation5 + $0x92c] sm:$0xf]
    %v901 = vld [vmem:[#allocation5 + $0x930] sm:$0xf]
    %v902 = vld [vmem:[#allocation5 + $0x934] sm:$0xf]
    %v903 = vld [vmem:[#allocation5 + $0x938] sm:$0xf]
    %v904 = vld [vmem:[#allocation5 + $0x93c] sm:$0xf]
    %v905 = vld [vmem:[#allocation5 + $0x940] sm:$0xf]
    %v906 = vld [vmem:[#allocation5 + $0x944] sm:$0xf]
    %v907 = vld [vmem:[#allocation5 + $0x948] sm:$0xf]
    %v908 = vld [vmem:[#allocation5 + $0x94c] sm:$0xf]
    %v909 = vld [vmem:[#allocation5 + $0x950] sm:$0xf]
    %v910 = vld [vmem:[#allocation5 + $0x954] sm:$0xf]
    %v911 = vld [vmem:[#allocation5 + $0x958] sm:$0xf]
    %v912 = vld [vmem:[#allocation5 + $0x95c] sm:$0xf]
    %v913 = vld [vmem:[#allocation5 + $0x960] sm:$0xf]
    %v914 = vld [vmem:[#allocation5 + $0x964] sm:$0xf]
    %v915 = vld [vmem:[#allocation5 + $0x968] sm:$0xf]
    %v916 = vld [vmem:[#allocation5 + $0x96c] sm:$0xf]
    %v917 = vld [vmem:[#allocation5 + $0x970] sm:$0xf]
    %v918 = vld [vmem:[#allocation5 + $0x974] sm:$0xf]
    %v919 = vld [vmem:[#allocation5 + $0x978] sm:$0xf]
    %v920 = vld [vmem:[#allocation5 + $0x97c] sm:$0xf]
    %v921 = vld [vmem:[#allocation5 + $0x980] sm:$0xf]
    %v922 = vld [vmem:[#allocation5 + $0x984] sm:$0xf]
    %v923 = vld [vmem:[#allocation5 + $0x988] sm:$0xf]
    %v924 = vld [vmem:[#allocation5 + $0x98c] sm:$0xf]
    %v925 = vld [vmem:[#allocation5 + $0x990] sm:$0xf]
    %v926 = vld [vmem:[#allocation5 + $0x994] sm:$0xf]
    %v927 = vld [vmem:[#allocation5 + $0x998] sm:$0xf]
    %v928 = vld [vmem:[#allocation5 + $0x99c] sm:$0xf]
    %v929 = vld [vmem:[#allocation5 + $0x9a0] sm:$0xf]
    %v930 = vld [vmem:[#allocation5 + $0x9a4] sm:$0xf]
    %v931 = vld [vmem:[#allocation5 + $0x9a8] sm:$0xf]
    %v932 = vld [vmem:[#allocation5 + $0x9ac] sm:$0xf]
    %v933 = vld [vmem:[#allocation5 + $0x9b0] sm:$0xf]
    %v934 = vld [vmem:[#allocation5 + $0x9b4] sm:$0xf]
    %v935 = vld [vmem:[#allocation5 + $0x9b8] sm:$0xf]
    %v936 = vld [vmem:[#allocation5 + $0x9bc] sm:$0xf]
    %v937 = vld [vmem:[#allocation5 + $0x9c0] sm:$0xf]
    %v938 = vld [vmem:[#allocation5 + $0x9c4] sm:$0xf]
    %v939 = vld [vmem:[#allocation5 + $0x9c8] sm:$0xf]
    %v940 = vld [vmem:[#allocation5 + $0x9cc] sm:$0xf]
    %v941 = vld [vmem:[#allocation5 + $0x9d0] sm:$0xf]
    %v942 = vld [vmem:[#allocation5 + $0x9d4] sm:$0xf]
    %v943 = vld [vmem:[#allocation5 + $0x9d8] sm:$0xf]
    %v944 = vld [vmem:[#allocation5 + $0x9dc] sm:$0xf]
    %v945 = vld [vmem:[#allocation5 + $0x9e0] sm:$0xf]
    %v946 = vld [vmem:[#allocation5 + $0x9e4] sm:$0xf]
    %v947 = vld [vmem:[#allocation5 + $0x9e8] sm:$0xf]
    %v948 = vld [vmem:[#allocation5 + $0x9ec] sm:$0xf]
    %v949 = vld [vmem:[#allocation5 + $0x9f0] sm:$0xf]
    %v950 = vld [vmem:[#allocation5 + $0x9f4] sm:$0xf]
    %v951 = vld [vmem:[#allocation5 + $0x9f8] sm:$0xf]
    %v952 = vld [vmem:[#allocation5 + $0x9fc] sm:$0xf]
    %v953 = vld [vmem:[#allocation5 + $0xa00] sm:$0xf]
    %v954 = vld [vmem:[#allocation5 + $0xa04] sm:$0xf]
    %v955 = vld [vmem:[#allocation5 + $0xa08] sm:$0xf]
    %v956 = vld [vmem:[#allocation5 + $0xa0c] sm:$0xf]
    %v957 = vld [vmem:[#allocation5 + $0xa10] sm:$0xf]
    %v958 = vld [vmem:[#allocation5 + $0xa14] sm:$0xf]
    %v959 = vld [vmem:[#allocation5 + $0xa18] sm:$0xf]
    %v960 = vld [vmem:[#allocation5 + $0xa1c] sm:$0xf]
    %v961 = vld [vmem:[#allocation5 + $0xa20] sm:$0xf]
    %v962 = vld [vmem:[#allocation5 + $0xa24] sm:$0xf]
    %v963 = vld [vmem:[#allocation5 + $0xa28] sm:$0xf]
    %v964 = vld [vmem:[#allocation5 + $0xa2c] sm:$0xf]
    %v965 = vld [vmem:[#allocation5 + $0xa30] sm:$0xf]
    %v966 = vld [vmem:[#allocation5 + $0xa34] sm:$0xf]
    %v967 = vld [vmem:[#allocation5 + $0xa38] sm:$0xf]
    %v968 = vld [vmem:[#allocation5 + $0xa3c] sm:$0xf]
    %v969 = vld [vmem:[#allocation5 + $0xa40] sm:$0xf]
    %v970 = vld [vmem:[#allocation5 + $0xa44] sm:$0xf]
    %v971 = vld [vmem:[#allocation5 + $0xa48] sm:$0xf]
    %v972 = vld [vmem:[#allocation5 + $0xa4c] sm:$0xf]
    %v973 = vld [vmem:[#allocation5 + $0xa50] sm:$0xf]
    %v974 = vld [vmem:[#allocation5 + $0xa54] sm:$0xf]
    %v975 = vld [vmem:[#allocation5 + $0xa58] sm:$0xf]
    %v976 = vld [vmem:[#allocation5 + $0xa5c] sm:$0xf]
    %v977 = vld [vmem:[#allocation5 + $0xa60] sm:$0xf]
    %v978 = vld [vmem:[#allocation5 + $0xa64] sm:$0xf]
    %v979 = vld [vmem:[#allocation5 + $0xa68] sm:$0xf]
    %v980 = vld [vmem:[#allocation5 + $0xa6c] sm:$0xf]
    %v981 = vld [vmem:[#allocation5 + $0xa70] sm:$0xf]
    %v982 = vld [vmem:[#allocation5 + $0xa74] sm:$0xf]
    %v983 = vld [vmem:[#allocation5 + $0xa78] sm:$0xf]
    %v984 = vld [vmem:[#allocation5 + $0xa7c] sm:$0xf]
    %v985 = vld [vmem:[#allocation5 + $0xa80] sm:$0xf]
    %v986 = vld [vmem:[#allocation5 + $0xa84] sm:$0xf]
    %v987 = vld [vmem:[#allocation5 + $0xa88] sm:$0xf]
    %v988 = vld [vmem:[#allocation5 + $0xa8c] sm:$0xf]
    %v989 = vld [vmem:[#allocation5 + $0xa90] sm:$0xf]
    %v990 = vld [vmem:[#allocation5 + $0xa94] sm:$0xf]
    %v991 = vld [vmem:[#allocation5 + $0xa98] sm:$0xf]
    %v992 = vld [vmem:[#allocation5 + $0xa9c] sm:$0xf]
    %v993 = vld [vmem:[#allocation5 + $0xaa0] sm:$0xf]
    %v994 = vld [vmem:[#allocation5 + $0xaa4] sm:$0xf]
    %v995 = vld [vmem:[#allocation5 + $0xaa8] sm:$0xf]
    %v996 = vld [vmem:[#allocation5 + $0xaac] sm:$0xf]
    %v997 = vld [vmem:[#allocation5 + $0xab0] sm:$0xf]
    %v998 = vld [vmem:[#allocation5 + $0xab4] sm:$0xf]
    %v999 = vld [vmem:[#allocation5 + $0xab8] sm:$0xf]
    %v1000 = vld [vmem:[#allocation5 + $0xabc] sm:$0xf]
    %v1001 = vld [vmem:[#allocation5 + $0xac0] sm:$0xf]
    %v1002 = vld [vmem:[#allocation5 + $0xac4] sm:$0xf]
    %v1003 = vld [vmem:[#allocation5 + $0xac8] sm:$0xf]
    %v1004 = vld [vmem:[#allocation5 + $0xacc] sm:$0xf]
    %v1005 = vld [vmem:[#allocation5 + $0xad0] sm:$0xf]
    %v1006 = vld [vmem:[#allocation5 + $0xad4] sm:$0xf]
    %v1007 = vld [vmem:[#allocation5 + $0xad8] sm:$0xf]
    %v1008 = vld [vmem:[#allocation5 + $0xadc] sm:$0xf]
    %v1009 = vld [vmem:[#allocation5 + $0xae0] sm:$0xf]
    %v1010 = vld [vmem:[#allocation5 + $0xae4] sm:$0xf]
    %v1011 = vld [vmem:[#allocation5 + $0xae8] sm:$0xf]
    %v1012 = vld [vmem:[#allocation5 + $0xaec] sm:$0xf]
    %v1013 = vld [vmem:[#allocation5 + $0xaf0] sm:$0xf]
    %v1014 = vld [vmem:[#allocation5 + $0xaf4] sm:$0xf]
    %v1015 = vld [vmem:[#allocation5 + $0xaf8] sm:$0xf]
    %v1016 = vld [vmem:[#allocation5 + $0xafc] sm:$0xf]
    %v1017 = vld [vmem:[#allocation5 + $0xb00] sm:$0xf]
    %v1018 = vld [vmem:[#allocation5 + $0xb04] sm:$0xf]
    %v1019 = vld [vmem:[#allocation5 + $0xb08] sm:$0xf]
    %v1020 = vld [vmem:[#allocation5 + $0xb0c] sm:$0xf]
    %v1021 = vld [vmem:[#allocation5 + $0xb10] sm:$0xf]
    %v1022 = vld [vmem:[#allocation5 + $0xb14] sm:$0xf]
    %v1023 = vld [vmem:[#allocation5 + $0xb18] sm:$0xf]
    %v1024 = vld [vmem:[#allocation5 + $0xb1c] sm:$0xf]
    %v1025 = vld [vmem:[#allocation5 + $0xb20] sm:$0xf]
    %v1026 = vld [vmem:[#allocation5 + $0xb24] sm:$0xf]
    %v1027 = vld [vmem:[#allocation5 + $0xb28] sm:$0xf]
    %v1028 = vld [vmem:[#allocation5 + $0xb2c] sm:$0xf]
    %v1029 = vld [vmem:[#allocation5 + $0xb30] sm:$0xf]
    %v1030 = vld [vmem:[#allocation5 + $0xb34] sm:$0xf]
    %v1031 = vld [vmem:[#allocation5 + $0xb38] sm:$0xf]
    %v1032 = vld [vmem:[#allocation5 + $0xb3c] sm:$0xf]
    %v1033 = vld [vmem:[#allocation5 + $0xb40] sm:$0xf]
    %v1034 = vld [vmem:[#allocation5 + $0xb44] sm:$0xf]
    %v1035 = vld [vmem:[#allocation5 + $0xb48] sm:$0xf]
    %v1036 = vld [vmem:[#allocation5 + $0xb4c] sm:$0xf]
    %v1037 = vld [vmem:[#allocation5 + $0xb50] sm:$0xf]
    %v1038 = vld [vmem:[#allocation5 + $0xb54] sm:$0xf]
    %v1039 = vld [vmem:[#allocation5 + $0xb58] sm:$0xf]
    %v1040 = vld [vmem:[#allocation5 + $0xb5c] sm:$0xf]
    %v1041 = vld [vmem:[#allocation5 + $0xb60] sm:$0xf]
    %v1042 = vld [vmem:[#allocation5 + $0xb64] sm:$0xf]
    %v1043 = vld [vmem:[#allocation5 + $0xb68] sm:$0xf]
    %v1044 = vld [vmem:[#allocation5 + $0xb6c] sm:$0xf]
    %v1045 = vld [vmem:[#allocation5 + $0xb70] sm:$0xf]
    %v1046 = vld [vmem:[#allocation5 + $0xb74] sm:$0xf]
    %v1047 = vld [vmem:[#allocation5 + $0xb78] sm:$0xf]
    %v1048 = vld [vmem:[#allocation5 + $0xb7c] sm:$0xf]
    %v1049 = vld [vmem:[#allocation5 + $0xb80] sm:$0xf]
    %v1050 = vld [vmem:[#allocation5 + $0xb84] sm:$0xf]
    %v1051 = vld [vmem:[#allocation5 + $0xb88] sm:$0xf]
    %v1052 = vld [vmem:[#allocation5 + $0xb8c] sm:$0xf]
    %v1053 = vld [vmem:[#allocation5 + $0xb90] sm:$0xf]
    %v1054 = vld [vmem:[#allocation5 + $0xb94] sm:$0xf]
    %v1055 = vld [vmem:[#allocation5 + $0xb98] sm:$0xf]
    %v1056 = vld [vmem:[#allocation5 + $0xb9c] sm:$0xf]
    %v1057 = vld [vmem:[#allocation5 + $0xba0] sm:$0xf]
    %v1058 = vld [vmem:[#allocation5 + $0xba4] sm:$0xf]
    %v1059 = vld [vmem:[#allocation5 + $0xba8] sm:$0xf]
    %v1060 = vld [vmem:[#allocation5 + $0xbac] sm:$0xf]
    %v1061 = vld [vmem:[#allocation5 + $0xbb0] sm:$0xf]
    %v1062 = vld [vmem:[#allocation5 + $0xbb4] sm:$0xf]
    %v1063 = vld [vmem:[#allocation5 + $0xbb8] sm:$0xf]
    %v1064 = vld [vmem:[#allocation5 + $0xbbc] sm:$0xf]
    %v1065 = vld [vmem:[#allocation5 + $0xbc0] sm:$0xf]
    %v1066 = vld [vmem:[#allocation5 + $0xbc4] sm:$0xf]
    %v1067 = vld [vmem:[#allocation5 + $0xbc8] sm:$0xf]
    %v1068 = vld [vmem:[#allocation5 + $0xbcc] sm:$0xf]
    %v1069 = vld [vmem:[#allocation5 + $0xbd0] sm:$0xf]
    %v1070 = vld [vmem:[#allocation5 + $0xbd4] sm:$0xf]
    %v1071 = vld [vmem:[#allocation5 + $0xbd8] sm:$0xf]
    %v1072 = vld [vmem:[#allocation5 + $0xbdc] sm:$0xf]
    %v1073 = vld [vmem:[#allocation5 + $0xbe0] sm:$0xf]
    %v1074 = vld [vmem:[#allocation5 + $0xbe4] sm:$0xf]
    %v1075 = vld [vmem:[#allocation5 + $0xbe8] sm:$0xf]
    %v1076 = vld [vmem:[#allocation5 + $0xbec] sm:$0xf]
    %v1077 = vld [vmem:[#allocation5 + $0xbf0] sm:$0xf]
    %v1078 = vld [vmem:[#allocation5 + $0xbf4] sm:$0xf]
    %v1079 = vld [vmem:[#allocation5 + $0xbf8] sm:$0xf]
    %v1080 = vld [vmem:[#allocation5 + $0xbfc] sm:$0xf]
    %v1081 = vld [vmem:[#allocation5 + $0xc00] sm:$0xf]
    %v1082 = vld [vmem:[#allocation5 + $0xc04] sm:$0xf]
    %v1083 = vld [vmem:[#allocation5 + $0xc08] sm:$0xf]
    %v1084 = vld [vmem:[#allocation5 + $0xc0c] sm:$0xf]
    %v1085 = vld [vmem:[#allocation5 + $0xc10] sm:$0xf]
    %v1086 = vld [vmem:[#allocation5 + $0xc14] sm:$0xf]
    %v1087 = vld [vmem:[#allocation5 + $0xc18] sm:$0xf]
    %v1088 = vld [vmem:[#allocation5 + $0xc1c] sm:$0xf]
    %v1089 = vld [vmem:[#allocation5 + $0xc20] sm:$0xf]
    %v1090 = vld [vmem:[#allocation5 + $0xc24] sm:$0xf]
    %v1091 = vld [vmem:[#allocation5 + $0xc28] sm:$0xf]
    %v1092 = vld [vmem:[#allocation5 + $0xc2c] sm:$0xf]
    %v1093 = vld [vmem:[#allocation5 + $0xc30] sm:$0xf]
    %v1094 = vld [vmem:[#allocation5 + $0xc34] sm:$0xf]
    %v1095 = vld [vmem:[#allocation5 + $0xc38] sm:$0xf]
    %v1096 = vld [vmem:[#allocation5 + $0xc3c] sm:$0xf]
    %v1097 = vld [vmem:[#allocation5 + $0xc40] sm:$0xf]
    %v1098 = vld [vmem:[#allocation5 + $0xc44] sm:$0xf]
    %v1099 = vld [vmem:[#allocation5 + $0xc48] sm:$0xf]
    %v1100 = vld [vmem:[#allocation5 + $0xc4c] sm:$0xf]
    %v1101 = vld [vmem:[#allocation5 + $0xc50] sm:$0xf]
    %v1102 = vld [vmem:[#allocation5 + $0xc54] sm:$0xf]
    %v1103 = vld [vmem:[#allocation5 + $0xc58] sm:$0xf]
    %v1104 = vld [vmem:[#allocation5 + $0xc5c] sm:$0xf]
    %v1105 = vld [vmem:[#allocation5 + $0xc60] sm:$0xf]
    %v1106 = vld [vmem:[#allocation5 + $0xc64] sm:$0xf]
    %v1107 = vld [vmem:[#allocation5 + $0xc68] sm:$0xf]
    %v1108 = vld [vmem:[#allocation5 + $0xc6c] sm:$0xf]
    %v1109 = vld [vmem:[#allocation5 + $0xc70] sm:$0xf]
    %v1110 = vld [vmem:[#allocation5 + $0xc74] sm:$0xf]
    %v1111 = vld [vmem:[#allocation5 + $0xc78] sm:$0xf]
    %v1112 = vld [vmem:[#allocation5 + $0xc7c] sm:$0xf]
    %v1113 = vld [vmem:[#allocation5 + $0xc80] sm:$0xf]
    %v1114 = vld [vmem:[#allocation5 + $0xc84] sm:$0xf]
    %v1115 = vld [vmem:[#allocation5 + $0xc88] sm:$0xf]
    %v1116 = vld [vmem:[#allocation5 + $0xc8c] sm:$0xf]
    %v1117 = vld [vmem:[#allocation5 + $0xc90] sm:$0xf]
    %v1118 = vld [vmem:[#allocation5 + $0xc94] sm:$0xf]
    %v1119 = vld [vmem:[#allocation5 + $0xc98] sm:$0xf]
    %v1120 = vld [vmem:[#allocation5 + $0xc9c] sm:$0xf]
    %v1121 = vld [vmem:[#allocation5 + $0xca0] sm:$0xf]
    %v1122 = vld [vmem:[#allocation5 + $0xca4] sm:$0xf]
    %v1123 = vld [vmem:[#allocation5 + $0xca8] sm:$0xf]
    %v1124 = vld [vmem:[#allocation5 + $0xcac] sm:$0xf]
    %v1125 = vld [vmem:[#allocation5 + $0xcb0] sm:$0xf]
    %v1126 = vld [vmem:[#allocation5 + $0xcb4] sm:$0xf]
    %v1127 = vld [vmem:[#allocation5 + $0xcb8] sm:$0xf]
    %v1128 = vld [vmem:[#allocation5 + $0xcbc] sm:$0xf]
    %v1129 = vld [vmem:[#allocation5 + $0xcc0] sm:$0xf]
    %v1130 = vld [vmem:[#allocation5 + $0xcc4] sm:$0xf]
    %v1131 = vld [vmem:[#allocation5 + $0xcc8] sm:$0xf]
    %v1132 = vld [vmem:[#allocation5 + $0xccc] sm:$0xf]
    %v1133 = vld [vmem:[#allocation5 + $0xcd0] sm:$0xf]
    %v1134 = vld [vmem:[#allocation5 + $0xcd4] sm:$0xf]
    %v1135 = vld [vmem:[#allocation5 + $0xcd8] sm:$0xf]
    %v1136 = vld [vmem:[#allocation5 + $0xcdc] sm:$0xf]
    %v1137 = vld [vmem:[#allocation5 + $0xce0] sm:$0xf]
    %v1138 = vld [vmem:[#allocation5 + $0xce4] sm:$0xf]
    %v1139 = vld [vmem:[#allocation5 + $0xce8] sm:$0xf]
    %v1140 = vld [vmem:[#allocation5 + $0xcec] sm:$0xf]
    %v1141 = vld [vmem:[#allocation5 + $0xcf0] sm:$0xf]
    %v1142 = vld [vmem:[#allocation5 + $0xcf4] sm:$0xf]
    %v1143 = vld [vmem:[#allocation5 + $0xcf8] sm:$0xf]
    %v1144 = vld [vmem:[#allocation5 + $0xcfc] sm:$0xf]
    %v1145 = vld [vmem:[#allocation5 + $0xd00] sm:$0xf]
    %v1146 = vld [vmem:[#allocation5 + $0xd04] sm:$0xf]
    %v1147 = vld [vmem:[#allocation5 + $0xd08] sm:$0xf]
    %v1148 = vld [vmem:[#allocation5 + $0xd0c] sm:$0xf]
    %v1149 = vld [vmem:[#allocation5 + $0xd10] sm:$0xf]
    %v1150 = vld [vmem:[#allocation5 + $0xd14] sm:$0xf]
    %v1151 = vld [vmem:[#allocation5 + $0xd18] sm:$0xf]
    %v1152 = vld [vmem:[#allocation5 + $0xd1c] sm:$0xf]
    %v1153 = vld [vmem:[#allocation5 + $0xd20] sm:$0xf]
    %v1154 = vld [vmem:[#allocation5 + $0xd24] sm:$0xf]
    %v1155 = vld [vmem:[#allocation5 + $0xd28] sm:$0xf]
    %v1156 = vld [vmem:[#allocation5 + $0xd2c] sm:$0xf]
    %v1157 = vld [vmem:[#allocation5 + $0xd30] sm:$0xf]
    %v1158 = vld [vmem:[#allocation5 + $0xd34] sm:$0xf]
    %v1159 = vld [vmem:[#allocation5 + $0xd38] sm:$0xf]
    %v1160 = vld [vmem:[#allocation5 + $0xd3c] sm:$0xf]
    %v1161 = vld [vmem:[#allocation5 + $0xd40] sm:$0xf]
    %v1162 = vld [vmem:[#allocation5 + $0xd44] sm:$0xf]
    %v1163 = vld [vmem:[#allocation5 + $0xd48] sm:$0xf]
    %v1164 = vld [vmem:[#allocation5 + $0xd4c] sm:$0xf]
    %v1165 = vld [vmem:[#allocation5 + $0xd50] sm:$0xf]
    %v1166 = vld [vmem:[#allocation5 + $0xd54] sm:$0xf]
    %v1167 = vld [vmem:[#allocation5 + $0xd58] sm:$0xf]
    %v1168 = vld [vmem:[#allocation5 + $0xd5c] sm:$0xf]
    %v1169 = vld [vmem:[#allocation5 + $0xd60] sm:$0xf]
    %v1170 = vld [vmem:[#allocation5 + $0xd64] sm:$0xf]
    %v1171 = vld [vmem:[#allocation5 + $0xd68] sm:$0xf]
    %v1172 = vld [vmem:[#allocation5 + $0xd6c] sm:$0xf]
    %v1173 = vld [vmem:[#allocation5 + $0xd70] sm:$0xf]
    %v1174 = vld [vmem:[#allocation5 + $0xd74] sm:$0xf]
    %v1175 = vld [vmem:[#allocation5 + $0xd78] sm:$0xf]
    %v1176 = vld [vmem:[#allocation5 + $0xd7c] sm:$0xf]
    %v1177 = vld [vmem:[#allocation5 + $0xd80] sm:$0xf]
    %v1178 = vld [vmem:[#allocation5 + $0xd84] sm:$0xf]
    %v1179 = vld [vmem:[#allocation5 + $0xd88] sm:$0xf]
    %v1180 = vld [vmem:[#allocation5 + $0xd8c] sm:$0xf]
    %v1181 = vld [vmem:[#allocation5 + $0xd90] sm:$0xf]
    %v1182 = vld [vmem:[#allocation5 + $0xd94] sm:$0xf]
    %v1183 = vld [vmem:[#allocation5 + $0xd98] sm:$0xf]
    %v1184 = vld [vmem:[#allocation5 + $0xd9c] sm:$0xf]
    %v1185 = vld [vmem:[#allocation5 + $0xda0] sm:$0xf]
    %v1186 = vld [vmem:[#allocation5 + $0xda4] sm:$0xf]
    %v1187 = vld [vmem:[#allocation5 + $0xda8] sm:$0xf]
    %v1188 = vld [vmem:[#allocation5 + $0xdac] sm:$0xf]
    %v1189 = vld [vmem:[#allocation5 + $0xdb0] sm:$0xf]
    %v1190 = vld [vmem:[#allocation5 + $0xdb4] sm:$0xf]
    %v1191 = vld [vmem:[#allocation5 + $0xdb8] sm:$0xf]
    %v1192 = vld [vmem:[#allocation5 + $0xdbc] sm:$0xf]
    %v1193 = vld [vmem:[#allocation5 + $0xdc0] sm:$0xf]
    %v1194 = vld [vmem:[#allocation5 + $0xdc4] sm:$0xf]
    %v1195 = vld [vmem:[#allocation5 + $0xdc8] sm:$0xf]
    %v1196 = vld [vmem:[#allocation5 + $0xdcc] sm:$0xf]
    %v1197 = vld [vmem:[#allocation5 + $0xdd0] sm:$0xf]
    %v1198 = vld [vmem:[#allocation5 + $0xdd4] sm:$0xf]
    %v1199 = vld [vmem:[#allocation5 + $0xdd8] sm:$0xf]
    %v1200 = vld [vmem:[#allocation5 + $0xddc] sm:$0xf]
    %v1201 = vld [vmem:[#allocation5 + $0xde0] sm:$0xf]
    %v1202 = vld [vmem:[#allocation5 + $0xde4] sm:$0xf]
    %v1203 = vld [vmem:[#allocation5 + $0xde8] sm:$0xf]
    %v1204 = vld [vmem:[#allocation5 + $0xdec] sm:$0xf]
    %v1205 = vld [vmem:[#allocation5 + $0xdf0] sm:$0xf]
    %v1206 = vld [vmem:[#allocation5 + $0xdf4] sm:$0xf]
    %v1207 = vld [vmem:[#allocation5 + $0xdf8] sm:$0xf]
    %v1208 = vld [vmem:[#allocation5 + $0xdfc] sm:$0xf]
    %v1209 = vld [vmem:[#allocation5 + $0xe00] sm:$0xf]
    %v1210 = vld [vmem:[#allocation5 + $0xe04] sm:$0xf]
    %v1211 = vld [vmem:[#allocation5 + $0xe08] sm:$0xf]
    %v1212 = vld [vmem:[#allocation5 + $0xe0c] sm:$0xf]
    %v1213 = vld [vmem:[#allocation5 + $0xe10] sm:$0xf]
    %v1214 = vld [vmem:[#allocation5 + $0xe14] sm:$0xf]
    %v1215 = vld [vmem:[#allocation5 + $0xe18] sm:$0xf]
    %v1216 = vld [vmem:[#allocation5 + $0xe1c] sm:$0xf]
    %v1217 = vld [vmem:[#allocation5 + $0xe20] sm:$0xf]
    %v1218 = vld [vmem:[#allocation5 + $0xe24] sm:$0xf]
    %v1219 = vld [vmem:[#allocation5 + $0xe28] sm:$0xf]
    %v1220 = vld [vmem:[#allocation5 + $0xe2c] sm:$0xf]
    %v1221 = vld [vmem:[#allocation5 + $0xe30] sm:$0xf]
    %v1222 = vld [vmem:[#allocation5 + $0xe34] sm:$0xf]
    %v1223 = vld [vmem:[#allocation5 + $0xe38] sm:$0xf]
    %v1224 = vld [vmem:[#allocation5 + $0xe3c] sm:$0xf]
    %v1225 = vld [vmem:[#allocation5 + $0xe40] sm:$0xf]
    %v1226 = vld [vmem:[#allocation5 + $0xe44] sm:$0xf]
    %v1227 = vld [vmem:[#allocation5 + $0xe48] sm:$0xf]
    %v1228 = vld [vmem:[#allocation5 + $0xe4c] sm:$0xf]
    %v1229 = vld [vmem:[#allocation5 + $0xe50] sm:$0xf]
    %v1230 = vld [vmem:[#allocation5 + $0xe54] sm:$0xf]
    %v1231 = vld [vmem:[#allocation5 + $0xe58] sm:$0xf]
    %v1232 = vld [vmem:[#allocation5 + $0xe5c] sm:$0xf]
    %v1233 = vld [vmem:[#allocation5 + $0xe60] sm:$0xf]
    %v1234 = vld [vmem:[#allocation5 + $0xe64] sm:$0xf]
    %v1235 = vld [vmem:[#allocation5 + $0xe68] sm:$0xf]
    %v1236 = vld [vmem:[#allocation5 + $0xe6c] sm:$0xf]
    %v1237 = vld [vmem:[#allocation5 + $0xe70] sm:$0xf]
    %v1238 = vld [vmem:[#allocation5 + $0xe74] sm:$0xf]
    %v1239 = vld [vmem:[#allocation5 + $0xe78] sm:$0xf]
    %v1240 = vld [vmem:[#allocation5 + $0xe7c] sm:$0xf]
    %v1241 = vld [vmem:[#allocation5 + $0xe80] sm:$0xf]
    %v1242 = vld [vmem:[#allocation5 + $0xe84] sm:$0xf]
    %v1243 = vld [vmem:[#allocation5 + $0xe88] sm:$0xf]
    %v1244 = vld [vmem:[#allocation5 + $0xe8c] sm:$0xf]
    %v1245 = vld [vmem:[#allocation5 + $0xe90] sm:$0xf]
    %v1246 = vld [vmem:[#allocation5 + $0xe94] sm:$0xf]
    %v1247 = vld [vmem:[#allocation5 + $0xe98] sm:$0xf]
    %v1248 = vld [vmem:[#allocation5 + $0xe9c] sm:$0xf]
    %v1249 = vld [vmem:[#allocation5 + $0xea0] sm:$0xf]
    %v1250 = vld [vmem:[#allocation5 + $0xea4] sm:$0xf]
    %v1251 = vld [vmem:[#allocation5 + $0xea8] sm:$0xf]
    %v1252 = vld [vmem:[#allocation5 + $0xeac] sm:$0xf]
    %v1253 = vld [vmem:[#allocation5 + $0xeb0] sm:$0xf]
    %v1254 = vld [vmem:[#allocation5 + $0xeb4] sm:$0xf]
    %v1255 = vld [vmem:[#allocation5 + $0xeb8] sm:$0xf]
    %v1256 = vld [vmem:[#allocation5 + $0xebc] sm:$0xf]
    %v1257 = vld [vmem:[#allocation5 + $0xec0] sm:$0xf]
    %v1258 = vld [vmem:[#allocation5 + $0xec4] sm:$0xf]
    %v1259 = vld [vmem:[#allocation5 + $0xec8] sm:$0xf]
    %v1260 = vld [vmem:[#allocation5 + $0xecc] sm:$0xf]
    %v1261 = vld [vmem:[#allocation5 + $0xed0] sm:$0xf]
    %v1262 = vld [vmem:[#allocation5 + $0xed4] sm:$0xf]
    %v1263 = vld [vmem:[#allocation5 + $0xed8] sm:$0xf]
    %v1264 = vld [vmem:[#allocation5 + $0xedc] sm:$0xf]
    %v1265 = vld [vmem:[#allocation5 + $0xee0] sm:$0xf]
    %v1266 = vld [vmem:[#allocation5 + $0xee4] sm:$0xf]
    %v1267 = vld [vmem:[#allocation5 + $0xee8] sm:$0xf]
    %v1268 = vld [vmem:[#allocation5 + $0xeec] sm:$0xf]
    %v1269 = vld [vmem:[#allocation5 + $0xef0] sm:$0xf]
    %v1270 = vld [vmem:[#allocation5 + $0xef4] sm:$0xf]
    %v1271 = vld [vmem:[#allocation5 + $0xef8] sm:$0xf]
    %v1272 = vld [vmem:[#allocation5 + $0xefc] sm:$0xf]
    %v1273 = vld [vmem:[#allocation5 + $0xf00] sm:$0xf]
    %v1274 = vld [vmem:[#allocation5 + $0xf04] sm:$0xf]
    %v1275 = vld [vmem:[#allocation5 + $0xf08] sm:$0xf]
    %v1276 = vld [vmem:[#allocation5 + $0xf0c] sm:$0xf]
    %v1277 = vld [vmem:[#allocation5 + $0xf10] sm:$0xf]
    %v1278 = vld [vmem:[#allocation5 + $0xf14] sm:$0xf]
    %v1279 = vld [vmem:[#allocation5 + $0xf18] sm:$0xf]
    %v1280 = vld [vmem:[#allocation5 + $0xf1c] sm:$0xf]
    %v1281 = vld [vmem:[#allocation5 + $0xf20] sm:$0xf]
    %v1282 = vld [vmem:[#allocation5 + $0xf24] sm:$0xf]
    %v1283 = vld [vmem:[#allocation5 + $0xf28] sm:$0xf]
    %v1284 = vld [vmem:[#allocation5 + $0xf2c] sm:$0xf]
    %v1285 = vld [vmem:[#allocation5 + $0xf30] sm:$0xf]
    %v1286 = vld [vmem:[#allocation5 + $0xf34] sm:$0xf]
    %v1287 = vld [vmem:[#allocation5 + $0xf38] sm:$0xf]
    %v1288 = vld [vmem:[#allocation5 + $0xf3c] sm:$0xf]
    %v1289 = vld [vmem:[#allocation5 + $0xf40] sm:$0xf]
    %v1290 = vld [vmem:[#allocation5 + $0xf44] sm:$0xf]
    %v1291 = vld [vmem:[#allocation5 + $0xf48] sm:$0xf]
    %v1292 = vld [vmem:[#allocation5 + $0xf4c] sm:$0xf]
    %v1293 = vld [vmem:[#allocation5 + $0xf50] sm:$0xf]
    %v1294 = vld [vmem:[#allocation5 + $0xf54] sm:$0xf]
    %v1295 = vld [vmem:[#allocation5 + $0xf58] sm:$0xf]
    %v1296 = vld [vmem:[#allocation5 + $0xf5c] sm:$0xf]
    %v1297 = vld [vmem:[#allocation5 + $0xf60] sm:$0xf]
    %v1298 = vld [vmem:[#allocation5 + $0xf64] sm:$0xf]
    %v1299 = vld [vmem:[#allocation5 + $0xf68] sm:$0xf]
    %v1300 = vld [vmem:[#allocation5 + $0xf6c] sm:$0xf]
    %v1301 = vld [vmem:[#allocation5 + $0xf70] sm:$0xf]
    %v1302 = vld [vmem:[#allocation5 + $0xf74] sm:$0xf]
    %v1303 = vld [vmem:[#allocation5 + $0xf78] sm:$0xf]
    %v1304 = vld [vmem:[#allocation5 + $0xf7c] sm:$0xf]
    %v1305 = vld [vmem:[#allocation5 + $0xf80] sm:$0xf]
    %v1306 = vld [vmem:[#allocation5 + $0xf84] sm:$0xf]
    %v1307 = vld [vmem:[#allocation5 + $0xf88] sm:$0xf]
    %v1308 = vld [vmem:[#allocation5 + $0xf8c] sm:$0xf]
    %v1309 = vld [vmem:[#allocation5 + $0xf90] sm:$0xf]
    %v1310 = vld [vmem:[#allocation5 + $0xf94] sm:$0xf]
    %v1311 = vld [vmem:[#allocation5 + $0xf98] sm:$0xf]
    %v1312 = vld [vmem:[#allocation5 + $0xf9c] sm:$0xf]
    %v1313 = vld [vmem:[#allocation5 + $0xfa0] sm:$0xf]
    %v1314 = vld [vmem:[#allocation5 + $0xfa4] sm:$0xf]
    %v1315 = vld [vmem:[#allocation5 + $0xfa8] sm:$0xf]
    %v1316 = vld [vmem:[#allocation5 + $0xfac] sm:$0xf]
    %v1317 = vld [vmem:[#allocation5 + $0xfb0] sm:$0xf]
    %v1318 = vld [vmem:[#allocation5 + $0xfb4] sm:$0xf]
    %v1319 = vld [vmem:[#allocation5 + $0xfb8] sm:$0xf]
    %v1320 = vld [vmem:[#allocation5 + $0xfbc] sm:$0xf]
    %v1321 = vld [vmem:[#allocation5 + $0xfc0] sm:$0xf]
    %v1322 = vld [vmem:[#allocation5 + $0xfc4] sm:$0xf]
    %v1323 = vld [vmem:[#allocation5 + $0xfc8] sm:$0xf]
    %v1324 = vld [vmem:[#allocation5 + $0xfcc] sm:$0xf]
    %v1325 = vld [vmem:[#allocation5 + $0xfd0] sm:$0xf]
    %v1326 = vld [vmem:[#allocation5 + $0xfd4] sm:$0xf]
    %v1327 = vld [vmem:[#allocation5 + $0xfd8] sm:$0xf]
    %v1328 = vld [vmem:[#allocation5 + $0xfdc] sm:$0xf]
    %v1329 = vld [vmem:[#allocation5 + $0xfe0] sm:$0xf]
    %v1330 = vld [vmem:[#allocation5 + $0xfe4] sm:$0xf]
    %v1331 = vld [vmem:[#allocation5 + $0xfe8] sm:$0xf]
    %v1332 = vld [vmem:[#allocation5 + $0xfec] sm:$0xf]
    %v1333 = vld [vmem:[#allocation5 + $0xff0] sm:$0xf]
    %v1334 = vld [vmem:[#allocation5 + $0xff4] sm:$0xf]
    %v1335 = vld [vmem:[#allocation5 + $0xff8] sm:$0xf]
    %v1336 = vld [vmem:[#allocation5 + $0xffc] sm:$0xf]
    %v1337 = vld [vmem:[#allocation5 + $0x1000] sm:$0xf]
    %v1338 = vld [vmem:[#allocation5 + $0x1004] sm:$0xf]
    %v1339 = vld [vmem:[#allocation5 + $0x1008] sm:$0xf]
    %v1340 = vld [vmem:[#allocation5 + $0x100c] sm:$0xf]
    %v1341 = vld [vmem:[#allocation5 + $0x1010] sm:$0xf]
    %v1342 = vld [vmem:[#allocation5 + $0x1014] sm:$0xf]
    %v1343 = vld [vmem:[#allocation5 + $0x1018] sm:$0xf]
    %v1344 = vld [vmem:[#allocation5 + $0x101c] sm:$0xf]
    %v1345 = vld [vmem:[#allocation5 + $0x1020] sm:$0xf]
    %v1346 = vld [vmem:[#allocation5 + $0x1024] sm:$0xf]
    %v1347 = vld [vmem:[#allocation5 + $0x1028] sm:$0xf]
    %v1348 = vld [vmem:[#allocation5 + $0x102c] sm:$0xf]
    %v1349 = vld [vmem:[#allocation5 + $0x1030] sm:$0xf]
    %v1350 = vld [vmem:[#allocation5 + $0x1034] sm:$0xf]
    %v1351 = vld [vmem:[#allocation5 + $0x1038] sm:$0xf]
    %v1352 = vld [vmem:[#allocation5 + $0x103c] sm:$0xf]
    %v1353 = vld [vmem:[#allocation5 + $0x1040] sm:$0xf]
    %v1354 = vld [vmem:[#allocation5 + $0x1044] sm:$0xf]
    %v1355 = vld [vmem:[#allocation5 + $0x1048] sm:$0xf]
    %v1356 = vld [vmem:[#allocation5 + $0x104c] sm:$0xf]
    %v1357 = vld [vmem:[#allocation5 + $0x1050] sm:$0xf]
    %v1358 = vld [vmem:[#allocation5 + $0x1054] sm:$0xf]
    %v1359 = vld [vmem:[#allocation5 + $0x1058] sm:$0xf]
    %v1360 = vld [vmem:[#allocation5 + $0x105c] sm:$0xf]
    %v1361 = vld [vmem:[#allocation5 + $0x1060] sm:$0xf]
    %v1362 = vld [vmem:[#allocation5 + $0x1064] sm:$0xf]
    %v1363 = vld [vmem:[#allocation5 + $0x1068] sm:$0xf]
    %v1364 = vld [vmem:[#allocation5 + $0x106c] sm:$0xf]
    %v1365 = vld [vmem:[#allocation5 + $0x1070] sm:$0xf]
    %v1366 = vld [vmem:[#allocation5 + $0x1074] sm:$0xf]
    %v1367 = vld [vmem:[#allocation5 + $0x1078] sm:$0xf]
    %v1368 = vld [vmem:[#allocation5 + $0x107c] sm:$0xf]
    %v1369 = vld [vmem:[#allocation5 + $0x1080] sm:$0xf]
    %v1370 = vld [vmem:[#allocation5 + $0x1084] sm:$0xf]
    %v1371 = vld [vmem:[#allocation5 + $0x1088] sm:$0xf]
    %v1372 = vld [vmem:[#allocation5 + $0x108c] sm:$0xf]
    %v1373 = vld [vmem:[#allocation5 + $0x1090] sm:$0xf]
    %v1374 = vld [vmem:[#allocation5 + $0x1094] sm:$0xf]
    %v1375 = vld [vmem:[#allocation5 + $0x1098] sm:$0xf]
    %v1376 = vld [vmem:[#allocation5 + $0x109c] sm:$0xf]
    %v1377 = vld [vmem:[#allocation5 + $0x10a0] sm:$0xf]
    %v1378 = vld [vmem:[#allocation5 + $0x10a4] sm:$0xf]
    %v1379 = vld [vmem:[#allocation5 + $0x10a8] sm:$0xf]
    %v1380 = vld [vmem:[#allocation5 + $0x10ac] sm:$0xf]
    %v1381 = vld [vmem:[#allocation5 + $0x10b0] sm:$0xf]
    %v1382 = vld [vmem:[#allocation5 + $0x10b4] sm:$0xf]
    %v1383 = vld [vmem:[#allocation5 + $0x10b8] sm:$0xf]
    %v1384 = vld [vmem:[#allocation5 + $0x10bc] sm:$0xf]
    %v1385 = vld [vmem:[#allocation5 + $0x10c0] sm:$0xf]
    %v1386 = vld [vmem:[#allocation5 + $0x10c4] sm:$0xf]
    %v1387 = vld [vmem:[#allocation5 + $0x10c8] sm:$0xf]
    %v1388 = vld [vmem:[#allocation5 + $0x10cc] sm:$0xf]
    %v1389 = vld [vmem:[#allocation5 + $0x10d0] sm:$0xf]
    %v1390 = vld [vmem:[#allocation5 + $0x10d4] sm:$0xf]
    %v1391 = vld [vmem:[#allocation5 + $0x10d8] sm:$0xf]
    %v1392 = vld [vmem:[#allocation5 + $0x10dc] sm:$0xf]
    %v1393 = vld [vmem:[#allocation5 + $0x10e0] sm:$0xf]
    %v1394 = vld [vmem:[#allocation5 + $0x10e4] sm:$0xf]
    %v1395 = vld [vmem:[#allocation5 + $0x10e8] sm:$0xf]
    %v1396 = vld [vmem:[#allocation5 + $0x10ec] sm:$0xf]
    %v1397 = vld [vmem:[#allocation5 + $0x10f0] sm:$0xf]
    %v1398 = vld [vmem:[#allocation5 + $0x10f4] sm:$0xf]
    %v1399 = vld [vmem:[#allocation5 + $0x10f8] sm:$0xf]
    %v1400 = vld [vmem:[#allocation5 + $0x10fc] sm:$0xf]
    %v1401 = vld [vmem:[#allocation5 + $0x1100] sm:$0xf]
    %v1402 = vld [vmem:[#allocation5 + $0x1104] sm:$0xf]
    %v1403 = vld [vmem:[#allocation5 + $0x1108] sm:$0xf]
    %v1404 = vld [vmem:[#allocation5 + $0x110c] sm:$0xf]
    %v1405 = vld [vmem:[#allocation5 + $0x1110] sm:$0xf]
    %v1406 = vld [vmem:[#allocation5 + $0x1114] sm:$0xf]
    %v1407 = vld [vmem:[#allocation5 + $0x1118] sm:$0xf]
    %v1408 = vld [vmem:[#allocation5 + $0x111c] sm:$0xf]
    %v1409 = vld [vmem:[#allocation5 + $0x1120] sm:$0xf]
    %v1410 = vld [vmem:[#allocation5 + $0x1124] sm:$0xf]
    %v1411 = vld [vmem:[#allocation5 + $0x1128] sm:$0xf]
    %v1412 = vld [vmem:[#allocation5 + $0x112c] sm:$0xf]
    %v1413 = vld [vmem:[#allocation5 + $0x1130] sm:$0xf]
    %v1414 = vld [vmem:[#allocation5 + $0x1134] sm:$0xf]
    %v1415 = vld [vmem:[#allocation5 + $0x1138] sm:$0xf]
    %v1416 = vld [vmem:[#allocation5 + $0x113c] sm:$0xf]
    %v1417 = vld [vmem:[#allocation5 + $0x1140] sm:$0xf]
    %v1418 = vld [vmem:[#allocation5 + $0x1144] sm:$0xf]
    %v1419 = vld [vmem:[#allocation5 + $0x1148] sm:$0xf]
    %v1420 = vld [vmem:[#allocation5 + $0x114c] sm:$0xf]
    %v1421 = vld [vmem:[#allocation5 + $0x1150] sm:$0xf]
    %v1422 = vld [vmem:[#allocation5 + $0x1154] sm:$0xf]
    %v1423 = vld [vmem:[#allocation5 + $0x1158] sm:$0xf]
    %v1424 = vld [vmem:[#allocation5 + $0x115c] sm:$0xf]
    %v1425 = vld [vmem:[#allocation5 + $0x1160] sm:$0xf]
    %v1426 = vld [vmem:[#allocation5 + $0x1164] sm:$0xf]
    %v1427 = vld [vmem:[#allocation5 + $0x1168] sm:$0xf]
    %v1428 = vld [vmem:[#allocation5 + $0x116c] sm:$0xf]
    %v1429 = vld [vmem:[#allocation5 + $0x1170] sm:$0xf]
    %v1430 = vld [vmem:[#allocation5 + $0x1174] sm:$0xf]
    %v1431 = vld [vmem:[#allocation5 + $0x1178] sm:$0xf]
    %v1432 = vld [vmem:[#allocation5 + $0x117c] sm:$0xf]
    %v1433 = vld [vmem:[#allocation5 + $0x1180] sm:$0xf]
    %v1434 = vld [vmem:[#allocation5 + $0x1184] sm:$0xf]
    %v1435 = vld [vmem:[#allocation5 + $0x1188] sm:$0xf]
    %v1436 = vld [vmem:[#allocation5 + $0x118c] sm:$0xf]
    %v1437 = vld [vmem:[#allocation5 + $0x1190] sm:$0xf]
    %v1438 = vld [vmem:[#allocation5 + $0x1194] sm:$0xf]
    %v1439 = vld [vmem:[#allocation5 + $0x1198] sm:$0xf]
    %v1440 = vld [vmem:[#allocation5 + $0x119c] sm:$0xf]
    %v1441 = vld [vmem:[#allocation5 + $0x11a0] sm:$0xf]
    %v1442 = vld [vmem:[#allocation5 + $0x11a4] sm:$0xf]
    %v1443 = vld [vmem:[#allocation5 + $0x11a8] sm:$0xf]
    %v1444 = vld [vmem:[#allocation5 + $0x11ac] sm:$0xf]
    %v1445 = vld [vmem:[#allocation5 + $0x11b0] sm:$0xf]
    %v1446 = vld [vmem:[#allocation5 + $0x11b4] sm:$0xf]
    %v1447 = vld [vmem:[#allocation5 + $0x11b8] sm:$0xf]
    %v1448 = vld [vmem:[#allocation5 + $0x11bc] sm:$0xf]
    %v1449 = vld [vmem:[#allocation5 + $0x11c0] sm:$0xf]
    %v1450 = vld [vmem:[#allocation5 + $0x11c4] sm:$0xf]
    %v1451 = vld [vmem:[#allocation5 + $0x11c8] sm:$0xf]
    %v1452 = vld [vmem:[#allocation5 + $0x11cc] sm:$0xf]
    %v1453 = vld [vmem:[#allocation5 + $0x11d0] sm:$0xf]
    %v1454 = vld [vmem:[#allocation5 + $0x11d4] sm:$0xf]
    %v1455 = vld [vmem:[#allocation5 + $0x11d8] sm:$0xf]
    %v1456 = vld [vmem:[#allocation5 + $0x11dc] sm:$0xf]
    %v1457 = vld [vmem:[#allocation5 + $0x11e0] sm:$0xf]
    %v1458 = vld [vmem:[#allocation5 + $0x11e4] sm:$0xf]
    %v1459 = vld [vmem:[#allocation5 + $0x11e8] sm:$0xf]
    %v1460 = vld [vmem:[#allocation5 + $0x11ec] sm:$0xf]
    %v1461 = vld [vmem:[#allocation5 + $0x11f0] sm:$0xf]
    %v1462 = vld [vmem:[#allocation5 + $0x11f4] sm:$0xf]
    %v1463 = vld [vmem:[#allocation5 + $0x11f8] sm:$0xf]
    %v1464 = vld [vmem:[#allocation5 + $0x11fc] sm:$0xf]
    %v1465 = vld [vmem:[#allocation5 + $0x1200] sm:$0xf]
    %v1466 = vld [vmem:[#allocation5 + $0x1204] sm:$0xf]
    %v1467 = vld [vmem:[#allocation5 + $0x1208] sm:$0xf]
    %v1468 = vld [vmem:[#allocation5 + $0x120c] sm:$0xf]
    %v1469 = vld [vmem:[#allocation5 + $0x1210] sm:$0xf]
    %v1470 = vld [vmem:[#allocation5 + $0x1214] sm:$0xf]
    %v1471 = vld [vmem:[#allocation5 + $0x1218] sm:$0xf]
    %v1472 = vld [vmem:[#allocation5 + $0x121c] sm:$0xf]
    %v1473 = vld [vmem:[#allocation5 + $0x1220] sm:$0xf]
    %v1474 = vld [vmem:[#allocation5 + $0x1224] sm:$0xf]
    %v1475 = vld [vmem:[#allocation5 + $0x1228] sm:$0xf]
    %v1476 = vld [vmem:[#allocation5 + $0x122c] sm:$0xf]
    %v1477 = vld [vmem:[#allocation5 + $0x1230] sm:$0xf]
    %v1478 = vld [vmem:[#allocation5 + $0x1234] sm:$0xf]
    %v1479 = vld [vmem:[#allocation5 + $0x1238] sm:$0xf]
    %v1480 = vld [vmem:[#allocation5 + $0x123c] sm:$0xf]
    %v1481 = vld [vmem:[#allocation5 + $0x1240] sm:$0xf]
    %v1482 = vld [vmem:[#allocation5 + $0x1244] sm:$0xf]
    %v1483 = vld [vmem:[#allocation5 + $0x1248] sm:$0xf]
    %v1484 = vld [vmem:[#allocation5 + $0x124c] sm:$0xf]
    %v1485 = vld [vmem:[#allocation5 + $0x1250] sm:$0xf]
    %v1486 = vld [vmem:[#allocation5 + $0x1254] sm:$0xf]
    %v1487 = vld [vmem:[#allocation5 + $0x1258] sm:$0xf]
    %v1488 = vld [vmem:[#allocation5 + $0x125c] sm:$0xf]
    %v1489 = vld [vmem:[#allocation5 + $0x1260] sm:$0xf]
    %v1490 = vld [vmem:[#allocation5 + $0x1264] sm:$0xf]
    %v1491 = vld [vmem:[#allocation5 + $0x1268] sm:$0xf]
    %v1492 = vld [vmem:[#allocation5 + $0x126c] sm:$0xf]
    %v1493 = vld [vmem:[#allocation5 + $0x1270] sm:$0xf]
    %v1494 = vld [vmem:[#allocation5 + $0x1274] sm:$0xf]
    %v1495 = vld [vmem:[#allocation5 + $0x1278] sm:$0xf]
    %v1496 = vld [vmem:[#allocation5 + $0x127c] sm:$0xf]
    %v1497 = vld [vmem:[#allocation5 + $0x1280] sm:$0xf]
    %v1498 = vld [vmem:[#allocation5 + $0x1284] sm:$0xf]
    %v1499 = vld [vmem:[#allocation5 + $0x1288] sm:$0xf]
    %v1500 = vld [vmem:[#allocation5 + $0x128c] sm:$0xf]
    %v1501 = vld [vmem:[#allocation5 + $0x1290] sm:$0xf]
    %v1502 = vld [vmem:[#allocation5 + $0x1294] sm:$0xf]
    %v1503 = vld [vmem:[#allocation5 + $0x1298] sm:$0xf]
    %v1504 = vld [vmem:[#allocation5 + $0x129c] sm:$0xf]
    %v1505 = vld [vmem:[#allocation5 + $0x12a0] sm:$0xf]
    %v1506 = vld [vmem:[#allocation5 + $0x12a4] sm:$0xf]
    %v1507 = vld [vmem:[#allocation5 + $0x12a8] sm:$0xf]
    %v1508 = vld [vmem:[#allocation5 + $0x12ac] sm:$0xf]
    %v1509 = vld [vmem:[#allocation5 + $0x12b0] sm:$0xf]
    %v1510 = vld [vmem:[#allocation5 + $0x12b4] sm:$0xf]
    %v1511 = vld [vmem:[#allocation5 + $0x12b8] sm:$0xf]
    %v1512 = vld [vmem:[#allocation5 + $0x12bc] sm:$0xf]
    %v1513 = vld [vmem:[#allocation7] sm:$0x1]
    %v1515 = vperm.slane %v1513, 0
    %v2717 = vunpack.c.l.b16 %v313
    %v2718 = vunpack.c.l.b16 %v314
    %v2719 = vunpack.c.l.b16 %v315
    %v2720 = vunpack.c.l.b16 %v316
    %v2721 = vunpack.c.l.b16 %v317
    %v2722 = vunpack.c.l.b16 %v318
    %v2723 = vunpack.c.l.b16 %v319
    %v2724 = vunpack.c.l.b16 %v320
    %v2725 = vunpack.c.l.b16 %v321
    %v2726 = vunpack.c.l.b16 %v322
    %v2727 = vunpack.c.l.b16 %v323
    %v2728 = vunpack.c.l.b16 %v324
    %v2729 = vunpack.c.l.b16 %v325
    %v2730 = vunpack.c.l.b16 %v326
    %v2731 = vunpack.c.l.b16 %v327
    %v2732 = vunpack.c.l.b16 %v328
    %v2733 = vunpack.c.l.b16 %v329
    %v2734 = vunpack.c.l.b16 %v330
    %v2735 = vunpack.c.l.b16 %v331
    %v2736 = vunpack.c.l.b16 %v332
    %v2737 = vunpack.c.l.b16 %v333
    %v2738 = vunpack.c.l.b16 %v334
    %v2739 = vunpack.c.l.b16 %v335
    %v2740 = vunpack.c.l.b16 %v336
    %v2741 = vunpack.c.l.b16 %v337
    %v2742 = vunpack.c.l.b16 %v338
    %v2743 = vunpack.c.l.b16 %v339
    %v2744 = vunpack.c.l.b16 %v340
    %v2745 = vunpack.c.l.b16 %v341
    %v2746 = vunpack.c.l.b16 %v342
    %v2747 = vunpack.c.l.b16 %v343
    %v2748 = vunpack.c.l.b16 %v344
    %v2749 = vunpack.c.l.b16 %v345
    %v2750 = vunpack.c.l.b16 %v346
    %v2751 = vunpack.c.l.b16 %v347
    %v2752 = vunpack.c.l.b16 %v348
    %v2753 = vunpack.c.l.b16 %v349
    %v2754 = vunpack.c.l.b16 %v350
    %v2755 = vunpack.c.l.b16 %v351
    %v2756 = vunpack.c.l.b16 %v352
    %v2757 = vunpack.c.l.b16 %v353
    %v2758 = vunpack.c.l.b16 %v354
    %v2759 = vunpack.c.l.b16 %v355
    %v2760 = vunpack.c.l.b16 %v356
    %v2761 = vunpack.c.l.b16 %v357
    %v2762 = vunpack.c.l.b16 %v358
    %v2763 = vunpack.c.l.b16 %v359
    %v2764 = vunpack.c.l.b16 %v360
    %v2765 = vunpack.c.l.b16 %v361
    %v2766 = vunpack.c.l.b16 %v362
    %v2767 = vunpack.c.l.b16 %v363
    %v2768 = vunpack.c.l.b16 %v364
    %v2769 = vunpack.c.l.b16 %v365
    %v2770 = vunpack.c.l.b16 %v366
    %v2771 = vunpack.c.l.b16 %v367
    %v2772 = vunpack.c.l.b16 %v368
    %v2773 = vunpack.c.l.b16 %v369
    %v2774 = vunpack.c.l.b16 %v370
    %v2775 = vunpack.c.l.b16 %v371
    %v2776 = vunpack.c.l.b16 %v372
    %v2777 = vunpack.c.l.b16 %v373
    %v2778 = vunpack.c.l.b16 %v374
    %v2779 = vunpack.c.l.b16 %v375
    %v2780 = vunpack.c.l.b16 %v376
    %v2781 = vunpack.c.l.b16 %v377
    %v2782 = vunpack.c.l.b16 %v378
    %v2783 = vunpack.c.l.b16 %v379
    %v2784 = vunpack.c.l.b16 %v380
    %v2785 = vunpack.c.l.b16 %v381
    %v2786 = vunpack.c.l.b16 %v382
    %v2787 = vunpack.c.l.b16 %v383
    %v2788 = vunpack.c.l.b16 %v384
    %v2789 = vunpack.c.l.b16 %v385
    %v2790 = vunpack.c.l.b16 %v386
    %v2791 = vunpack.c.l.b16 %v387
    %v2792 = vunpack.c.l.b16 %v388
    %v2793 = vunpack.c.l.b16 %v389
    %v2794 = vunpack.c.l.b16 %v390
    %v2795 = vunpack.c.l.b16 %v391
    %v2796 = vunpack.c.l.b16 %v392
    %v2797 = vunpack.c.l.b16 %v393
    %v2798 = vunpack.c.l.b16 %v394
    %v2799 = vunpack.c.l.b16 %v395
    %v2800 = vunpack.c.l.b16 %v396
    %v2801 = vunpack.c.l.b16 %v397
    %v2802 = vunpack.c.l.b16 %v398
    %v2803 = vunpack.c.l.b16 %v399
    %v2804 = vunpack.c.l.b16 %v400
    %v2805 = vunpack.c.l.b16 %v401
    %v2806 = vunpack.c.l.b16 %v402
    %v2807 = vunpack.c.l.b16 %v403
    %v2808 = vunpack.c.l.b16 %v404
    %v2809 = vunpack.c.l.b16 %v405
    %v2810 = vunpack.c.l.b16 %v406
    %v2811 = vunpack.c.l.b16 %v407
    %v2812 = vunpack.c.l.b16 %v408
    %v2813 = vunpack.c.l.b16 %v409
    %v2814 = vunpack.c.l.b16 %v410
    %v2815 = vunpack.c.l.b16 %v411
    %v2816 = vunpack.c.l.b16 %v412
    %v2817 = vunpack.c.l.b16 %v413
    %v2818 = vunpack.c.l.b16 %v414
    %v2819 = vunpack.c.l.b16 %v415
    %v2820 = vunpack.c.l.b16 %v416
    %v2821 = vunpack.c.l.b16 %v417
    %v2822 = vunpack.c.l.b16 %v418
    %v2823 = vunpack.c.l.b16 %v419
    %v2824 = vunpack.c.l.b16 %v420
    %v2825 = vunpack.c.l.b16 %v421
    %v2826 = vunpack.c.l.b16 %v422
    %v2827 = vunpack.c.l.b16 %v423
    %v2828 = vunpack.c.l.b16 %v424
    %v2829 = vunpack.c.l.b16 %v425
    %v2830 = vunpack.c.l.b16 %v426
    %v2831 = vunpack.c.l.b16 %v427
    %v2832 = vunpack.c.l.b16 %v428
    %v2833 = vunpack.c.l.b16 %v429
    %v2834 = vunpack.c.l.b16 %v430
    %v2835 = vunpack.c.l.b16 %v431
    %v2836 = vunpack.c.l.b16 %v432
    %v2837 = vunpack.c.l.b16 %v433
    %v2838 = vunpack.c.l.b16 %v434
    %v2839 = vunpack.c.l.b16 %v435
    %v2840 = vunpack.c.l.b16 %v436
    %v2841 = vunpack.c.l.b16 %v437
    %v2842 = vunpack.c.l.b16 %v438
    %v2843 = vunpack.c.l.b16 %v439
    %v2844 = vunpack.c.l.b16 %v440
    %v2845 = vunpack.c.l.b16 %v441
    %v2846 = vunpack.c.l.b16 %v442
    %v2847 = vunpack.c.l.b16 %v443
    %v2848 = vunpack.c.l.b16 %v444
    %v2849 = vunpack.c.l.b16 %v445
    %v2850 = vunpack.c.l.b16 %v446
    %v2851 = vunpack.c.l.b16 %v447
    %v2852 = vunpack.c.l.b16 %v448
    %v2853 = vunpack.c.l.b16 %v449
    %v2854 = vunpack.c.l.b16 %v450
    %v2855 = vunpack.c.l.b16 %v451
    %v2856 = vunpack.c.l.b16 %v452
    %v2857 = vunpack.c.l.b16 %v453
    %v2858 = vunpack.c.l.b16 %v454
    %v2859 = vunpack.c.l.b16 %v455
    %v2860 = vunpack.c.l.b16 %v456
    %v2861 = vunpack.c.l.b16 %v457
    %v2862 = vunpack.c.l.b16 %v458
    %v2863 = vunpack.c.l.b16 %v459
    %v2864 = vunpack.c.l.b16 %v460
    %v2865 = vunpack.c.l.b16 %v461
    %v2866 = vunpack.c.l.b16 %v462
    %v2867 = vunpack.c.l.b16 %v463
    %v2868 = vunpack.c.l.b16 %v464
    %v2869 = vunpack.c.l.b16 %v465
    %v2870 = vunpack.c.l.b16 %v466
    %v2871 = vunpack.c.l.b16 %v467
    %v2872 = vunpack.c.l.b16 %v468
    %v2873 = vunpack.c.l.b16 %v469
    %v2874 = vunpack.c.l.b16 %v470
    %v2875 = vunpack.c.l.b16 %v471
    %v2876 = vunpack.c.l.b16 %v472
    %v2877 = vunpack.c.l.b16 %v473
    %v2878 = vunpack.c.l.b16 %v474
    %v2879 = vunpack.c.l.b16 %v475
    %v2880 = vunpack.c.l.b16 %v476
    %v2881 = vunpack.c.l.b16 %v477
    %v2882 = vunpack.c.l.b16 %v478
    %v2883 = vunpack.c.l.b16 %v479
    %v2884 = vunpack.c.l.b16 %v480
    %v2885 = vunpack.c.l.b16 %v481
    %v2886 = vunpack.c.l.b16 %v482
    %v2887 = vunpack.c.l.b16 %v483
    %v2888 = vunpack.c.l.b16 %v484
    %v2889 = vunpack.c.l.b16 %v485
    %v2890 = vunpack.c.l.b16 %v486
    %v2891 = vunpack.c.l.b16 %v487
    %v2892 = vunpack.c.l.b16 %v488
    %v2893 = vunpack.c.l.b16 %v489
    %v2894 = vunpack.c.l.b16 %v490
    %v2895 = vunpack.c.l.b16 %v491
    %v2896 = vunpack.c.l.b16 %v492
    %v2897 = vunpack.c.l.b16 %v493
    %v2898 = vunpack.c.l.b16 %v494
    %v2899 = vunpack.c.l.b16 %v495
    %v2900 = vunpack.c.l.b16 %v496
    %v2901 = vunpack.c.l.b16 %v497
    %v2902 = vunpack.c.l.b16 %v498
    %v2903 = vunpack.c.l.b16 %v499
    %v2904 = vunpack.c.l.b16 %v500
    %v2905 = vunpack.c.l.b16 %v501
    %v2906 = vunpack.c.l.b16 %v502
    %v2907 = vunpack.c.l.b16 %v503
    %v2908 = vunpack.c.l.b16 %v504
    %v2909 = vunpack.c.l.b16 %v505
    %v2910 = vunpack.c.l.b16 %v506
    %v2911 = vunpack.c.l.b16 %v507
    %v2912 = vunpack.c.l.b16 %v508
    %v2913 = vunpack.c.l.b16 %v509
    %v2914 = vunpack.c.l.b16 %v510
    %v2915 = vunpack.c.l.b16 %v511
    %v2916 = vunpack.c.l.b16 %v512
    %v2917 = vunpack.c.l.b16 %v513
    %v2918 = vunpack.c.l.b16 %v514
    %v2919 = vunpack.c.l.b16 %v515
    %v2920 = vunpack.c.l.b16 %v516
    %v2921 = vunpack.c.l.b16 %v517
    %v2922 = vunpack.c.l.b16 %v518
    %v2923 = vunpack.c.l.b16 %v519
    %v2924 = vunpack.c.l.b16 %v520
    %v2925 = vunpack.c.l.b16 %v521
    %v2926 = vunpack.c.l.b16 %v522
    %v2927 = vunpack.c.l.b16 %v523
    %v2928 = vunpack.c.l.b16 %v524
    %v2929 = vunpack.c.l.b16 %v525
    %v2930 = vunpack.c.l.b16 %v526
    %v2931 = vunpack.c.l.b16 %v527
    %v2932 = vunpack.c.l.b16 %v528
    %v2933 = vunpack.c.l.b16 %v529
    %v2934 = vunpack.c.l.b16 %v530
    %v2935 = vunpack.c.l.b16 %v531
    %v2936 = vunpack.c.l.b16 %v532
    %v2937 = vunpack.c.l.b16 %v533
    %v2938 = vunpack.c.l.b16 %v534
    %v2939 = vunpack.c.l.b16 %v535
    %v2940 = vunpack.c.l.b16 %v536
    %v2941 = vunpack.c.l.b16 %v537
    %v2942 = vunpack.c.l.b16 %v538
    %v2943 = vunpack.c.l.b16 %v539
    %v2944 = vunpack.c.l.b16 %v540
    %v2945 = vunpack.c.l.b16 %v541
    %v2946 = vunpack.c.l.b16 %v542
    %v2947 = vunpack.c.l.b16 %v543
    %v2948 = vunpack.c.l.b16 %v544
    %v2949 = vunpack.c.l.b16 %v545
    %v2950 = vunpack.c.l.b16 %v546
    %v2951 = vunpack.c.l.b16 %v547
    %v2952 = vunpack.c.l.b16 %v548
    %v2953 = vunpack.c.l.b16 %v549
    %v2954 = vunpack.c.l.b16 %v550
    %v2955 = vunpack.c.l.b16 %v551
    %v2956 = vunpack.c.l.b16 %v552
    %v2957 = vunpack.c.l.b16 %v553
    %v2958 = vunpack.c.l.b16 %v554
    %v2959 = vunpack.c.l.b16 %v555
    %v2960 = vunpack.c.l.b16 %v556
    %v2961 = vunpack.c.l.b16 %v557
    %v2962 = vunpack.c.l.b16 %v558
    %v2963 = vunpack.c.l.b16 %v559
    %v2964 = vunpack.c.l.b16 %v560
    %v2965 = vunpack.c.l.b16 %v561
    %v2966 = vunpack.c.l.b16 %v562
    %v2967 = vunpack.c.l.b16 %v563
    %v2968 = vunpack.c.l.b16 %v564
    %v2969 = vunpack.c.l.b16 %v565
    %v2970 = vunpack.c.l.b16 %v566
    %v2971 = vunpack.c.l.b16 %v567
    %v2972 = vunpack.c.l.b16 %v568
    %v2973 = vunpack.c.l.b16 %v569
    %v2974 = vunpack.c.l.b16 %v570
    %v2975 = vunpack.c.l.b16 %v571
    %v2976 = vunpack.c.l.b16 %v572
    %v2977 = vunpack.c.l.b16 %v573
    %v2978 = vunpack.c.l.b16 %v574
    %v2979 = vunpack.c.l.b16 %v575
    %v2980 = vunpack.c.l.b16 %v576
    %v2981 = vunpack.c.l.b16 %v577
    %v2982 = vunpack.c.l.b16 %v578
    %v2983 = vunpack.c.l.b16 %v579
    %v2984 = vunpack.c.l.b16 %v580
    %v2985 = vunpack.c.l.b16 %v581
    %v2986 = vunpack.c.l.b16 %v582
    %v2987 = vunpack.c.l.b16 %v583
    %v2988 = vunpack.c.l.b16 %v584
    %v2989 = vunpack.c.l.b16 %v585
    %v2990 = vunpack.c.l.b16 %v586
    %v2991 = vunpack.c.l.b16 %v587
    %v2992 = vunpack.c.l.b16 %v588
    %v2993 = vunpack.c.l.b16 %v589
    %v2994 = vunpack.c.l.b16 %v590
    %v2995 = vunpack.c.l.b16 %v591
    %v2996 = vunpack.c.l.b16 %v592
    %v2997 = vunpack.c.l.b16 %v593
    %v2998 = vunpack.c.l.b16 %v594
    %v2999 = vunpack.c.l.b16 %v595
    %v3000 = vunpack.c.l.b16 %v596
    %v3001 = vunpack.c.l.b16 %v597
    %v3002 = vunpack.c.l.b16 %v598
    %v3003 = vunpack.c.l.b16 %v599
    %v3004 = vunpack.c.l.b16 %v600
    %v3005 = vunpack.c.l.b16 %v601
    %v3006 = vunpack.c.l.b16 %v602
    %v3007 = vunpack.c.l.b16 %v603
    %v3008 = vunpack.c.l.b16 %v604
    %v3009 = vunpack.c.l.b16 %v605
    %v3010 = vunpack.c.l.b16 %v606
    %v3011 = vunpack.c.l.b16 %v607
    %v3012 = vunpack.c.l.b16 %v608
    %v3013 = vunpack.c.l.b16 %v609
    %v3014 = vunpack.c.l.b16 %v610
    %v3015 = vunpack.c.l.b16 %v611
    %v3016 = vunpack.c.l.b16 %v612
    %v3017 = vunpack.c.l.b16 %v613
    %v3018 = vunpack.c.l.b16 %v614
    %v3019 = vunpack.c.l.b16 %v615
    %v3020 = vunpack.c.l.b16 %v616
    %v3021 = vunpack.c.l.b16 %v617
    %v3022 = vunpack.c.l.b16 %v618
    %v3023 = vunpack.c.l.b16 %v619
    %v3024 = vunpack.c.l.b16 %v620
    %v3025 = vunpack.c.l.b16 %v621
    %v3026 = vunpack.c.l.b16 %v622
    %v3027 = vunpack.c.l.b16 %v623
    %v3028 = vunpack.c.l.b16 %v624
    %v3029 = vunpack.c.l.b16 %v625
    %v3030 = vunpack.c.l.b16 %v626
    %v3031 = vunpack.c.l.b16 %v627
    %v3032 = vunpack.c.l.b16 %v628
    %v3033 = vunpack.c.l.b16 %v629
    %v3034 = vunpack.c.l.b16 %v630
    %v3035 = vunpack.c.l.b16 %v631
    %v3036 = vunpack.c.l.b16 %v632
    %v3037 = vunpack.c.l.b16 %v633
    %v3038 = vunpack.c.l.b16 %v634
    %v3039 = vunpack.c.l.b16 %v635
    %v3040 = vunpack.c.l.b16 %v636
    %v3041 = vunpack.c.l.b16 %v637
    %v3042 = vunpack.c.l.b16 %v638
    %v3043 = vunpack.c.l.b16 %v639
    %v3044 = vunpack.c.l.b16 %v640
    %v3045 = vunpack.c.l.b16 %v641
    %v3046 = vunpack.c.l.b16 %v642
    %v3047 = vunpack.c.l.b16 %v643
    %v3048 = vunpack.c.l.b16 %v644
    %v3049 = vunpack.c.l.b16 %v645
    %v3050 = vunpack.c.l.b16 %v646
    %v3051 = vunpack.c.l.b16 %v647
    %v3052 = vunpack.c.l.b16 %v648
    %v3053 = vunpack.c.l.b16 %v649
    %v3054 = vunpack.c.l.b16 %v650
    %v3055 = vunpack.c.l.b16 %v651
    %v3056 = vunpack.c.l.b16 %v652
    %v3057 = vunpack.c.l.b16 %v653
    %v3058 = vunpack.c.l.b16 %v654
    %v3059 = vunpack.c.l.b16 %v655
    %v3060 = vunpack.c.l.b16 %v656
    %v3061 = vunpack.c.l.b16 %v657
    %v3062 = vunpack.c.l.b16 %v658
    %v3063 = vunpack.c.l.b16 %v659
    %v3064 = vunpack.c.l.b16 %v660
    %v3065 = vunpack.c.l.b16 %v661
    %v3066 = vunpack.c.l.b16 %v662
    %v3067 = vunpack.c.l.b16 %v663
    %v3068 = vunpack.c.l.b16 %v664
    %v3069 = vunpack.c.l.b16 %v665
    %v3070 = vunpack.c.l.b16 %v666
    %v3071 = vunpack.c.l.b16 %v667
    %v3072 = vunpack.c.l.b16 %v668
    %v3073 = vunpack.c.l.b16 %v669
    %v3074 = vunpack.c.l.b16 %v670
    %v3075 = vunpack.c.l.b16 %v671
    %v3076 = vunpack.c.l.b16 %v672
    %v3077 = vunpack.c.l.b16 %v673
    %v3078 = vunpack.c.l.b16 %v674
    %v3079 = vunpack.c.l.b16 %v675
    %v3080 = vunpack.c.l.b16 %v676
    %v3081 = vunpack.c.l.b16 %v677
    %v3082 = vunpack.c.l.b16 %v678
    %v3083 = vunpack.c.l.b16 %v679
    %v3084 = vunpack.c.l.b16 %v680
    %v3085 = vunpack.c.l.b16 %v681
    %v3086 = vunpack.c.l.b16 %v682
    %v3087 = vunpack.c.l.b16 %v683
    %v3088 = vunpack.c.l.b16 %v684
    %v3089 = vunpack.c.l.b16 %v685
    %v3090 = vunpack.c.l.b16 %v686
    %v3091 = vunpack.c.l.b16 %v687
    %v3092 = vunpack.c.l.b16 %v688
    %v3093 = vunpack.c.l.b16 %v689
    %v3094 = vunpack.c.l.b16 %v690
    %v3095 = vunpack.c.l.b16 %v691
    %v3096 = vunpack.c.l.b16 %v692
    %v3097 = vunpack.c.l.b16 %v693
    %v3098 = vunpack.c.l.b16 %v694
    %v3099 = vunpack.c.l.b16 %v695
    %v3100 = vunpack.c.l.b16 %v696
    %v3101 = vunpack.c.l.b16 %v697
    %v3102 = vunpack.c.l.b16 %v698
    %v3103 = vunpack.c.l.b16 %v699
    %v3104 = vunpack.c.l.b16 %v700
    %v3105 = vunpack.c.l.b16 %v701
    %v3106 = vunpack.c.l.b16 %v702
    %v3107 = vunpack.c.l.b16 %v703
    %v3108 = vunpack.c.l.b16 %v704
    %v3109 = vunpack.c.l.b16 %v705
    %v3110 = vunpack.c.l.b16 %v706
    %v3111 = vunpack.c.l.b16 %v707
    %v3112 = vunpack.c.l.b16 %v708
    %v3113 = vunpack.c.l.b16 %v709
    %v3114 = vunpack.c.l.b16 %v710
    %v3115 = vunpack.c.l.b16 %v711
    %v3116 = vunpack.c.l.b16 %v712
    %v3117 = vunpack.c.l.b16 %v713
    %v3118 = vunpack.c.l.b16 %v714
    %v3119 = vunpack.c.l.b16 %v715
    %v3120 = vunpack.c.l.b16 %v716
    %v3121 = vunpack.c.l.b16 %v717
    %v3122 = vunpack.c.l.b16 %v718
    %v3123 = vunpack.c.l.b16 %v719
    %v3124 = vunpack.c.l.b16 %v720
    %v3125 = vunpack.c.l.b16 %v721
    %v3126 = vunpack.c.l.b16 %v722
    %v3127 = vunpack.c.l.b16 %v723
    %v3128 = vunpack.c.l.b16 %v724
    %v3129 = vunpack.c.l.b16 %v725
    %v3130 = vunpack.c.l.b16 %v726
    %v3131 = vunpack.c.l.b16 %v727
    %v3132 = vunpack.c.l.b16 %v728
    %v3133 = vunpack.c.l.b16 %v729
    %v3134 = vunpack.c.l.b16 %v730
    %v3135 = vunpack.c.l.b16 %v731
    %v3136 = vunpack.c.l.b16 %v732
    %v3137 = vunpack.c.l.b16 %v733
    %v3138 = vunpack.c.l.b16 %v734
    %v3139 = vunpack.c.l.b16 %v735
    %v3140 = vunpack.c.l.b16 %v736
    %v3141 = vunpack.c.l.b16 %v737
    %v3142 = vunpack.c.l.b16 %v738
    %v3143 = vunpack.c.l.b16 %v739
    %v3144 = vunpack.c.l.b16 %v740
    %v3145 = vunpack.c.l.b16 %v741
    %v3146 = vunpack.c.l.b16 %v742
    %v3147 = vunpack.c.l.b16 %v743
    %v3148 = vunpack.c.l.b16 %v744
    %v3149 = vunpack.c.l.b16 %v745
    %v3150 = vunpack.c.l.b16 %v746
    %v3151 = vunpack.c.l.b16 %v747
    %v3152 = vunpack.c.l.b16 %v748
    %v3153 = vunpack.c.l.b16 %v749
    %v3154 = vunpack.c.l.b16 %v750
    %v3155 = vunpack.c.l.b16 %v751
    %v3156 = vunpack.c.l.b16 %v752
    %v3157 = vunpack.c.l.b16 %v753
    %v3158 = vunpack.c.l.b16 %v754
    %v3159 = vunpack.c.l.b16 %v755
    %v3160 = vunpack.c.l.b16 %v756
    %v3161 = vunpack.c.l.b16 %v757
    %v3162 = vunpack.c.l.b16 %v758
    %v3163 = vunpack.c.l.b16 %v759
    %v3164 = vunpack.c.l.b16 %v760
    %v3165 = vunpack.c.l.b16 %v761
    %v3166 = vunpack.c.l.b16 %v762
    %v3167 = vunpack.c.l.b16 %v763
    %v3168 = vunpack.c.l.b16 %v764
    %v3169 = vunpack.c.l.b16 %v765
    %v3170 = vunpack.c.l.b16 %v766
    %v3171 = vunpack.c.l.b16 %v767
    %v3172 = vunpack.c.l.b16 %v768
    %v3173 = vunpack.c.l.b16 %v769
    %v3174 = vunpack.c.l.b16 %v770
    %v3175 = vunpack.c.l.b16 %v771
    %v3176 = vunpack.c.l.b16 %v772
    %v3177 = vunpack.c.l.b16 %v773
    %v3178 = vunpack.c.l.b16 %v774
    %v3179 = vunpack.c.l.b16 %v775
    %v3180 = vunpack.c.l.b16 %v776
    %v3181 = vunpack.c.l.b16 %v777
    %v3182 = vunpack.c.l.b16 %v778
    %v3183 = vunpack.c.l.b16 %v779
    %v3184 = vunpack.c.l.b16 %v780
    %v3185 = vunpack.c.l.b16 %v781
    %v3186 = vunpack.c.l.b16 %v782
    %v3187 = vunpack.c.l.b16 %v783
    %v3188 = vunpack.c.l.b16 %v784
    %v3189 = vunpack.c.l.b16 %v785
    %v3190 = vunpack.c.l.b16 %v786
    %v3191 = vunpack.c.l.b16 %v787
    %v3192 = vunpack.c.l.b16 %v788
    %v3193 = vunpack.c.l.b16 %v789
    %v3194 = vunpack.c.l.b16 %v790
    %v3195 = vunpack.c.l.b16 %v791
    %v3196 = vunpack.c.l.b16 %v792
    %v3197 = vunpack.c.l.b16 %v793
    %v3198 = vunpack.c.l.b16 %v794
    %v3199 = vunpack.c.l.b16 %v795
    %v3200 = vunpack.c.l.b16 %v796
    %v3201 = vunpack.c.l.b16 %v797
    %v3202 = vunpack.c.l.b16 %v798
    %v3203 = vunpack.c.l.b16 %v799
    %v3204 = vunpack.c.l.b16 %v800
    %v3205 = vunpack.c.l.b16 %v801
    %v3206 = vunpack.c.l.b16 %v802
    %v3207 = vunpack.c.l.b16 %v803
    %v3208 = vunpack.c.l.b16 %v804
    %v3209 = vunpack.c.l.b16 %v805
    %v3210 = vunpack.c.l.b16 %v806
    %v3211 = vunpack.c.l.b16 %v807
    %v3212 = vunpack.c.l.b16 %v808
    %v3213 = vunpack.c.l.b16 %v809
    %v3214 = vunpack.c.l.b16 %v810
    %v3215 = vunpack.c.l.b16 %v811
    %v3216 = vunpack.c.l.b16 %v812
    %v3217 = vunpack.c.l.b16 %v813
    %v3218 = vunpack.c.l.b16 %v814
    %v3219 = vunpack.c.l.b16 %v815
    %v3220 = vunpack.c.l.b16 %v816
    %v3221 = vunpack.c.l.b16 %v817
    %v3222 = vunpack.c.l.b16 %v818
    %v3223 = vunpack.c.l.b16 %v819
    %v3224 = vunpack.c.l.b16 %v820
    %v3225 = vunpack.c.l.b16 %v821
    %v3226 = vunpack.c.l.b16 %v822
    %v3227 = vunpack.c.l.b16 %v823
    %v3228 = vunpack.c.l.b16 %v824
    %v3229 = vunpack.c.l.b16 %v825
    %v3230 = vunpack.c.l.b16 %v826
    %v3231 = vunpack.c.l.b16 %v827
    %v3232 = vunpack.c.l.b16 %v828
    %v3233 = vunpack.c.l.b16 %v829
    %v3234 = vunpack.c.l.b16 %v830
    %v3235 = vunpack.c.l.b16 %v831
    %v3236 = vunpack.c.l.b16 %v832
    %v3237 = vunpack.c.l.b16 %v833
    %v3238 = vunpack.c.l.b16 %v834
    %v3239 = vunpack.c.l.b16 %v835
    %v3240 = vunpack.c.l.b16 %v836
    %v3241 = vunpack.c.l.b16 %v837
    %v3242 = vunpack.c.l.b16 %v838
    %v3243 = vunpack.c.l.b16 %v839
    %v3244 = vunpack.c.l.b16 %v840
    %v3245 = vunpack.c.l.b16 %v841
    %v3246 = vunpack.c.l.b16 %v842
    %v3247 = vunpack.c.l.b16 %v843
    %v3248 = vunpack.c.l.b16 %v844
    %v3249 = vunpack.c.l.b16 %v845
    %v3250 = vunpack.c.l.b16 %v846
    %v3251 = vunpack.c.l.b16 %v847
    %v3252 = vunpack.c.l.b16 %v848
    %v3253 = vunpack.c.l.b16 %v849
    %v3254 = vunpack.c.l.b16 %v850
    %v3255 = vunpack.c.l.b16 %v851
    %v3256 = vunpack.c.l.b16 %v852
    %v3257 = vunpack.c.l.b16 %v853
    %v3258 = vunpack.c.l.b16 %v854
    %v3259 = vunpack.c.l.b16 %v855
    %v3260 = vunpack.c.l.b16 %v856
    %v3261 = vunpack.c.l.b16 %v857
    %v3262 = vunpack.c.l.b16 %v858
    %v3263 = vunpack.c.l.b16 %v859
    %v3264 = vunpack.c.l.b16 %v860
    %v3265 = vunpack.c.l.b16 %v861
    %v3266 = vunpack.c.l.b16 %v862
    %v3267 = vunpack.c.l.b16 %v863
    %v3268 = vunpack.c.l.b16 %v864
    %v3269 = vunpack.c.l.b16 %v865
    %v3270 = vunpack.c.l.b16 %v866
    %v3271 = vunpack.c.l.b16 %v867
    %v3272 = vunpack.c.l.b16 %v868
    %v3273 = vunpack.c.l.b16 %v869
    %v3274 = vunpack.c.l.b16 %v870
    %v3275 = vunpack.c.l.b16 %v871
    %v3276 = vunpack.c.l.b16 %v872
    %v3277 = vunpack.c.l.b16 %v873
    %v3278 = vunpack.c.l.b16 %v874
    %v3279 = vunpack.c.l.b16 %v875
    %v3280 = vunpack.c.l.b16 %v876
    %v3281 = vunpack.c.l.b16 %v877
    %v3282 = vunpack.c.l.b16 %v878
    %v3283 = vunpack.c.l.b16 %v879
    %v3284 = vunpack.c.l.b16 %v880
    %v3285 = vunpack.c.l.b16 %v881
    %v3286 = vunpack.c.l.b16 %v882
    %v3287 = vunpack.c.l.b16 %v883
    %v3288 = vunpack.c.l.b16 %v884
    %v3289 = vunpack.c.l.b16 %v885
    %v3290 = vunpack.c.l.b16 %v886
    %v3291 = vunpack.c.l.b16 %v887
    %v3292 = vunpack.c.l.b16 %v888
    %v3293 = vunpack.c.l.b16 %v889
    %v3294 = vunpack.c.l.b16 %v890
    %v3295 = vunpack.c.l.b16 %v891
    %v3296 = vunpack.c.l.b16 %v892
    %v3297 = vunpack.c.l.b16 %v893
    %v3298 = vunpack.c.l.b16 %v894
    %v3299 = vunpack.c.l.b16 %v895
    %v3300 = vunpack.c.l.b16 %v896
    %v3301 = vunpack.c.l.b16 %v897
    %v3302 = vunpack.c.l.b16 %v898
    %v3303 = vunpack.c.l.b16 %v899
    %v3304 = vunpack.c.l.b16 %v900
    %v3305 = vunpack.c.l.b16 %v901
    %v3306 = vunpack.c.l.b16 %v902
    %v3307 = vunpack.c.l.b16 %v903
    %v3308 = vunpack.c.l.b16 %v904
    %v3309 = vunpack.c.l.b16 %v905
    %v3310 = vunpack.c.l.b16 %v906
    %v3311 = vunpack.c.l.b16 %v907
    %v3312 = vunpack.c.l.b16 %v908
    %v3313 = vunpack.c.l.b16 %v909
    %v3314 = vunpack.c.l.b16 %v910
    %v3315 = vunpack.c.l.b16 %v911
    %v3316 = vunpack.c.l.b16 %v912
    %v3317 = vunpack.c.l.b16 %v913
    %v3318 = vunpack.c.l.b16 %v914
    %v3319 = vunpack.c.l.b16 %v915
    %v3320 = vunpack.c.l.b16 %v916
    %v3321 = vunpack.c.l.b16 %v917
    %v3322 = vunpack.c.l.b16 %v918
    %v3323 = vunpack.c.l.b16 %v919
    %v3324 = vunpack.c.l.b16 %v920
    %v3325 = vunpack.c.l.b16 %v921
    %v3326 = vunpack.c.l.b16 %v922
    %v3327 = vunpack.c.l.b16 %v923
    %v3328 = vunpack.c.l.b16 %v924
    %v3329 = vunpack.c.l.b16 %v925
    %v3330 = vunpack.c.l.b16 %v926
    %v3331 = vunpack.c.l.b16 %v927
    %v3332 = vunpack.c.l.b16 %v928
    %v3333 = vunpack.c.l.b16 %v929
    %v3334 = vunpack.c.l.b16 %v930
    %v3335 = vunpack.c.l.b16 %v931
    %v3336 = vunpack.c.l.b16 %v932
    %v3337 = vunpack.c.l.b16 %v933
    %v3338 = vunpack.c.l.b16 %v934
    %v3339 = vunpack.c.l.b16 %v935
    %v3340 = vunpack.c.l.b16 %v936
    %v3341 = vunpack.c.l.b16 %v937
    %v3342 = vunpack.c.l.b16 %v938
    %v3343 = vunpack.c.l.b16 %v939
    %v3344 = vunpack.c.l.b16 %v940
    %v3345 = vunpack.c.l.b16 %v941
    %v3346 = vunpack.c.l.b16 %v942
    %v3347 = vunpack.c.l.b16 %v943
    %v3348 = vunpack.c.l.b16 %v944
    %v3349 = vunpack.c.l.b16 %v945
    %v3350 = vunpack.c.l.b16 %v946
    %v3351 = vunpack.c.l.b16 %v947
    %v3352 = vunpack.c.l.b16 %v948
    %v3353 = vunpack.c.l.b16 %v949
    %v3354 = vunpack.c.l.b16 %v950
    %v3355 = vunpack.c.l.b16 %v951
    %v3356 = vunpack.c.l.b16 %v952
    %v3357 = vunpack.c.l.b16 %v953
    %v3358 = vunpack.c.l.b16 %v954
    %v3359 = vunpack.c.l.b16 %v955
    %v3360 = vunpack.c.l.b16 %v956
    %v3361 = vunpack.c.l.b16 %v957
    %v3362 = vunpack.c.l.b16 %v958
    %v3363 = vunpack.c.l.b16 %v959
    %v3364 = vunpack.c.l.b16 %v960
    %v3365 = vunpack.c.l.b16 %v961
    %v3366 = vunpack.c.l.b16 %v962
    %v3367 = vunpack.c.l.b16 %v963
    %v3368 = vunpack.c.l.b16 %v964
    %v3369 = vunpack.c.l.b16 %v965
    %v3370 = vunpack.c.l.b16 %v966
    %v3371 = vunpack.c.l.b16 %v967
    %v3372 = vunpack.c.l.b16 %v968
    %v3373 = vunpack.c.l.b16 %v969
    %v3374 = vunpack.c.l.b16 %v970
    %v3375 = vunpack.c.l.b16 %v971
    %v3376 = vunpack.c.l.b16 %v972
    %v3377 = vunpack.c.l.b16 %v973
    %v3378 = vunpack.c.l.b16 %v974
    %v3379 = vunpack.c.l.b16 %v975
    %v3380 = vunpack.c.l.b16 %v976
    %v3381 = vunpack.c.l.b16 %v977
    %v3382 = vunpack.c.l.b16 %v978
    %v3383 = vunpack.c.l.b16 %v979
    %v3384 = vunpack.c.l.b16 %v980
    %v3385 = vunpack.c.l.b16 %v981
    %v3386 = vunpack.c.l.b16 %v982
    %v3387 = vunpack.c.l.b16 %v983
    %v3388 = vunpack.c.l.b16 %v984
    %v3389 = vunpack.c.l.b16 %v985
    %v3390 = vunpack.c.l.b16 %v986
    %v3391 = vunpack.c.l.b16 %v987
    %v3392 = vunpack.c.l.b16 %v988
    %v3393 = vunpack.c.l.b16 %v989
    %v3394 = vunpack.c.l.b16 %v990
    %v3395 = vunpack.c.l.b16 %v991
    %v3396 = vunpack.c.l.b16 %v992
    %v3397 = vunpack.c.l.b16 %v993
    %v3398 = vunpack.c.l.b16 %v994
    %v3399 = vunpack.c.l.b16 %v995
    %v3400 = vunpack.c.l.b16 %v996
    %v3401 = vunpack.c.l.b16 %v997
    %v3402 = vunpack.c.l.b16 %v998
    %v3403 = vunpack.c.l.b16 %v999
    %v3404 = vunpack.c.l.b16 %v1000
    %v3405 = vunpack.c.l.b16 %v1001
    %v3406 = vunpack.c.l.b16 %v1002
    %v3407 = vunpack.c.l.b16 %v1003
    %v3408 = vunpack.c.l.b16 %v1004
    %v3409 = vunpack.c.l.b16 %v1005
    %v3410 = vunpack.c.l.b16 %v1006
    %v3411 = vunpack.c.l.b16 %v1007
    %v3412 = vunpack.c.l.b16 %v1008
    %v3413 = vunpack.c.l.b16 %v1009
    %v3414 = vunpack.c.l.b16 %v1010
    %v3415 = vunpack.c.l.b16 %v1011
    %v3416 = vunpack.c.l.b16 %v1012
    %v3417 = vunpack.c.l.b16 %v1013
    %v3418 = vunpack.c.l.b16 %v1014
    %v3419 = vunpack.c.l.b16 %v1015
    %v3420 = vunpack.c.l.b16 %v1016
    %v3421 = vunpack.c.l.b16 %v1017
    %v3422 = vunpack.c.l.b16 %v1018
    %v3423 = vunpack.c.l.b16 %v1019
    %v3424 = vunpack.c.l.b16 %v1020
    %v3425 = vunpack.c.l.b16 %v1021
    %v3426 = vunpack.c.l.b16 %v1022
    %v3427 = vunpack.c.l.b16 %v1023
    %v3428 = vunpack.c.l.b16 %v1024
    %v3429 = vunpack.c.l.b16 %v1025
    %v3430 = vunpack.c.l.b16 %v1026
    %v3431 = vunpack.c.l.b16 %v1027
    %v3432 = vunpack.c.l.b16 %v1028
    %v3433 = vunpack.c.l.b16 %v1029
    %v3434 = vunpack.c.l.b16 %v1030
    %v3435 = vunpack.c.l.b16 %v1031
    %v3436 = vunpack.c.l.b16 %v1032
    %v3437 = vunpack.c.l.b16 %v1033
    %v3438 = vunpack.c.l.b16 %v1034
    %v3439 = vunpack.c.l.b16 %v1035
    %v3440 = vunpack.c.l.b16 %v1036
    %v3441 = vunpack.c.l.b16 %v1037
    %v3442 = vunpack.c.l.b16 %v1038
    %v3443 = vunpack.c.l.b16 %v1039
    %v3444 = vunpack.c.l.b16 %v1040
    %v3445 = vunpack.c.l.b16 %v1041
    %v3446 = vunpack.c.l.b16 %v1042
    %v3447 = vunpack.c.l.b16 %v1043
    %v3448 = vunpack.c.l.b16 %v1044
    %v3449 = vunpack.c.l.b16 %v1045
    %v3450 = vunpack.c.l.b16 %v1046
    %v3451 = vunpack.c.l.b16 %v1047
    %v3452 = vunpack.c.l.b16 %v1048
    %v3453 = vunpack.c.l.b16 %v1049
    %v3454 = vunpack.c.l.b16 %v1050
    %v3455 = vunpack.c.l.b16 %v1051
    %v3456 = vunpack.c.l.b16 %v1052
    %v3457 = vunpack.c.l.b16 %v1053
    %v3458 = vunpack.c.l.b16 %v1054
    %v3459 = vunpack.c.l.b16 %v1055
    %v3460 = vunpack.c.l.b16 %v1056
    %v3461 = vunpack.c.l.b16 %v1057
    %v3462 = vunpack.c.l.b16 %v1058
    %v3463 = vunpack.c.l.b16 %v1059
    %v3464 = vunpack.c.l.b16 %v1060
    %v3465 = vunpack.c.l.b16 %v1061
    %v3466 = vunpack.c.l.b16 %v1062
    %v3467 = vunpack.c.l.b16 %v1063
    %v3468 = vunpack.c.l.b16 %v1064
    %v3469 = vunpack.c.l.b16 %v1065
    %v3470 = vunpack.c.l.b16 %v1066
    %v3471 = vunpack.c.l.b16 %v1067
    %v3472 = vunpack.c.l.b16 %v1068
    %v3473 = vunpack.c.l.b16 %v1069
    %v3474 = vunpack.c.l.b16 %v1070
    %v3475 = vunpack.c.l.b16 %v1071
    %v3476 = vunpack.c.l.b16 %v1072
    %v3477 = vunpack.c.l.b16 %v1073
    %v3478 = vunpack.c.l.b16 %v1074
    %v3479 = vunpack.c.l.b16 %v1075
    %v3480 = vunpack.c.l.b16 %v1076
    %v3481 = vunpack.c.l.b16 %v1077
    %v3482 = vunpack.c.l.b16 %v1078
    %v3483 = vunpack.c.l.b16 %v1079
    %v3484 = vunpack.c.l.b16 %v1080
    %v3485 = vunpack.c.l.b16 %v1081
    %v3486 = vunpack.c.l.b16 %v1082
    %v3487 = vunpack.c.l.b16 %v1083
    %v3488 = vunpack.c.l.b16 %v1084
    %v3489 = vunpack.c.l.b16 %v1085
    %v3490 = vunpack.c.l.b16 %v1086
    %v3491 = vunpack.c.l.b16 %v1087
    %v3492 = vunpack.c.l.b16 %v1088
    %v3493 = vunpack.c.l.b16 %v1089
    %v3494 = vunpack.c.l.b16 %v1090
    %v3495 = vunpack.c.l.b16 %v1091
    %v3496 = vunpack.c.l.b16 %v1092
    %v3497 = vunpack.c.l.b16 %v1093
    %v3498 = vunpack.c.l.b16 %v1094
    %v3499 = vunpack.c.l.b16 %v1095
    %v3500 = vunpack.c.l.b16 %v1096
    %v3501 = vunpack.c.l.b16 %v1097
    %v3502 = vunpack.c.l.b16 %v1098
    %v3503 = vunpack.c.l.b16 %v1099
    %v3504 = vunpack.c.l.b16 %v1100
    %v3505 = vunpack.c.l.b16 %v1101
    %v3506 = vunpack.c.l.b16 %v1102
    %v3507 = vunpack.c.l.b16 %v1103
    %v3508 = vunpack.c.l.b16 %v1104
    %v3509 = vunpack.c.l.b16 %v1105
    %v3510 = vunpack.c.l.b16 %v1106
    %v3511 = vunpack.c.l.b16 %v1107
    %v3512 = vunpack.c.l.b16 %v1108
    %v3513 = vunpack.c.l.b16 %v1109
    %v3514 = vunpack.c.l.b16 %v1110
    %v3515 = vunpack.c.l.b16 %v1111
    %v3516 = vunpack.c.l.b16 %v1112
    %v3517 = vunpack.c.l.b16 %v1113
    %v3518 = vunpack.c.l.b16 %v1114
    %v3519 = vunpack.c.l.b16 %v1115
    %v3520 = vunpack.c.l.b16 %v1116
    %v3521 = vunpack.c.l.b16 %v1117
    %v3522 = vunpack.c.l.b16 %v1118
    %v3523 = vunpack.c.l.b16 %v1119
    %v3524 = vunpack.c.l.b16 %v1120
    %v3525 = vunpack.c.l.b16 %v1121
    %v3526 = vunpack.c.l.b16 %v1122
    %v3527 = vunpack.c.l.b16 %v1123
    %v3528 = vunpack.c.l.b16 %v1124
    %v3529 = vunpack.c.l.b16 %v1125
    %v3530 = vunpack.c.l.b16 %v1126
    %v3531 = vunpack.c.l.b16 %v1127
    %v3532 = vunpack.c.l.b16 %v1128
    %v3533 = vunpack.c.l.b16 %v1129
    %v3534 = vunpack.c.l.b16 %v1130
    %v3535 = vunpack.c.l.b16 %v1131
    %v3536 = vunpack.c.l.b16 %v1132
    %v3537 = vunpack.c.l.b16 %v1133
    %v3538 = vunpack.c.l.b16 %v1134
    %v3539 = vunpack.c.l.b16 %v1135
    %v3540 = vunpack.c.l.b16 %v1136
    %v3541 = vunpack.c.l.b16 %v1137
    %v3542 = vunpack.c.l.b16 %v1138
    %v3543 = vunpack.c.l.b16 %v1139
    %v3544 = vunpack.c.l.b16 %v1140
    %v3545 = vunpack.c.l.b16 %v1141
    %v3546 = vunpack.c.l.b16 %v1142
    %v3547 = vunpack.c.l.b16 %v1143
    %v3548 = vunpack.c.l.b16 %v1144
    %v3549 = vunpack.c.l.b16 %v1145
    %v3550 = vunpack.c.l.b16 %v1146
    %v3551 = vunpack.c.l.b16 %v1147
    %v3552 = vunpack.c.l.b16 %v1148
    %v3553 = vunpack.c.l.b16 %v1149
    %v3554 = vunpack.c.l.b16 %v1150
    %v3555 = vunpack.c.l.b16 %v1151
    %v3556 = vunpack.c.l.b16 %v1152
    %v3557 = vunpack.c.l.b16 %v1153
    %v3558 = vunpack.c.l.b16 %v1154
    %v3559 = vunpack.c.l.b16 %v1155
    %v3560 = vunpack.c.l.b16 %v1156
    %v3561 = vunpack.c.l.b16 %v1157
    %v3562 = vunpack.c.l.b16 %v1158
    %v3563 = vunpack.c.l.b16 %v1159
    %v3564 = vunpack.c.l.b16 %v1160
    %v3565 = vunpack.c.l.b16 %v1161
    %v3566 = vunpack.c.l.b16 %v1162
    %v3567 = vunpack.c.l.b16 %v1163
    %v3568 = vunpack.c.l.b16 %v1164
    %v3569 = vunpack.c.l.b16 %v1165
    %v3570 = vunpack.c.l.b16 %v1166
    %v3571 = vunpack.c.l.b16 %v1167
    %v3572 = vunpack.c.l.b16 %v1168
    %v3573 = vunpack.c.l.b16 %v1169
    %v3574 = vunpack.c.l.b16 %v1170
    %v3575 = vunpack.c.l.b16 %v1171
    %v3576 = vunpack.c.l.b16 %v1172
    %v3577 = vunpack.c.l.b16 %v1173
    %v3578 = vunpack.c.l.b16 %v1174
    %v3579 = vunpack.c.l.b16 %v1175
    %v3580 = vunpack.c.l.b16 %v1176
    %v3581 = vunpack.c.l.b16 %v1177
    %v3582 = vunpack.c.l.b16 %v1178
    %v3583 = vunpack.c.l.b16 %v1179
    %v3584 = vunpack.c.l.b16 %v1180
    %v3585 = vunpack.c.l.b16 %v1181
    %v3586 = vunpack.c.l.b16 %v1182
    %v3587 = vunpack.c.l.b16 %v1183
    %v3588 = vunpack.c.l.b16 %v1184
    %v3589 = vunpack.c.l.b16 %v1185
    %v3590 = vunpack.c.l.b16 %v1186
    %v3591 = vunpack.c.l.b16 %v1187
    %v3592 = vunpack.c.l.b16 %v1188
    %v3593 = vunpack.c.l.b16 %v1189
    %v3594 = vunpack.c.l.b16 %v1190
    %v3595 = vunpack.c.l.b16 %v1191
    %v3596 = vunpack.c.l.b16 %v1192
    %v3597 = vunpack.c.l.b16 %v1193
    %v3598 = vunpack.c.l.b16 %v1194
    %v3599 = vunpack.c.l.b16 %v1195
    %v3600 = vunpack.c.l.b16 %v1196
    %v3601 = vunpack.c.l.b16 %v1197
    %v3602 = vunpack.c.l.b16 %v1198
    %v3603 = vunpack.c.l.b16 %v1199
    %v3604 = vunpack.c.l.b16 %v1200
    %v3605 = vunpack.c.l.b16 %v1201
    %v3606 = vunpack.c.l.b16 %v1202
    %v3607 = vunpack.c.l.b16 %v1203
    %v3608 = vunpack.c.l.b16 %v1204
    %v3609 = vunpack.c.l.b16 %v1205
    %v3610 = vunpack.c.l.b16 %v1206
    %v3611 = vunpack.c.l.b16 %v1207
    %v3612 = vunpack.c.l.b16 %v1208
    %v3613 = vunpack.c.l.b16 %v1209
    %v3614 = vunpack.c.l.b16 %v1210
    %v3615 = vunpack.c.l.b16 %v1211
    %v3616 = vunpack.c.l.b16 %v1212
    %v3617 = vunpack.c.l.b16 %v1213
    %v3618 = vunpack.c.l.b16 %v1214
    %v3619 = vunpack.c.l.b16 %v1215
    %v3620 = vunpack.c.l.b16 %v1216
    %v3621 = vunpack.c.l.b16 %v1217
    %v3622 = vunpack.c.l.b16 %v1218
    %v3623 = vunpack.c.l.b16 %v1219
    %v3624 = vunpack.c.l.b16 %v1220
    %v3625 = vunpack.c.l.b16 %v1221
    %v3626 = vunpack.c.l.b16 %v1222
    %v3627 = vunpack.c.l.b16 %v1223
    %v3628 = vunpack.c.l.b16 %v1224
    %v3629 = vunpack.c.l.b16 %v1225
    %v3630 = vunpack.c.l.b16 %v1226
    %v3631 = vunpack.c.l.b16 %v1227
    %v3632 = vunpack.c.l.b16 %v1228
    %v3633 = vunpack.c.l.b16 %v1229
    %v3634 = vunpack.c.l.b16 %v1230
    %v3635 = vunpack.c.l.b16 %v1231
    %v3636 = vunpack.c.l.b16 %v1232
    %v3637 = vunpack.c.l.b16 %v1233
    %v3638 = vunpack.c.l.b16 %v1234
    %v3639 = vunpack.c.l.b16 %v1235
    %v3640 = vunpack.c.l.b16 %v1236
    %v3641 = vunpack.c.l.b16 %v1237
    %v3642 = vunpack.c.l.b16 %v1238
    %v3643 = vunpack.c.l.b16 %v1239
    %v3644 = vunpack.c.l.b16 %v1240
    %v3645 = vunpack.c.l.b16 %v1241
    %v3646 = vunpack.c.l.b16 %v1242
    %v3647 = vunpack.c.l.b16 %v1243
    %v3648 = vunpack.c.l.b16 %v1244
    %v3649 = vunpack.c.l.b16 %v1245
    %v3650 = vunpack.c.l.b16 %v1246
    %v3651 = vunpack.c.l.b16 %v1247
    %v3652 = vunpack.c.l.b16 %v1248
    %v3653 = vunpack.c.l.b16 %v1249
    %v3654 = vunpack.c.l.b16 %v1250
    %v3655 = vunpack.c.l.b16 %v1251
    %v3656 = vunpack.c.l.b16 %v1252
    %v3657 = vunpack.c.l.b16 %v1253
    %v3658 = vunpack.c.l.b16 %v1254
    %v3659 = vunpack.c.l.b16 %v1255
    %v3660 = vunpack.c.l.b16 %v1256
    %v3661 = vunpack.c.l.b16 %v1257
    %v3662 = vunpack.c.l.b16 %v1258
    %v3663 = vunpack.c.l.b16 %v1259
    %v3664 = vunpack.c.l.b16 %v1260
    %v3665 = vunpack.c.l.b16 %v1261
    %v3666 = vunpack.c.l.b16 %v1262
    %v3667 = vunpack.c.l.b16 %v1263
    %v3668 = vunpack.c.l.b16 %v1264
    %v3669 = vunpack.c.l.b16 %v1265
    %v3670 = vunpack.c.l.b16 %v1266
    %v3671 = vunpack.c.l.b16 %v1267
    %v3672 = vunpack.c.l.b16 %v1268
    %v3673 = vunpack.c.l.b16 %v1269
    %v3674 = vunpack.c.l.b16 %v1270
    %v3675 = vunpack.c.l.b16 %v1271
    %v3676 = vunpack.c.l.b16 %v1272
    %v3677 = vunpack.c.l.b16 %v1273
    %v3678 = vunpack.c.l.b16 %v1274
    %v3679 = vunpack.c.l.b16 %v1275
    %v3680 = vunpack.c.l.b16 %v1276
    %v3681 = vunpack.c.l.b16 %v1277
    %v3682 = vunpack.c.l.b16 %v1278
    %v3683 = vunpack.c.l.b16 %v1279
    %v3684 = vunpack.c.l.b16 %v1280
    %v3685 = vunpack.c.l.b16 %v1281
    %v3686 = vunpack.c.l.b16 %v1282
    %v3687 = vunpack.c.l.b16 %v1283
    %v3688 = vunpack.c.l.b16 %v1284
    %v3689 = vunpack.c.l.b16 %v1285
    %v3690 = vunpack.c.l.b16 %v1286
    %v3691 = vunpack.c.l.b16 %v1287
    %v3692 = vunpack.c.l.b16 %v1288
    %v3693 = vunpack.c.l.b16 %v1289
    %v3694 = vunpack.c.l.b16 %v1290
    %v3695 = vunpack.c.l.b16 %v1291
    %v3696 = vunpack.c.l.b16 %v1292
    %v3697 = vunpack.c.l.b16 %v1293
    %v3698 = vunpack.c.l.b16 %v1294
    %v3699 = vunpack.c.l.b16 %v1295
    %v3700 = vunpack.c.l.b16 %v1296
    %v3701 = vunpack.c.l.b16 %v1297
    %v3702 = vunpack.c.l.b16 %v1298
    %v3703 = vunpack.c.l.b16 %v1299
    %v3704 = vunpack.c.l.b16 %v1300
    %v3705 = vunpack.c.l.b16 %v1301
    %v3706 = vunpack.c.l.b16 %v1302
    %v3707 = vunpack.c.l.b16 %v1303
    %v3708 = vunpack.c.l.b16 %v1304
    %v3709 = vunpack.c.l.b16 %v1305
    %v3710 = vunpack.c.l.b16 %v1306
    %v3711 = vunpack.c.l.b16 %v1307
    %v3712 = vunpack.c.l.b16 %v1308
    %v3713 = vunpack.c.l.b16 %v1309
    %v3714 = vunpack.c.l.b16 %v1310
    %v3715 = vunpack.c.l.b16 %v1311
    %v3716 = vunpack.c.l.b16 %v1312
    %v3717 = vunpack.c.l.b16 %v1313
    %v3718 = vunpack.c.l.b16 %v1314
    %v3719 = vunpack.c.l.b16 %v1315
    %v3720 = vunpack.c.l.b16 %v1316
    %v3721 = vunpack.c.l.b16 %v1317
    %v3722 = vunpack.c.l.b16 %v1318
    %v3723 = vunpack.c.l.b16 %v1319
    %v3724 = vunpack.c.l.b16 %v1320
    %v3725 = vunpack.c.l.b16 %v1321
    %v3726 = vunpack.c.l.b16 %v1322
    %v3727 = vunpack.c.l.b16 %v1323
    %v3728 = vunpack.c.l.b16 %v1324
    %v3729 = vunpack.c.l.b16 %v1325
    %v3730 = vunpack.c.l.b16 %v1326
    %v3731 = vunpack.c.l.b16 %v1327
    %v3732 = vunpack.c.l.b16 %v1328
    %v3733 = vunpack.c.l.b16 %v1329
    %v3734 = vunpack.c.l.b16 %v1330
    %v3735 = vunpack.c.l.b16 %v1331
    %v3736 = vunpack.c.l.b16 %v1332
    %v3737 = vunpack.c.l.b16 %v1333
    %v3738 = vunpack.c.l.b16 %v1334
    %v3739 = vunpack.c.l.b16 %v1335
    %v3740 = vunpack.c.l.b16 %v1336
    %v3741 = vunpack.c.l.b16 %v1337
    %v3742 = vunpack.c.l.b16 %v1338
    %v3743 = vunpack.c.l.b16 %v1339
    %v3744 = vunpack.c.l.b16 %v1340
    %v3745 = vunpack.c.l.b16 %v1341
    %v3746 = vunpack.c.l.b16 %v1342
    %v3747 = vunpack.c.l.b16 %v1343
    %v3748 = vunpack.c.l.b16 %v1344
    %v3749 = vunpack.c.l.b16 %v1345
    %v3750 = vunpack.c.l.b16 %v1346
    %v3751 = vunpack.c.l.b16 %v1347
    %v3752 = vunpack.c.l.b16 %v1348
    %v3753 = vunpack.c.l.b16 %v1349
    %v3754 = vunpack.c.l.b16 %v1350
    %v3755 = vunpack.c.l.b16 %v1351
    %v3756 = vunpack.c.l.b16 %v1352
    %v3757 = vunpack.c.l.b16 %v1353
    %v3758 = vunpack.c.l.b16 %v1354
    %v3759 = vunpack.c.l.b16 %v1355
    %v3760 = vunpack.c.l.b16 %v1356
    %v3761 = vunpack.c.l.b16 %v1357
    %v3762 = vunpack.c.l.b16 %v1358
    %v3763 = vunpack.c.l.b16 %v1359
    %v3764 = vunpack.c.l.b16 %v1360
    %v3765 = vunpack.c.l.b16 %v1361
    %v3766 = vunpack.c.l.b16 %v1362
    %v3767 = vunpack.c.l.b16 %v1363
    %v3768 = vunpack.c.l.b16 %v1364
    %v3769 = vunpack.c.l.b16 %v1365
    %v3770 = vunpack.c.l.b16 %v1366
    %v3771 = vunpack.c.l.b16 %v1367
    %v3772 = vunpack.c.l.b16 %v1368
    %v3773 = vunpack.c.l.b16 %v1369
    %v3774 = vunpack.c.l.b16 %v1370
    %v3775 = vunpack.c.l.b16 %v1371
    %v3776 = vunpack.c.l.b16 %v1372
    %v3777 = vunpack.c.l.b16 %v1373
    %v3778 = vunpack.c.l.b16 %v1374
    %v3779 = vunpack.c.l.b16 %v1375
    %v3780 = vunpack.c.l.b16 %v1376
    %v3781 = vunpack.c.l.b16 %v1377
    %v3782 = vunpack.c.l.b16 %v1378
    %v3783 = vunpack.c.l.b16 %v1379
    %v3784 = vunpack.c.l.b16 %v1380
    %v3785 = vunpack.c.l.b16 %v1381
    %v3786 = vunpack.c.l.b16 %v1382
    %v3787 = vunpack.c.l.b16 %v1383
    %v3788 = vunpack.c.l.b16 %v1384
    %v3789 = vunpack.c.l.b16 %v1385
    %v3790 = vunpack.c.l.b16 %v1386
    %v3791 = vunpack.c.l.b16 %v1387
    %v3792 = vunpack.c.l.b16 %v1388
    %v3793 = vunpack.c.l.b16 %v1389
    %v3794 = vunpack.c.l.b16 %v1390
    %v3795 = vunpack.c.l.b16 %v1391
    %v3796 = vunpack.c.l.b16 %v1392
    %v3797 = vunpack.c.l.b16 %v1393
    %v3798 = vunpack.c.l.b16 %v1394
    %v3799 = vunpack.c.l.b16 %v1395
    %v3800 = vunpack.c.l.b16 %v1396
    %v3801 = vunpack.c.l.b16 %v1397
    %v3802 = vunpack.c.l.b16 %v1398
    %v3803 = vunpack.c.l.b16 %v1399
    %v3804 = vunpack.c.l.b16 %v1400
    %v3805 = vunpack.c.l.b16 %v1401
    %v3806 = vunpack.c.l.b16 %v1402
    %v3807 = vunpack.c.l.b16 %v1403
    %v3808 = vunpack.c.l.b16 %v1404
    %v3809 = vunpack.c.l.b16 %v1405
    %v3810 = vunpack.c.l.b16 %v1406
    %v3811 = vunpack.c.l.b16 %v1407
    %v3812 = vunpack.c.l.b16 %v1408
    %v3813 = vunpack.c.l.b16 %v1409
    %v3814 = vunpack.c.l.b16 %v1410
    %v3815 = vunpack.c.l.b16 %v1411
    %v3816 = vunpack.c.l.b16 %v1412
    %v3817 = vunpack.c.l.b16 %v1413
    %v3818 = vunpack.c.l.b16 %v1414
    %v3819 = vunpack.c.l.b16 %v1415
    %v3820 = vunpack.c.l.b16 %v1416
    %v3821 = vunpack.c.l.b16 %v1417
    %v3822 = vunpack.c.l.b16 %v1418
    %v3823 = vunpack.c.l.b16 %v1419
    %v3824 = vunpack.c.l.b16 %v1420
    %v3825 = vunpack.c.l.b16 %v1421
    %v3826 = vunpack.c.l.b16 %v1422
    %v3827 = vunpack.c.l.b16 %v1423
    %v3828 = vunpack.c.l.b16 %v1424
    %v3829 = vunpack.c.l.b16 %v1425
    %v3830 = vunpack.c.l.b16 %v1426
    %v3831 = vunpack.c.l.b16 %v1427
    %v3832 = vunpack.c.l.b16 %v1428
    %v3833 = vunpack.c.l.b16 %v1429
    %v3834 = vunpack.c.l.b16 %v1430
    %v3835 = vunpack.c.l.b16 %v1431
    %v3836 = vunpack.c.l.b16 %v1432
    %v3837 = vunpack.c.l.b16 %v1433
    %v3838 = vunpack.c.l.b16 %v1434
    %v3839 = vunpack.c.l.b16 %v1435
    %v3840 = vunpack.c.l.b16 %v1436
    %v3841 = vunpack.c.l.b16 %v1437
    %v3842 = vunpack.c.l.b16 %v1438
    %v3843 = vunpack.c.l.b16 %v1439
    %v3844 = vunpack.c.l.b16 %v1440
    %v3845 = vunpack.c.l.b16 %v1441
    %v3846 = vunpack.c.l.b16 %v1442
    %v3847 = vunpack.c.l.b16 %v1443
    %v3848 = vunpack.c.l.b16 %v1444
    %v3849 = vunpack.c.l.b16 %v1445
    %v3850 = vunpack.c.l.b16 %v1446
    %v3851 = vunpack.c.l.b16 %v1447
    %v3852 = vunpack.c.l.b16 %v1448
    %v3853 = vunpack.c.l.b16 %v1449
    %v3854 = vunpack.c.l.b16 %v1450
    %v3855 = vunpack.c.l.b16 %v1451
    %v3856 = vunpack.c.l.b16 %v1452
    %v3857 = vunpack.c.l.b16 %v1453
    %v3858 = vunpack.c.l.b16 %v1454
    %v3859 = vunpack.c.l.b16 %v1455
    %v3860 = vunpack.c.l.b16 %v1456
    %v3861 = vunpack.c.l.b16 %v1457
    %v3862 = vunpack.c.l.b16 %v1458
    %v3863 = vunpack.c.l.b16 %v1459
    %v3864 = vunpack.c.l.b16 %v1460
    %v3865 = vunpack.c.l.b16 %v1461
    %v3866 = vunpack.c.l.b16 %v1462
    %v3867 = vunpack.c.l.b16 %v1463
    %v3868 = vunpack.c.l.b16 %v1464
    %v3869 = vunpack.c.l.b16 %v1465
    %v3870 = vunpack.c.l.b16 %v1466
    %v3871 = vunpack.c.l.b16 %v1467
    %v3872 = vunpack.c.l.b16 %v1468
    %v3873 = vunpack.c.l.b16 %v1469
    %v3874 = vunpack.c.l.b16 %v1470
    %v3875 = vunpack.c.l.b16 %v1471
    %v3876 = vunpack.c.l.b16 %v1472
    %v3877 = vunpack.c.l.b16 %v1473
    %v3878 = vunpack.c.l.b16 %v1474
    %v3879 = vunpack.c.l.b16 %v1475
    %v3880 = vunpack.c.l.b16 %v1476
    %v3881 = vunpack.c.l.b16 %v1477
    %v3882 = vunpack.c.l.b16 %v1478
    %v3883 = vunpack.c.l.b16 %v1479
    %v3884 = vunpack.c.l.b16 %v1480
    %v3885 = vunpack.c.l.b16 %v1481
    %v3886 = vunpack.c.l.b16 %v1482
    %v3887 = vunpack.c.l.b16 %v1483
    %v3888 = vunpack.c.l.b16 %v1484
    %v3889 = vunpack.c.l.b16 %v1485
    %v3890 = vunpack.c.l.b16 %v1486
    %v3891 = vunpack.c.l.b16 %v1487
    %v3892 = vunpack.c.l.b16 %v1488
    %v3893 = vunpack.c.l.b16 %v1489
    %v3894 = vunpack.c.l.b16 %v1490
    %v3895 = vunpack.c.l.b16 %v1491
    %v3896 = vunpack.c.l.b16 %v1492
    %v3897 = vunpack.c.l.b16 %v1493
    %v3898 = vunpack.c.l.b16 %v1494
    %v3899 = vunpack.c.l.b16 %v1495
    %v3900 = vunpack.c.l.b16 %v1496
    %v3901 = vunpack.c.l.b16 %v1497
    %v3902 = vunpack.c.l.b16 %v1498
    %v3903 = vunpack.c.l.b16 %v1499
    %v3904 = vunpack.c.l.b16 %v1500
    %v3905 = vunpack.c.l.b16 %v1501
    %v3906 = vunpack.c.l.b16 %v1502
    %v3907 = vunpack.c.l.b16 %v1503
    %v3908 = vunpack.c.l.b16 %v1504
    %v3909 = vunpack.c.l.b16 %v1505
    %v3910 = vunpack.c.l.b16 %v1506
    %v3911 = vunpack.c.l.b16 %v1507
    %v3912 = vunpack.c.l.b16 %v1508
    %v3913 = vunpack.c.l.b16 %v1509
    %v3914 = vunpack.c.l.b16 %v1510
    %v3915 = vunpack.c.l.b16 %v1511
    %v3916 = vunpack.c.l.b16 %v1512
    %v3917 = vpack.c.b16 %v2718, %v2717
    %v3918 = vpack.c.b16 %v2720, %v2719
    %v3919 = vpack.c.b16 %v2722, %v2721
    %v3920 = vpack.c.b16 %v2724, %v2723
    %v3921 = vpack.c.b16 %v2726, %v2725
    %v3922 = vpack.c.b16 %v2728, %v2727
    %v3923 = vpack.c.b16 %v2730, %v2729
    %v3924 = vpack.c.b16 %v2732, %v2731
    %v3925 = vpack.c.b16 %v2734, %v2733
    %v3926 = vpack.c.b16 %v2736, %v2735
    %v3927 = vpack.c.b16 %v2738, %v2737
    %v3928 = vpack.c.b16 %v2740, %v2739
    %v3929 = vpack.c.b16 %v2742, %v2741
    %v3930 = vpack.c.b16 %v2744, %v2743
    %v3931 = vpack.c.b16 %v2746, %v2745
    %v3932 = vpack.c.b16 %v2748, %v2747
    %v3933 = vpack.c.b16 %v2750, %v2749
    %v3934 = vpack.c.b16 %v2752, %v2751
    %v3935 = vpack.c.b16 %v2754, %v2753
    %v3936 = vpack.c.b16 %v2756, %v2755
    %v3937 = vpack.c.b16 %v2758, %v2757
    %v3938 = vpack.c.b16 %v2760, %v2759
    %v3939 = vpack.c.b16 %v2762, %v2761
    %v3940 = vpack.c.b16 %v2764, %v2763
    %v3941 = vpack.c.b16 %v2766, %v2765
    %v3942 = vpack.c.b16 %v2768, %v2767
    %v3943 = vpack.c.b16 %v2770, %v2769
    %v3944 = vpack.c.b16 %v2772, %v2771
    %v3945 = vpack.c.b16 %v2774, %v2773
    %v3946 = vpack.c.b16 %v2776, %v2775
    %v3947 = vpack.c.b16 %v2778, %v2777
    %v3948 = vpack.c.b16 %v2780, %v2779
    %v3949 = vpack.c.b16 %v2782, %v2781
    %v3950 = vpack.c.b16 %v2784, %v2783
    %v3951 = vpack.c.b16 %v2786, %v2785
    %v3952 = vpack.c.b16 %v2788, %v2787
    %v3953 = vpack.c.b16 %v2790, %v2789
    %v3954 = vpack.c.b16 %v2792, %v2791
    %v3955 = vpack.c.b16 %v2794, %v2793
    %v3956 = vpack.c.b16 %v2796, %v2795
    %v3957 = vpack.c.b16 %v2798, %v2797
    %v3958 = vpack.c.b16 %v2800, %v2799
    %v3959 = vpack.c.b16 %v2802, %v2801
    %v3960 = vpack.c.b16 %v2804, %v2803
    %v3961 = vpack.c.b16 %v2806, %v2805
    %v3962 = vpack.c.b16 %v2808, %v2807
    %v3963 = vpack.c.b16 %v2810, %v2809
    %v3964 = vpack.c.b16 %v2812, %v2811
    %v3965 = vpack.c.b16 %v2814, %v2813
    %v3966 = vpack.c.b16 %v2816, %v2815
    %v3967 = vpack.c.b16 %v2818, %v2817
    %v3968 = vpack.c.b16 %v2820, %v2819
    %v3969 = vpack.c.b16 %v2822, %v2821
    %v3970 = vpack.c.b16 %v2824, %v2823
    %v3971 = vpack.c.b16 %v2826, %v2825
    %v3972 = vpack.c.b16 %v2828, %v2827
    %v3973 = vpack.c.b16 %v2830, %v2829
    %v3974 = vpack.c.b16 %v2832, %v2831
    %v3975 = vpack.c.b16 %v2834, %v2833
    %v3976 = vpack.c.b16 %v2836, %v2835
    %v3977 = vpack.c.b16 %v2838, %v2837
    %v3978 = vpack.c.b16 %v2840, %v2839
    %v3979 = vpack.c.b16 %v2842, %v2841
    %v3980 = vpack.c.b16 %v2844, %v2843
    %v3981 = vpack.c.b16 %v2846, %v2845
    %v3982 = vpack.c.b16 %v2848, %v2847
    %v3983 = vpack.c.b16 %v2850, %v2849
    %v3984 = vpack.c.b16 %v2852, %v2851
    %v3985 = vpack.c.b16 %v2854, %v2853
    %v3986 = vpack.c.b16 %v2856, %v2855
    %v3987 = vpack.c.b16 %v2858, %v2857
    %v3988 = vpack.c.b16 %v2860, %v2859
    %v3989 = vpack.c.b16 %v2862, %v2861
    %v3990 = vpack.c.b16 %v2864, %v2863
    %v3991 = vpack.c.b16 %v2866, %v2865
    %v3992 = vpack.c.b16 %v2868, %v2867
    %v3993 = vpack.c.b16 %v2870, %v2869
    %v3994 = vpack.c.b16 %v2872, %v2871
    %v3995 = vpack.c.b16 %v2874, %v2873
    %v3996 = vpack.c.b16 %v2876, %v2875
    %v3997 = vpack.c.b16 %v2878, %v2877
    %v3998 = vpack.c.b16 %v2880, %v2879
    %v3999 = vpack.c.b16 %v2882, %v2881
    %v4000 = vpack.c.b16 %v2884, %v2883
    %v4001 = vpack.c.b16 %v2886, %v2885
    %v4002 = vpack.c.b16 %v2888, %v2887
    %v4003 = vpack.c.b16 %v2890, %v2889
    %v4004 = vpack.c.b16 %v2892, %v2891
    %v4005 = vpack.c.b16 %v2894, %v2893
    %v4006 = vpack.c.b16 %v2896, %v2895
    %v4007 = vpack.c.b16 %v2898, %v2897
    %v4008 = vpack.c.b16 %v2900, %v2899
    %v4009 = vpack.c.b16 %v2902, %v2901
    %v4010 = vpack.c.b16 %v2904, %v2903
    %v4011 = vpack.c.b16 %v2906, %v2905
    %v4012 = vpack.c.b16 %v2908, %v2907
    %v4013 = vpack.c.b16 %v2910, %v2909
    %v4014 = vpack.c.b16 %v2912, %v2911
    %v4015 = vpack.c.b16 %v2914, %v2913
    %v4016 = vpack.c.b16 %v2916, %v2915
    %v4017 = vpack.c.b16 %v2918, %v2917
    %v4018 = vpack.c.b16 %v2920, %v2919
    %v4019 = vpack.c.b16 %v2922, %v2921
    %v4020 = vpack.c.b16 %v2924, %v2923
    %v4021 = vpack.c.b16 %v2926, %v2925
    %v4022 = vpack.c.b16 %v2928, %v2927
    %v4023 = vpack.c.b16 %v2930, %v2929
    %v4024 = vpack.c.b16 %v2932, %v2931
    %v4025 = vpack.c.b16 %v2934, %v2933
    %v4026 = vpack.c.b16 %v2936, %v2935
    %v4027 = vpack.c.b16 %v2938, %v2937
    %v4028 = vpack.c.b16 %v2940, %v2939
    %v4029 = vpack.c.b16 %v2942, %v2941
    %v4030 = vpack.c.b16 %v2944, %v2943
    %v4031 = vpack.c.b16 %v2946, %v2945
    %v4032 = vpack.c.b16 %v2948, %v2947
    %v4033 = vpack.c.b16 %v2950, %v2949
    %v4034 = vpack.c.b16 %v2952, %v2951
    %v4035 = vpack.c.b16 %v2954, %v2953
    %v4036 = vpack.c.b16 %v2956, %v2955
    %v4037 = vpack.c.b16 %v2958, %v2957
    %v4038 = vpack.c.b16 %v2960, %v2959
    %v4039 = vpack.c.b16 %v2962, %v2961
    %v4040 = vpack.c.b16 %v2964, %v2963
    %v4041 = vpack.c.b16 %v2966, %v2965
    %v4042 = vpack.c.b16 %v2968, %v2967
    %v4043 = vpack.c.b16 %v2970, %v2969
    %v4044 = vpack.c.b16 %v2972, %v2971
    %v4045 = vpack.c.b16 %v2974, %v2973
    %v4046 = vpack.c.b16 %v2976, %v2975
    %v4047 = vpack.c.b16 %v2978, %v2977
    %v4048 = vpack.c.b16 %v2980, %v2979
    %v4049 = vpack.c.b16 %v2982, %v2981
    %v4050 = vpack.c.b16 %v2984, %v2983
    %v4051 = vpack.c.b16 %v2986, %v2985
    %v4052 = vpack.c.b16 %v2988, %v2987
    %v4053 = vpack.c.b16 %v2990, %v2989
    %v4054 = vpack.c.b16 %v2992, %v2991
    %v4055 = vpack.c.b16 %v2994, %v2993
    %v4056 = vpack.c.b16 %v2996, %v2995
    %v4057 = vpack.c.b16 %v2998, %v2997
    %v4058 = vpack.c.b16 %v3000, %v2999
    %v4059 = vpack.c.b16 %v3002, %v3001
    %v4060 = vpack.c.b16 %v3004, %v3003
    %v4061 = vpack.c.b16 %v3006, %v3005
    %v4062 = vpack.c.b16 %v3008, %v3007
    %v4063 = vpack.c.b16 %v3010, %v3009
    %v4064 = vpack.c.b16 %v3012, %v3011
    %v4065 = vpack.c.b16 %v3014, %v3013
    %v4066 = vpack.c.b16 %v3016, %v3015
    %v4067 = vpack.c.b16 %v3018, %v3017
    %v4068 = vpack.c.b16 %v3020, %v3019
    %v4069 = vpack.c.b16 %v3022, %v3021
    %v4070 = vpack.c.b16 %v3024, %v3023
    %v4071 = vpack.c.b16 %v3026, %v3025
    %v4072 = vpack.c.b16 %v3028, %v3027
    %v4073 = vpack.c.b16 %v3030, %v3029
    %v4074 = vpack.c.b16 %v3032, %v3031
    %v4075 = vpack.c.b16 %v3034, %v3033
    %v4076 = vpack.c.b16 %v3036, %v3035
    %v4077 = vpack.c.b16 %v3038, %v3037
    %v4078 = vpack.c.b16 %v3040, %v3039
    %v4079 = vpack.c.b16 %v3042, %v3041
    %v4080 = vpack.c.b16 %v3044, %v3043
    %v4081 = vpack.c.b16 %v3046, %v3045
    %v4082 = vpack.c.b16 %v3048, %v3047
    %v4083 = vpack.c.b16 %v3050, %v3049
    %v4084 = vpack.c.b16 %v3052, %v3051
    %v4085 = vpack.c.b16 %v3054, %v3053
    %v4086 = vpack.c.b16 %v3056, %v3055
    %v4087 = vpack.c.b16 %v3058, %v3057
    %v4088 = vpack.c.b16 %v3060, %v3059
    %v4089 = vpack.c.b16 %v3062, %v3061
    %v4090 = vpack.c.b16 %v3064, %v3063
    %v4091 = vpack.c.b16 %v3066, %v3065
    %v4092 = vpack.c.b16 %v3068, %v3067
    %v4093 = vpack.c.b16 %v3070, %v3069
    %v4094 = vpack.c.b16 %v3072, %v3071
    %v4095 = vpack.c.b16 %v3074, %v3073
    %v4096 = vpack.c.b16 %v3076, %v3075
    %v4097 = vpack.c.b16 %v3078, %v3077
    %v4098 = vpack.c.b16 %v3080, %v3079
    %v4099 = vpack.c.b16 %v3082, %v3081
    %v4100 = vpack.c.b16 %v3084, %v3083
    %v4101 = vpack.c.b16 %v3086, %v3085
    %v4102 = vpack.c.b16 %v3088, %v3087
    %v4103 = vpack.c.b16 %v3090, %v3089
    %v4104 = vpack.c.b16 %v3092, %v3091
    %v4105 = vpack.c.b16 %v3094, %v3093
    %v4106 = vpack.c.b16 %v3096, %v3095
    %v4107 = vpack.c.b16 %v3098, %v3097
    %v4108 = vpack.c.b16 %v3100, %v3099
    %v4109 = vpack.c.b16 %v3102, %v3101
    %v4110 = vpack.c.b16 %v3104, %v3103
    %v4111 = vpack.c.b16 %v3106, %v3105
    %v4112 = vpack.c.b16 %v3108, %v3107
    %v4113 = vpack.c.b16 %v3110, %v3109
    %v4114 = vpack.c.b16 %v3112, %v3111
    %v4115 = vpack.c.b16 %v3114, %v3113
    %v4116 = vpack.c.b16 %v3116, %v3115
    %v4117 = vpack.c.b16 %v3118, %v3117
    %v4118 = vpack.c.b16 %v3120, %v3119
    %v4119 = vpack.c.b16 %v3122, %v3121
    %v4120 = vpack.c.b16 %v3124, %v3123
    %v4121 = vpack.c.b16 %v3126, %v3125
    %v4122 = vpack.c.b16 %v3128, %v3127
    %v4123 = vpack.c.b16 %v3130, %v3129
    %v4124 = vpack.c.b16 %v3132, %v3131
    %v4125 = vpack.c.b16 %v3134, %v3133
    %v4126 = vpack.c.b16 %v3136, %v3135
    %v4127 = vpack.c.b16 %v3138, %v3137
    %v4128 = vpack.c.b16 %v3140, %v3139
    %v4129 = vpack.c.b16 %v3142, %v3141
    %v4130 = vpack.c.b16 %v3144, %v3143
    %v4131 = vpack.c.b16 %v3146, %v3145
    %v4132 = vpack.c.b16 %v3148, %v3147
    %v4133 = vpack.c.b16 %v3150, %v3149
    %v4134 = vpack.c.b16 %v3152, %v3151
    %v4135 = vpack.c.b16 %v3154, %v3153
    %v4136 = vpack.c.b16 %v3156, %v3155
    %v4137 = vpack.c.b16 %v3158, %v3157
    %v4138 = vpack.c.b16 %v3160, %v3159
    %v4139 = vpack.c.b16 %v3162, %v3161
    %v4140 = vpack.c.b16 %v3164, %v3163
    %v4141 = vpack.c.b16 %v3166, %v3165
    %v4142 = vpack.c.b16 %v3168, %v3167
    %v4143 = vpack.c.b16 %v3170, %v3169
    %v4144 = vpack.c.b16 %v3172, %v3171
    %v4145 = vpack.c.b16 %v3174, %v3173
    %v4146 = vpack.c.b16 %v3176, %v3175
    %v4147 = vpack.c.b16 %v3178, %v3177
    %v4148 = vpack.c.b16 %v3180, %v3179
    %v4149 = vpack.c.b16 %v3182, %v3181
    %v4150 = vpack.c.b16 %v3184, %v3183
    %v4151 = vpack.c.b16 %v3186, %v3185
    %v4152 = vpack.c.b16 %v3188, %v3187
    %v4153 = vpack.c.b16 %v3190, %v3189
    %v4154 = vpack.c.b16 %v3192, %v3191
    %v4155 = vpack.c.b16 %v3194, %v3193
    %v4156 = vpack.c.b16 %v3196, %v3195
    %v4157 = vpack.c.b16 %v3198, %v3197
    %v4158 = vpack.c.b16 %v3200, %v3199
    %v4159 = vpack.c.b16 %v3202, %v3201
    %v4160 = vpack.c.b16 %v3204, %v3203
    %v4161 = vpack.c.b16 %v3206, %v3205
    %v4162 = vpack.c.b16 %v3208, %v3207
    %v4163 = vpack.c.b16 %v3210, %v3209
    %v4164 = vpack.c.b16 %v3212, %v3211
    %v4165 = vpack.c.b16 %v3214, %v3213
    %v4166 = vpack.c.b16 %v3216, %v3215
    %v4167 = vpack.c.b16 %v3218, %v3217
    %v4168 = vpack.c.b16 %v3220, %v3219
    %v4169 = vpack.c.b16 %v3222, %v3221
    %v4170 = vpack.c.b16 %v3224, %v3223
    %v4171 = vpack.c.b16 %v3226, %v3225
    %v4172 = vpack.c.b16 %v3228, %v3227
    %v4173 = vpack.c.b16 %v3230, %v3229
    %v4174 = vpack.c.b16 %v3232, %v3231
    %v4175 = vpack.c.b16 %v3234, %v3233
    %v4176 = vpack.c.b16 %v3236, %v3235
    %v4177 = vpack.c.b16 %v3238, %v3237
    %v4178 = vpack.c.b16 %v3240, %v3239
    %v4179 = vpack.c.b16 %v3242, %v3241
    %v4180 = vpack.c.b16 %v3244, %v3243
    %v4181 = vpack.c.b16 %v3246, %v3245
    %v4182 = vpack.c.b16 %v3248, %v3247
    %v4183 = vpack.c.b16 %v3250, %v3249
    %v4184 = vpack.c.b16 %v3252, %v3251
    %v4185 = vpack.c.b16 %v3254, %v3253
    %v4186 = vpack.c.b16 %v3256, %v3255
    %v4187 = vpack.c.b16 %v3258, %v3257
    %v4188 = vpack.c.b16 %v3260, %v3259
    %v4189 = vpack.c.b16 %v3262, %v3261
    %v4190 = vpack.c.b16 %v3264, %v3263
    %v4191 = vpack.c.b16 %v3266, %v3265
    %v4192 = vpack.c.b16 %v3268, %v3267
    %v4193 = vpack.c.b16 %v3270, %v3269
    %v4194 = vpack.c.b16 %v3272, %v3271
    %v4195 = vpack.c.b16 %v3274, %v3273
    %v4196 = vpack.c.b16 %v3276, %v3275
    %v4197 = vpack.c.b16 %v3278, %v3277
    %v4198 = vpack.c.b16 %v3280, %v3279
    %v4199 = vpack.c.b16 %v3282, %v3281
    %v4200 = vpack.c.b16 %v3284, %v3283
    %v4201 = vpack.c.b16 %v3286, %v3285
    %v4202 = vpack.c.b16 %v3288, %v3287
    %v4203 = vpack.c.b16 %v3290, %v3289
    %v4204 = vpack.c.b16 %v3292, %v3291
    %v4205 = vpack.c.b16 %v3294, %v3293
    %v4206 = vpack.c.b16 %v3296, %v3295
    %v4207 = vpack.c.b16 %v3298, %v3297
    %v4208 = vpack.c.b16 %v3300, %v3299
    %v4209 = vpack.c.b16 %v3302, %v3301
    %v4210 = vpack.c.b16 %v3304, %v3303
    %v4211 = vpack.c.b16 %v3306, %v3305
    %v4212 = vpack.c.b16 %v3308, %v3307
    %v4213 = vpack.c.b16 %v3310, %v3309
    %v4214 = vpack.c.b16 %v3312, %v3311
    %v4215 = vpack.c.b16 %v3314, %v3313
    %v4216 = vpack.c.b16 %v3316, %v3315
    %v4217 = vpack.c.b16 %v3318, %v3317
    %v4218 = vpack.c.b16 %v3320, %v3319
    %v4219 = vpack.c.b16 %v3322, %v3321
    %v4220 = vpack.c.b16 %v3324, %v3323
    %v4221 = vpack.c.b16 %v3326, %v3325
    %v4222 = vpack.c.b16 %v3328, %v3327
    %v4223 = vpack.c.b16 %v3330, %v3329
    %v4224 = vpack.c.b16 %v3332, %v3331
    %v4225 = vpack.c.b16 %v3334, %v3333
    %v4226 = vpack.c.b16 %v3336, %v3335
    %v4227 = vpack.c.b16 %v3338, %v3337
    %v4228 = vpack.c.b16 %v3340, %v3339
    %v4229 = vpack.c.b16 %v3342, %v3341
    %v4230 = vpack.c.b16 %v3344, %v3343
    %v4231 = vpack.c.b16 %v3346, %v3345
    %v4232 = vpack.c.b16 %v3348, %v3347
    %v4233 = vpack.c.b16 %v3350, %v3349
    %v4234 = vpack.c.b16 %v3352, %v3351
    %v4235 = vpack.c.b16 %v3354, %v3353
    %v4236 = vpack.c.b16 %v3356, %v3355
    %v4237 = vpack.c.b16 %v3358, %v3357
    %v4238 = vpack.c.b16 %v3360, %v3359
    %v4239 = vpack.c.b16 %v3362, %v3361
    %v4240 = vpack.c.b16 %v3364, %v3363
    %v4241 = vpack.c.b16 %v3366, %v3365
    %v4242 = vpack.c.b16 %v3368, %v3367
    %v4243 = vpack.c.b16 %v3370, %v3369
    %v4244 = vpack.c.b16 %v3372, %v3371
    %v4245 = vpack.c.b16 %v3374, %v3373
    %v4246 = vpack.c.b16 %v3376, %v3375
    %v4247 = vpack.c.b16 %v3378, %v3377
    %v4248 = vpack.c.b16 %v3380, %v3379
    %v4249 = vpack.c.b16 %v3382, %v3381
    %v4250 = vpack.c.b16 %v3384, %v3383
    %v4251 = vpack.c.b16 %v3386, %v3385
    %v4252 = vpack.c.b16 %v3388, %v3387
    %v4253 = vpack.c.b16 %v3390, %v3389
    %v4254 = vpack.c.b16 %v3392, %v3391
    %v4255 = vpack.c.b16 %v3394, %v3393
    %v4256 = vpack.c.b16 %v3396, %v3395
    %v4257 = vpack.c.b16 %v3398, %v3397
    %v4258 = vpack.c.b16 %v3400, %v3399
    %v4259 = vpack.c.b16 %v3402, %v3401
    %v4260 = vpack.c.b16 %v3404, %v3403
    %v4261 = vpack.c.b16 %v3406, %v3405
    %v4262 = vpack.c.b16 %v3408, %v3407
    %v4263 = vpack.c.b16 %v3410, %v3409
    %v4264 = vpack.c.b16 %v3412, %v3411
    %v4265 = vpack.c.b16 %v3414, %v3413
    %v4266 = vpack.c.b16 %v3416, %v3415
    %v4267 = vpack.c.b16 %v3418, %v3417
    %v4268 = vpack.c.b16 %v3420, %v3419
    %v4269 = vpack.c.b16 %v3422, %v3421
    %v4270 = vpack.c.b16 %v3424, %v3423
    %v4271 = vpack.c.b16 %v3426, %v3425
    %v4272 = vpack.c.b16 %v3428, %v3427
    %v4273 = vpack.c.b16 %v3430, %v3429
    %v4274 = vpack.c.b16 %v3432, %v3431
    %v4275 = vpack.c.b16 %v3434, %v3433
    %v4276 = vpack.c.b16 %v3436, %v3435
    %v4277 = vpack.c.b16 %v3438, %v3437
    %v4278 = vpack.c.b16 %v3440, %v3439
    %v4279 = vpack.c.b16 %v3442, %v3441
    %v4280 = vpack.c.b16 %v3444, %v3443
    %v4281 = vpack.c.b16 %v3446, %v3445
    %v4282 = vpack.c.b16 %v3448, %v3447
    %v4283 = vpack.c.b16 %v3450, %v3449
    %v4284 = vpack.c.b16 %v3452, %v3451
    %v4285 = vpack.c.b16 %v3454, %v3453
    %v4286 = vpack.c.b16 %v3456, %v3455
    %v4287 = vpack.c.b16 %v3458, %v3457
    %v4288 = vpack.c.b16 %v3460, %v3459
    %v4289 = vpack.c.b16 %v3462, %v3461
    %v4290 = vpack.c.b16 %v3464, %v3463
    %v4291 = vpack.c.b16 %v3466, %v3465
    %v4292 = vpack.c.b16 %v3468, %v3467
    %v4293 = vpack.c.b16 %v3470, %v3469
    %v4294 = vpack.c.b16 %v3472, %v3471
    %v4295 = vpack.c.b16 %v3474, %v3473
    %v4296 = vpack.c.b16 %v3476, %v3475
    %v4297 = vpack.c.b16 %v3478, %v3477
    %v4298 = vpack.c.b16 %v3480, %v3479
    %v4299 = vpack.c.b16 %v3482, %v3481
    %v4300 = vpack.c.b16 %v3484, %v3483
    %v4301 = vpack.c.b16 %v3486, %v3485
    %v4302 = vpack.c.b16 %v3488, %v3487
    %v4303 = vpack.c.b16 %v3490, %v3489
    %v4304 = vpack.c.b16 %v3492, %v3491
    %v4305 = vpack.c.b16 %v3494, %v3493
    %v4306 = vpack.c.b16 %v3496, %v3495
    %v4307 = vpack.c.b16 %v3498, %v3497
    %v4308 = vpack.c.b16 %v3500, %v3499
    %v4309 = vpack.c.b16 %v3502, %v3501
    %v4310 = vpack.c.b16 %v3504, %v3503
    %v4311 = vpack.c.b16 %v3506, %v3505
    %v4312 = vpack.c.b16 %v3508, %v3507
    %v4313 = vpack.c.b16 %v3510, %v3509
    %v4314 = vpack.c.b16 %v3512, %v3511
    %v4315 = vpack.c.b16 %v3514, %v3513
    %v4316 = vpack.c.b16 %v3516, %v3515
    %v4317 = vpack.c.b16 %v3518, %v3517
    %v4318 = vpack.c.b16 %v3520, %v3519
    %v4319 = vpack.c.b16 %v3522, %v3521
    %v4320 = vpack.c.b16 %v3524, %v3523
    %v4321 = vpack.c.b16 %v3526, %v3525
    %v4322 = vpack.c.b16 %v3528, %v3527
    %v4323 = vpack.c.b16 %v3530, %v3529
    %v4324 = vpack.c.b16 %v3532, %v3531
    %v4325 = vpack.c.b16 %v3534, %v3533
    %v4326 = vpack.c.b16 %v3536, %v3535
    %v4327 = vpack.c.b16 %v3538, %v3537
    %v4328 = vpack.c.b16 %v3540, %v3539
    %v4329 = vpack.c.b16 %v3542, %v3541
    %v4330 = vpack.c.b16 %v3544, %v3543
    %v4331 = vpack.c.b16 %v3546, %v3545
    %v4332 = vpack.c.b16 %v3548, %v3547
    %v4333 = vpack.c.b16 %v3550, %v3549
    %v4334 = vpack.c.b16 %v3552, %v3551
    %v4335 = vpack.c.b16 %v3554, %v3553
    %v4336 = vpack.c.b16 %v3556, %v3555
    %v4337 = vpack.c.b16 %v3558, %v3557
    %v4338 = vpack.c.b16 %v3560, %v3559
    %v4339 = vpack.c.b16 %v3562, %v3561
    %v4340 = vpack.c.b16 %v3564, %v3563
    %v4341 = vpack.c.b16 %v3566, %v3565
    %v4342 = vpack.c.b16 %v3568, %v3567
    %v4343 = vpack.c.b16 %v3570, %v3569
    %v4344 = vpack.c.b16 %v3572, %v3571
    %v4345 = vpack.c.b16 %v3574, %v3573
    %v4346 = vpack.c.b16 %v3576, %v3575
    %v4347 = vpack.c.b16 %v3578, %v3577
    %v4348 = vpack.c.b16 %v3580, %v3579
    %v4349 = vpack.c.b16 %v3582, %v3581
    %v4350 = vpack.c.b16 %v3584, %v3583
    %v4351 = vpack.c.b16 %v3586, %v3585
    %v4352 = vpack.c.b16 %v3588, %v3587
    %v4353 = vpack.c.b16 %v3590, %v3589
    %v4354 = vpack.c.b16 %v3592, %v3591
    %v4355 = vpack.c.b16 %v3594, %v3593
    %v4356 = vpack.c.b16 %v3596, %v3595
    %v4357 = vpack.c.b16 %v3598, %v3597
    %v4358 = vpack.c.b16 %v3600, %v3599
    %v4359 = vpack.c.b16 %v3602, %v3601
    %v4360 = vpack.c.b16 %v3604, %v3603
    %v4361 = vpack.c.b16 %v3606, %v3605
    %v4362 = vpack.c.b16 %v3608, %v3607
    %v4363 = vpack.c.b16 %v3610, %v3609
    %v4364 = vpack.c.b16 %v3612, %v3611
    %v4365 = vpack.c.b16 %v3614, %v3613
    %v4366 = vpack.c.b16 %v3616, %v3615
    %v4367 = vpack.c.b16 %v3618, %v3617
    %v4368 = vpack.c.b16 %v3620, %v3619
    %v4369 = vpack.c.b16 %v3622, %v3621
    %v4370 = vpack.c.b16 %v3624, %v3623
    %v4371 = vpack.c.b16 %v3626, %v3625
    %v4372 = vpack.c.b16 %v3628, %v3627
    %v4373 = vpack.c.b16 %v3630, %v3629
    %v4374 = vpack.c.b16 %v3632, %v3631
    %v4375 = vpack.c.b16 %v3634, %v3633
    %v4376 = vpack.c.b16 %v3636, %v3635
    %v4377 = vpack.c.b16 %v3638, %v3637
    %v4378 = vpack.c.b16 %v3640, %v3639
    %v4379 = vpack.c.b16 %v3642, %v3641
    %v4380 = vpack.c.b16 %v3644, %v3643
    %v4381 = vpack.c.b16 %v3646, %v3645
    %v4382 = vpack.c.b16 %v3648, %v3647
    %v4383 = vpack.c.b16 %v3650, %v3649
    %v4384 = vpack.c.b16 %v3652, %v3651
    %v4385 = vpack.c.b16 %v3654, %v3653
    %v4386 = vpack.c.b16 %v3656, %v3655
    %v4387 = vpack.c.b16 %v3658, %v3657
    %v4388 = vpack.c.b16 %v3660, %v3659
    %v4389 = vpack.c.b16 %v3662, %v3661
    %v4390 = vpack.c.b16 %v3664, %v3663
    %v4391 = vpack.c.b16 %v3666, %v3665
    %v4392 = vpack.c.b16 %v3668, %v3667
    %v4393 = vpack.c.b16 %v3670, %v3669
    %v4394 = vpack.c.b16 %v3672, %v3671
    %v4395 = vpack.c.b16 %v3674, %v3673
    %v4396 = vpack.c.b16 %v3676, %v3675
    %v4397 = vpack.c.b16 %v3678, %v3677
    %v4398 = vpack.c.b16 %v3680, %v3679
    %v4399 = vpack.c.b16 %v3682, %v3681
    %v4400 = vpack.c.b16 %v3684, %v3683
    %v4401 = vpack.c.b16 %v3686, %v3685
    %v4402 = vpack.c.b16 %v3688, %v3687
    %v4403 = vpack.c.b16 %v3690, %v3689
    %v4404 = vpack.c.b16 %v3692, %v3691
    %v4405 = vpack.c.b16 %v3694, %v3693
    %v4406 = vpack.c.b16 %v3696, %v3695
    %v4407 = vpack.c.b16 %v3698, %v3697
    %v4408 = vpack.c.b16 %v3700, %v3699
    %v4409 = vpack.c.b16 %v3702, %v3701
    %v4410 = vpack.c.b16 %v3704, %v3703
    %v4411 = vpack.c.b16 %v3706, %v3705
    %v4412 = vpack.c.b16 %v3708, %v3707
    %v4413 = vpack.c.b16 %v3710, %v3709
    %v4414 = vpack.c.b16 %v3712, %v3711
    %v4415 = vpack.c.b16 %v3714, %v3713
    %v4416 = vpack.c.b16 %v3716, %v3715
    %v4417 = vpack.c.b16 %v3718, %v3717
    %v4418 = vpack.c.b16 %v3720, %v3719
    %v4419 = vpack.c.b16 %v3722, %v3721
    %v4420 = vpack.c.b16 %v3724, %v3723
    %v4421 = vpack.c.b16 %v3726, %v3725
    %v4422 = vpack.c.b16 %v3728, %v3727
    %v4423 = vpack.c.b16 %v3730, %v3729
    %v4424 = vpack.c.b16 %v3732, %v3731
    %v4425 = vpack.c.b16 %v3734, %v3733
    %v4426 = vpack.c.b16 %v3736, %v3735
    %v4427 = vpack.c.b16 %v3738, %v3737
    %v4428 = vpack.c.b16 %v3740, %v3739
    %v4429 = vpack.c.b16 %v3742, %v3741
    %v4430 = vpack.c.b16 %v3744, %v3743
    %v4431 = vpack.c.b16 %v3746, %v3745
    %v4432 = vpack.c.b16 %v3748, %v3747
    %v4433 = vpack.c.b16 %v3750, %v3749
    %v4434 = vpack.c.b16 %v3752, %v3751
    %v4435 = vpack.c.b16 %v3754, %v3753
    %v4436 = vpack.c.b16 %v3756, %v3755
    %v4437 = vpack.c.b16 %v3758, %v3757
    %v4438 = vpack.c.b16 %v3760, %v3759
    %v4439 = vpack.c.b16 %v3762, %v3761
    %v4440 = vpack.c.b16 %v3764, %v3763
    %v4441 = vpack.c.b16 %v3766, %v3765
    %v4442 = vpack.c.b16 %v3768, %v3767
    %v4443 = vpack.c.b16 %v3770, %v3769
    %v4444 = vpack.c.b16 %v3772, %v3771
    %v4445 = vpack.c.b16 %v3774, %v3773
    %v4446 = vpack.c.b16 %v3776, %v3775
    %v4447 = vpack.c.b16 %v3778, %v3777
    %v4448 = vpack.c.b16 %v3780, %v3779
    %v4449 = vpack.c.b16 %v3782, %v3781
    %v4450 = vpack.c.b16 %v3784, %v3783
    %v4451 = vpack.c.b16 %v3786, %v3785
    %v4452 = vpack.c.b16 %v3788, %v3787
    %v4453 = vpack.c.b16 %v3790, %v3789
    %v4454 = vpack.c.b16 %v3792, %v3791
    %v4455 = vpack.c.b16 %v3794, %v3793
    %v4456 = vpack.c.b16 %v3796, %v3795
    %v4457 = vpack.c.b16 %v3798, %v3797
    %v4458 = vpack.c.b16 %v3800, %v3799
    %v4459 = vpack.c.b16 %v3802, %v3801
    %v4460 = vpack.c.b16 %v3804, %v3803
    %v4461 = vpack.c.b16 %v3806, %v3805
    %v4462 = vpack.c.b16 %v3808, %v3807
    %v4463 = vpack.c.b16 %v3810, %v3809
    %v4464 = vpack.c.b16 %v3812, %v3811
    %v4465 = vpack.c.b16 %v3814, %v3813
    %v4466 = vpack.c.b16 %v3816, %v3815
    %v4467 = vpack.c.b16 %v3818, %v3817
    %v4468 = vpack.c.b16 %v3820, %v3819
    %v4469 = vpack.c.b16 %v3822, %v3821
    %v4470 = vpack.c.b16 %v3824, %v3823
    %v4471 = vpack.c.b16 %v3826, %v3825
    %v4472 = vpack.c.b16 %v3828, %v3827
    %v4473 = vpack.c.b16 %v3830, %v3829
    %v4474 = vpack.c.b16 %v3832, %v3831
    %v4475 = vpack.c.b16 %v3834, %v3833
    %v4476 = vpack.c.b16 %v3836, %v3835
    %v4477 = vpack.c.b16 %v3838, %v3837
    %v4478 = vpack.c.b16 %v3840, %v3839
    %v4479 = vpack.c.b16 %v3842, %v3841
    %v4480 = vpack.c.b16 %v3844, %v3843
    %v4481 = vpack.c.b16 %v3846, %v3845
    %v4482 = vpack.c.b16 %v3848, %v3847
    %v4483 = vpack.c.b16 %v3850, %v3849
    %v4484 = vpack.c.b16 %v3852, %v3851
    %v4485 = vpack.c.b16 %v3854, %v3853
    %v4486 = vpack.c.b16 %v3856, %v3855
    %v4487 = vpack.c.b16 %v3858, %v3857
    %v4488 = vpack.c.b16 %v3860, %v3859
    %v4489 = vpack.c.b16 %v3862, %v3861
    %v4490 = vpack.c.b16 %v3864, %v3863
    %v4491 = vpack.c.b16 %v3866, %v3865
    %v4492 = vpack.c.b16 %v3868, %v3867
    %v4493 = vpack.c.b16 %v3870, %v3869
    %v4494 = vpack.c.b16 %v3872, %v3871
    %v4495 = vpack.c.b16 %v3874, %v3873
    %v4496 = vpack.c.b16 %v3876, %v3875
    %v4497 = vpack.c.b16 %v3878, %v3877
    %v4498 = vpack.c.b16 %v3880, %v3879
    %v4499 = vpack.c.b16 %v3882, %v3881
    %v4500 = vpack.c.b16 %v3884, %v3883
    %v4501 = vpack.c.b16 %v3886, %v3885
    %v4502 = vpack.c.b16 %v3888, %v3887
    %v4503 = vpack.c.b16 %v3890, %v3889
    %v4504 = vpack.c.b16 %v3892, %v3891
    %v4505 = vpack.c.b16 %v3894, %v3893
    %v4506 = vpack.c.b16 %v3896, %v3895
    %v4507 = vpack.c.b16 %v3898, %v3897
    %v4508 = vpack.c.b16 %v3900, %v3899
    %v4509 = vpack.c.b16 %v3902, %v3901
    %v4510 = vpack.c.b16 %v3904, %v3903
    %v4511 = vpack.c.b16 %v3906, %v3905
    %v4512 = vpack.c.b16 %v3908, %v3907
    %v4513 = vpack.c.b16 %v3910, %v3909
    %v4514 = vpack.c.b16 %v3912, %v3911
    %v4515 = vpack.c.b16 %v3914, %v3913
    %v4516 = vpack.c.b16 %v3916, %v3915
    %5117 = vmatpush.bf16.msra.mxu0 %v3924
    %5118 = vmatpush.bf16.msra.mxu0 %v3923
    %5119 = vmatpush.bf16.msra.mxu0 %v3922
    %5120 = vmatpush.bf16.msra.mxu0 %v3921
    %5121 = vmatpush.bf16.msra.mxu0 %v3920
    %5122 = vmatpush.bf16.msra.mxu0 %v3919
    %5123 = vmatpush.bf16.msra.mxu0 %v3918
    %5124 = vmatpush.bf16.msra.mxu0 %v3917
    %5125 = vmatmul.bf16.gmra.mxu0 %v238
    %v5126 = vpop.f32.mrf.mxu0
    %v5127 = vadd.f32 %v1515, %v5126
    %v5128 = vpop.f32.mrf.mxu0
    %5129 = vdwg.mxu0
    %5130 = vmatpush.bf16.msra.mxu0 %v3932
    %5131 = vmatpush.bf16.msra.mxu0 %v3931
    %5132 = vmatpush.bf16.msra.mxu0 %v3930
    %5133 = vmatpush.bf16.msra.mxu0 %v3929
    %5134 = vmatpush.bf16.msra.mxu0 %v3928
    %5135 = vmatpush.bf16.msra.mxu0 %v3927
    %5136 = vmatpush.bf16.msra.mxu0 %v3926
    %5137 = vmatpush.bf16.msra.mxu0 %v3925
    %5138 = vmatmul.bf16.gmra.mxu0 %v239
    %v5139 = vpop.f32.mrf.mxu0
    %v5140 = vadd.f32 %v5127, %v5139
    %v5141 = vpop.f32.mrf.mxu0
    %5142 = vdwg.mxu0
    %5143 = vmatpush.bf16.msra.mxu0 %v3940
    %5144 = vmatpush.bf16.msra.mxu0 %v3939
    %5145 = vmatpush.bf16.msra.mxu0 %v3938
    %5146 = vmatpush.bf16.msra.mxu0 %v3937
    %5147 = vmatpush.bf16.msra.mxu0 %v3936
    %5148 = vmatpush.bf16.msra.mxu0 %v3935
    %5149 = vmatpush.bf16.msra.mxu0 %v3934
    %5150 = vmatpush.bf16.msra.mxu0 %v3933
    %5151 = vmatmul.bf16.gmra.mxu0 %v240
    %v5152 = vpop.f32.mrf.mxu0
    %v5153 = vadd.f32 %v5140, %v5152
    %v5154 = vpop.f32.mrf.mxu0
    %5155 = vdwg.mxu0
    %5156 = vmatpush.bf16.msra.mxu0 %v3948
    %5157 = vmatpush.bf16.msra.mxu0 %v3947
    %5158 = vmatpush.bf16.msra.mxu0 %v3946
    %5159 = vmatpush.bf16.msra.mxu0 %v3945
    %5160 = vmatpush.bf16.msra.mxu0 %v3944
    %5161 = vmatpush.bf16.msra.mxu0 %v3943
    %5162 = vmatpush.bf16.msra.mxu0 %v3942
    %5163 = vmatpush.bf16.msra.mxu0 %v3941
    %5164 = vmatmul.bf16.gmra.mxu0 %v241
    %v5165 = vpop.f32.mrf.mxu0
    %v5166 = vadd.f32 %v5153, %v5165
    %v5167 = vpop.f32.mrf.mxu0
    %5168 = vdwg.mxu0
    %5169 = vmatpush.bf16.msra.mxu0 %v3956
    %5170 = vmatpush.bf16.msra.mxu0 %v3955
    %5171 = vmatpush.bf16.msra.mxu0 %v3954
    %5172 = vmatpush.bf16.msra.mxu0 %v3953
    %5173 = vmatpush.bf16.msra.mxu0 %v3952
    %5174 = vmatpush.bf16.msra.mxu0 %v3951
    %5175 = vmatpush.bf16.msra.mxu0 %v3950
    %5176 = vmatpush.bf16.msra.mxu0 %v3949
    %5177 = vmatmul.bf16.gmra.mxu0 %v242
    %v5178 = vpop.f32.mrf.mxu0
    %v5179 = vadd.f32 %v5166, %v5178
    %v5180 = vpop.f32.mrf.mxu0
    %5181 = vdwg.mxu0
    %5182 = vmatpush.bf16.msra.mxu0 %v3964
    %5183 = vmatpush.bf16.msra.mxu0 %v3963
    %5184 = vmatpush.bf16.msra.mxu0 %v3962
    %5185 = vmatpush.bf16.msra.mxu0 %v3961
    %5186 = vmatpush.bf16.msra.mxu0 %v3960
    %5187 = vmatpush.bf16.msra.mxu0 %v3959
    %5188 = vmatpush.bf16.msra.mxu0 %v3958
    %5189 = vmatpush.bf16.msra.mxu0 %v3957
    %5190 = vmatmul.bf16.gmra.mxu0 %v243
    %v5191 = vpop.f32.mrf.mxu0
    %v5192 = vadd.f32 %v5179, %v5191
    %v5193 = vpop.f32.mrf.mxu0
    %5194 = vdwg.mxu0
    %5195 = vmatpush.bf16.msra.mxu0 %v3972
    %5196 = vmatpush.bf16.msra.mxu0 %v3971
    %5197 = vmatpush.bf16.msra.mxu0 %v3970
    %5198 = vmatpush.bf16.msra.mxu0 %v3969
    %5199 = vmatpush.bf16.msra.mxu0 %v3968
    %5200 = vmatpush.bf16.msra.mxu0 %v3967
    %5201 = vmatpush.bf16.msra.mxu0 %v3966
    %5202 = vmatpush.bf16.msra.mxu0 %v3965
    %5203 = vmatmul.bf16.gmra.mxu0 %v244
    %v5204 = vpop.f32.mrf.mxu0
    %v5205 = vadd.f32 %v5192, %v5204
    %v5206 = vpop.f32.mrf.mxu0
    %5207 = vdwg.mxu0
    %5208 = vmatpush.bf16.msra.mxu0 %v3980
    %5209 = vmatpush.bf16.msra.mxu0 %v3979
    %5210 = vmatpush.bf16.msra.mxu0 %v3978
    %5211 = vmatpush.bf16.msra.mxu0 %v3977
    %5212 = vmatpush.bf16.msra.mxu0 %v3976
    %5213 = vmatpush.bf16.msra.mxu0 %v3975
    %5214 = vmatpush.bf16.msra.mxu0 %v3974
    %5215 = vmatpush.bf16.msra.mxu0 %v3973
    %5216 = vmatmul.bf16.gmra.mxu0 %v245
    %v5217 = vpop.f32.mrf.mxu0
    %v5218 = vadd.f32 %v5205, %v5217
    %v5219 = vpop.f32.mrf.mxu0
    %5220 = vdwg.mxu0
    %5221 = vmatpush.bf16.msra.mxu0 %v3988
    %5222 = vmatpush.bf16.msra.mxu0 %v3987
    %5223 = vmatpush.bf16.msra.mxu0 %v3986
    %5224 = vmatpush.bf16.msra.mxu0 %v3985
    %5225 = vmatpush.bf16.msra.mxu0 %v3984
    %5226 = vmatpush.bf16.msra.mxu0 %v3983
    %5227 = vmatpush.bf16.msra.mxu0 %v3982
    %5228 = vmatpush.bf16.msra.mxu0 %v3981
    %5229 = vmatmul.bf16.gmra.mxu0 %v246
    %v5230 = vpop.f32.mrf.mxu0
    %v5231 = vadd.f32 %v5218, %v5230
    %v5232 = vpop.f32.mrf.mxu0
    %5233 = vdwg.mxu0
    %5234 = vmatpush.bf16.msra.mxu0 %v3996
    %5235 = vmatpush.bf16.msra.mxu0 %v3995
    %5236 = vmatpush.bf16.msra.mxu0 %v3994
    %5237 = vmatpush.bf16.msra.mxu0 %v3993
    %5238 = vmatpush.bf16.msra.mxu0 %v3992
    %5239 = vmatpush.bf16.msra.mxu0 %v3991
    %5240 = vmatpush.bf16.msra.mxu0 %v3990
    %5241 = vmatpush.bf16.msra.mxu0 %v3989
    %5242 = vmatmul.bf16.gmra.mxu0 %v247
    %v5243 = vpop.f32.mrf.mxu0
    %v5244 = vadd.f32 %v5231, %v5243
    %v5245 = vpop.f32.mrf.mxu0
    %5246 = vdwg.mxu0
    %5247 = vmatpush.bf16.msra.mxu0 %v4004
    %5248 = vmatpush.bf16.msra.mxu0 %v4003
    %5249 = vmatpush.bf16.msra.mxu0 %v4002
    %5250 = vmatpush.bf16.msra.mxu0 %v4001
    %5251 = vmatpush.bf16.msra.mxu0 %v4000
    %5252 = vmatpush.bf16.msra.mxu0 %v3999
    %5253 = vmatpush.bf16.msra.mxu0 %v3998
    %5254 = vmatpush.bf16.msra.mxu0 %v3997
    %5255 = vmatmul.bf16.gmra.mxu0 %v248
    %v5256 = vpop.f32.mrf.mxu0
    %v5257 = vadd.f32 %v5244, %v5256
    %v5258 = vpop.f32.mrf.mxu0
    %5259 = vdwg.mxu0
    %5260 = vmatpush.bf16.msra.mxu0 %v4012
    %5261 = vmatpush.bf16.msra.mxu0 %v4011
    %5262 = vmatpush.bf16.msra.mxu0 %v4010
    %5263 = vmatpush.bf16.msra.mxu0 %v4009
    %5264 = vmatpush.bf16.msra.mxu0 %v4008
    %5265 = vmatpush.bf16.msra.mxu0 %v4007
    %5266 = vmatpush.bf16.msra.mxu0 %v4006
    %5267 = vmatpush.bf16.msra.mxu0 %v4005
    %5268 = vmatmul.bf16.gmra.mxu0 %v249
    %v5269 = vpop.f32.mrf.mxu0
    %v5270 = vadd.f32 %v5257, %v5269
    %v5271 = vpop.f32.mrf.mxu0
    %5272 = vdwg.mxu0
    %5273 = vmatpush.bf16.msra.mxu0 %v4020
    %5274 = vmatpush.bf16.msra.mxu0 %v4019
    %5275 = vmatpush.bf16.msra.mxu0 %v4018
    %5276 = vmatpush.bf16.msra.mxu0 %v4017
    %5277 = vmatpush.bf16.msra.mxu0 %v4016
    %5278 = vmatpush.bf16.msra.mxu0 %v4015
    %5279 = vmatpush.bf16.msra.mxu0 %v4014
    %5280 = vmatpush.bf16.msra.mxu0 %v4013
    %5281 = vmatmul.bf16.gmra.mxu0 %v250
    %v5282 = vpop.f32.mrf.mxu0
    %v5283 = vadd.f32 %v5270, %v5282
    %v5284 = vpop.f32.mrf.mxu0
    %5285 = vdwg.mxu0
    %5286 = vmatpush.bf16.msra.mxu0 %v4028
    %5287 = vmatpush.bf16.msra.mxu0 %v4027
    %5288 = vmatpush.bf16.msra.mxu0 %v4026
    %5289 = vmatpush.bf16.msra.mxu0 %v4025
    %5290 = vmatpush.bf16.msra.mxu0 %v4024
    %5291 = vmatpush.bf16.msra.mxu0 %v4023
    %5292 = vmatpush.bf16.msra.mxu0 %v4022
    %5293 = vmatpush.bf16.msra.mxu0 %v4021
    %5294 = vmatmul.bf16.gmra.mxu0 %v251
    %v5295 = vpop.f32.mrf.mxu0
    %v5296 = vadd.f32 %v5283, %v5295
    %v5297 = vpop.f32.mrf.mxu0
    %5298 = vdwg.mxu0
    %5299 = vmatpush.bf16.msra.mxu0 %v4036
    %5300 = vmatpush.bf16.msra.mxu0 %v4035
    %5301 = vmatpush.bf16.msra.mxu0 %v4034
    %5302 = vmatpush.bf16.msra.mxu0 %v4033
    %5303 = vmatpush.bf16.msra.mxu0 %v4032
    %5304 = vmatpush.bf16.msra.mxu0 %v4031
    %5305 = vmatpush.bf16.msra.mxu0 %v4030
    %5306 = vmatpush.bf16.msra.mxu0 %v4029
    %5307 = vmatmul.bf16.gmra.mxu0 %v252
    %v5308 = vpop.f32.mrf.mxu0
    %v5309 = vadd.f32 %v5296, %v5308
    %v5310 = vpop.f32.mrf.mxu0
    %5311 = vdwg.mxu0
    %5312 = vmatpush.bf16.msra.mxu0 %v4044
    %5313 = vmatpush.bf16.msra.mxu0 %v4043
    %5314 = vmatpush.bf16.msra.mxu0 %v4042
    %5315 = vmatpush.bf16.msra.mxu0 %v4041
    %5316 = vmatpush.bf16.msra.mxu0 %v4040
    %5317 = vmatpush.bf16.msra.mxu0 %v4039
    %5318 = vmatpush.bf16.msra.mxu0 %v4038
    %5319 = vmatpush.bf16.msra.mxu0 %v4037
    %5320 = vmatmul.bf16.gmra.mxu0 %v253
    %v5321 = vpop.f32.mrf.mxu0
    %v5322 = vadd.f32 %v5309, %v5321
    %v5323 = vpop.f32.mrf.mxu0
    %5324 = vdwg.mxu0
    %5325 = vmatpush.bf16.msra.mxu0 %v4052
    %5326 = vmatpush.bf16.msra.mxu0 %v4051
    %5327 = vmatpush.bf16.msra.mxu0 %v4050
    %5328 = vmatpush.bf16.msra.mxu0 %v4049
    %5329 = vmatpush.bf16.msra.mxu0 %v4048
    %5330 = vmatpush.bf16.msra.mxu0 %v4047
    %5331 = vmatpush.bf16.msra.mxu0 %v4046
    %5332 = vmatpush.bf16.msra.mxu0 %v4045
    %5333 = vmatmul.bf16.gmra.mxu0 %v254
    %v5334 = vpop.f32.mrf.mxu0
    %v5335 = vadd.f32 %v5322, %v5334
    %v5336 = vpop.f32.mrf.mxu0
    %5337 = vdwg.mxu0
    %5338 = vmatpush.bf16.msra.mxu0 %v4060
    %5339 = vmatpush.bf16.msra.mxu0 %v4059
    %5340 = vmatpush.bf16.msra.mxu0 %v4058
    %5341 = vmatpush.bf16.msra.mxu0 %v4057
    %5342 = vmatpush.bf16.msra.mxu0 %v4056
    %5343 = vmatpush.bf16.msra.mxu0 %v4055
    %5344 = vmatpush.bf16.msra.mxu0 %v4054
    %5345 = vmatpush.bf16.msra.mxu0 %v4053
    %5346 = vmatmul.bf16.gmra.mxu0 %v255
    %v5347 = vpop.f32.mrf.mxu0
    %v5348 = vadd.f32 %v5335, %v5347
    %v5349 = vpop.f32.mrf.mxu0
    %5350 = vdwg.mxu0
    %5351 = vmatpush.bf16.msra.mxu0 %v4068
    %5352 = vmatpush.bf16.msra.mxu0 %v4067
    %5353 = vmatpush.bf16.msra.mxu0 %v4066
    %5354 = vmatpush.bf16.msra.mxu0 %v4065
    %5355 = vmatpush.bf16.msra.mxu0 %v4064
    %5356 = vmatpush.bf16.msra.mxu0 %v4063
    %5357 = vmatpush.bf16.msra.mxu0 %v4062
    %5358 = vmatpush.bf16.msra.mxu0 %v4061
    %5359 = vmatmul.bf16.gmra.mxu0 %v256
    %v5360 = vpop.f32.mrf.mxu0
    %v5361 = vadd.f32 %v5348, %v5360
    %v5362 = vpop.f32.mrf.mxu0
    %5363 = vdwg.mxu0
    %5364 = vmatpush.bf16.msra.mxu0 %v4076
    %5365 = vmatpush.bf16.msra.mxu0 %v4075
    %5366 = vmatpush.bf16.msra.mxu0 %v4074
    %5367 = vmatpush.bf16.msra.mxu0 %v4073
    %5368 = vmatpush.bf16.msra.mxu0 %v4072
    %5369 = vmatpush.bf16.msra.mxu0 %v4071
    %5370 = vmatpush.bf16.msra.mxu0 %v4070
    %5371 = vmatpush.bf16.msra.mxu0 %v4069
    %5372 = vmatmul.bf16.gmra.mxu0 %v257
    %v5373 = vpop.f32.mrf.mxu0
    %v5374 = vadd.f32 %v5361, %v5373
    %v5375 = vpop.f32.mrf.mxu0
    %5376 = vdwg.mxu0
    %5377 = vmatpush.bf16.msra.mxu0 %v4084
    %5378 = vmatpush.bf16.msra.mxu0 %v4083
    %5379 = vmatpush.bf16.msra.mxu0 %v4082
    %5380 = vmatpush.bf16.msra.mxu0 %v4081
    %5381 = vmatpush.bf16.msra.mxu0 %v4080
    %5382 = vmatpush.bf16.msra.mxu0 %v4079
    %5383 = vmatpush.bf16.msra.mxu0 %v4078
    %5384 = vmatpush.bf16.msra.mxu0 %v4077
    %5385 = vmatmul.bf16.gmra.mxu0 %v258
    %v5386 = vpop.f32.mrf.mxu0
    %v5387 = vadd.f32 %v5374, %v5386
    %v5388 = vpop.f32.mrf.mxu0
    %5389 = vdwg.mxu0
    %5390 = vmatpush.bf16.msra.mxu0 %v4092
    %5391 = vmatpush.bf16.msra.mxu0 %v4091
    %5392 = vmatpush.bf16.msra.mxu0 %v4090
    %5393 = vmatpush.bf16.msra.mxu0 %v4089
    %5394 = vmatpush.bf16.msra.mxu0 %v4088
    %5395 = vmatpush.bf16.msra.mxu0 %v4087
    %5396 = vmatpush.bf16.msra.mxu0 %v4086
    %5397 = vmatpush.bf16.msra.mxu0 %v4085
    %5398 = vmatmul.bf16.gmra.mxu0 %v259
    %v5399 = vpop.f32.mrf.mxu0
    %v5400 = vadd.f32 %v5387, %v5399
    %v5401 = vpop.f32.mrf.mxu0
    %5402 = vdwg.mxu0
    %5403 = vmatpush.bf16.msra.mxu0 %v4100
    %5404 = vmatpush.bf16.msra.mxu0 %v4099
    %5405 = vmatpush.bf16.msra.mxu0 %v4098
    %5406 = vmatpush.bf16.msra.mxu0 %v4097
    %5407 = vmatpush.bf16.msra.mxu0 %v4096
    %5408 = vmatpush.bf16.msra.mxu0 %v4095
    %5409 = vmatpush.bf16.msra.mxu0 %v4094
    %5410 = vmatpush.bf16.msra.mxu0 %v4093
    %5411 = vmatmul.bf16.gmra.mxu0 %v260
    %v5412 = vpop.f32.mrf.mxu0
    %v5413 = vadd.f32 %v5400, %v5412
    %v5414 = vpop.f32.mrf.mxu0
    %5415 = vdwg.mxu0
    %5416 = vmatpush.bf16.msra.mxu0 %v4108
    %5417 = vmatpush.bf16.msra.mxu0 %v4107
    %5418 = vmatpush.bf16.msra.mxu0 %v4106
    %5419 = vmatpush.bf16.msra.mxu0 %v4105
    %5420 = vmatpush.bf16.msra.mxu0 %v4104
    %5421 = vmatpush.bf16.msra.mxu0 %v4103
    %5422 = vmatpush.bf16.msra.mxu0 %v4102
    %5423 = vmatpush.bf16.msra.mxu0 %v4101
    %5424 = vmatmul.bf16.gmra.mxu0 %v261
    %v5425 = vpop.f32.mrf.mxu0
    %v5426 = vadd.f32 %v5413, %v5425
    %v5427 = vpop.f32.mrf.mxu0
    %5428 = vdwg.mxu0
    %5429 = vmatpush.bf16.msra.mxu0 %v4116
    %5430 = vmatpush.bf16.msra.mxu0 %v4115
    %5431 = vmatpush.bf16.msra.mxu0 %v4114
    %5432 = vmatpush.bf16.msra.mxu0 %v4113
    %5433 = vmatpush.bf16.msra.mxu0 %v4112
    %5434 = vmatpush.bf16.msra.mxu0 %v4111
    %5435 = vmatpush.bf16.msra.mxu0 %v4110
    %5436 = vmatpush.bf16.msra.mxu0 %v4109
    %5437 = vmatmul.bf16.gmra.mxu0 %v262
    %v5438 = vpop.f32.mrf.mxu0
    %v5439 = vadd.f32 %v5426, %v5438
    %v5440 = vpop.f32.mrf.mxu0
    %5441 = vdwg.mxu0
    %5442 = vmatpush.bf16.msra.mxu0 %v4124
    %5443 = vmatpush.bf16.msra.mxu0 %v4123
    %5444 = vmatpush.bf16.msra.mxu0 %v4122
    %5445 = vmatpush.bf16.msra.mxu0 %v4121
    %5446 = vmatpush.bf16.msra.mxu0 %v4120
    %5447 = vmatpush.bf16.msra.mxu0 %v4119
    %5448 = vmatpush.bf16.msra.mxu0 %v4118
    %5449 = vmatpush.bf16.msra.mxu0 %v4117
    %5450 = vmatmul.bf16.gmra.mxu0 %v263
    %v5451 = vpop.f32.mrf.mxu0
    %v5452 = vadd.f32 %v5439, %v5451
    %v5453 = vpop.f32.mrf.mxu0
    %5454 = vdwg.mxu0
    %5455 = vmatpush.bf16.msra.mxu0 %v4132
    %5456 = vmatpush.bf16.msra.mxu0 %v4131
    %5457 = vmatpush.bf16.msra.mxu0 %v4130
    %5458 = vmatpush.bf16.msra.mxu0 %v4129
    %5459 = vmatpush.bf16.msra.mxu0 %v4128
    %5460 = vmatpush.bf16.msra.mxu0 %v4127
    %5461 = vmatpush.bf16.msra.mxu0 %v4126
    %5462 = vmatpush.bf16.msra.mxu0 %v4125
    %5463 = vmatmul.bf16.gmra.mxu0 %v264
    %v5464 = vpop.f32.mrf.mxu0
    %v5465 = vadd.f32 %v5452, %v5464
    %v5466 = vpop.f32.mrf.mxu0
    %5467 = vdwg.mxu0
    %5468 = vmatpush.bf16.msra.mxu0 %v4140
    %5469 = vmatpush.bf16.msra.mxu0 %v4139
    %5470 = vmatpush.bf16.msra.mxu0 %v4138
    %5471 = vmatpush.bf16.msra.mxu0 %v4137
    %5472 = vmatpush.bf16.msra.mxu0 %v4136
    %5473 = vmatpush.bf16.msra.mxu0 %v4135
    %5474 = vmatpush.bf16.msra.mxu0 %v4134
    %5475 = vmatpush.bf16.msra.mxu0 %v4133
    %5476 = vmatmul.bf16.gmra.mxu0 %v265
    %v5477 = vpop.f32.mrf.mxu0
    %v5478 = vadd.f32 %v5465, %v5477
    %v5479 = vpop.f32.mrf.mxu0
    %5480 = vdwg.mxu0
    %5481 = vmatpush.bf16.msra.mxu0 %v4148
    %5482 = vmatpush.bf16.msra.mxu0 %v4147
    %5483 = vmatpush.bf16.msra.mxu0 %v4146
    %5484 = vmatpush.bf16.msra.mxu0 %v4145
    %5485 = vmatpush.bf16.msra.mxu0 %v4144
    %5486 = vmatpush.bf16.msra.mxu0 %v4143
    %5487 = vmatpush.bf16.msra.mxu0 %v4142
    %5488 = vmatpush.bf16.msra.mxu0 %v4141
    %5489 = vmatmul.bf16.gmra.mxu0 %v266
    %v5490 = vpop.f32.mrf.mxu0
    %v5491 = vadd.f32 %v5478, %v5490
    %v5492 = vpop.f32.mrf.mxu0
    %5493 = vdwg.mxu0
    %5494 = vmatpush.bf16.msra.mxu0 %v4156
    %5495 = vmatpush.bf16.msra.mxu0 %v4155
    %5496 = vmatpush.bf16.msra.mxu0 %v4154
    %5497 = vmatpush.bf16.msra.mxu0 %v4153
    %5498 = vmatpush.bf16.msra.mxu0 %v4152
    %5499 = vmatpush.bf16.msra.mxu0 %v4151
    %5500 = vmatpush.bf16.msra.mxu0 %v4150
    %5501 = vmatpush.bf16.msra.mxu0 %v4149
    %5502 = vmatmul.bf16.gmra.mxu0 %v267
    %v5503 = vpop.f32.mrf.mxu0
    %v5504 = vadd.f32 %v5491, %v5503
    %v5505 = vpop.f32.mrf.mxu0
    %5506 = vdwg.mxu0
    %5507 = vmatpush.bf16.msra.mxu0 %v4164
    %5508 = vmatpush.bf16.msra.mxu0 %v4163
    %5509 = vmatpush.bf16.msra.mxu0 %v4162
    %5510 = vmatpush.bf16.msra.mxu0 %v4161
    %5511 = vmatpush.bf16.msra.mxu0 %v4160
    %5512 = vmatpush.bf16.msra.mxu0 %v4159
    %5513 = vmatpush.bf16.msra.mxu0 %v4158
    %5514 = vmatpush.bf16.msra.mxu0 %v4157
    %5515 = vmatmul.bf16.gmra.mxu0 %v268
    %v5516 = vpop.f32.mrf.mxu0
    %v5517 = vadd.f32 %v5504, %v5516
    %v5518 = vpop.f32.mrf.mxu0
    %5519 = vdwg.mxu0
    %5520 = vmatpush.bf16.msra.mxu0 %v4172
    %5521 = vmatpush.bf16.msra.mxu0 %v4171
    %5522 = vmatpush.bf16.msra.mxu0 %v4170
    %5523 = vmatpush.bf16.msra.mxu0 %v4169
    %5524 = vmatpush.bf16.msra.mxu0 %v4168
    %5525 = vmatpush.bf16.msra.mxu0 %v4167
    %5526 = vmatpush.bf16.msra.mxu0 %v4166
    %5527 = vmatpush.bf16.msra.mxu0 %v4165
    %5528 = vmatmul.bf16.gmra.mxu0 %v269
    %v5529 = vpop.f32.mrf.mxu0
    %v5530 = vadd.f32 %v5517, %v5529
    %v5531 = vpop.f32.mrf.mxu0
    %5532 = vdwg.mxu0
    %5533 = vmatpush.bf16.msra.mxu0 %v4180
    %5534 = vmatpush.bf16.msra.mxu0 %v4179
    %5535 = vmatpush.bf16.msra.mxu0 %v4178
    %5536 = vmatpush.bf16.msra.mxu0 %v4177
    %5537 = vmatpush.bf16.msra.mxu0 %v4176
    %5538 = vmatpush.bf16.msra.mxu0 %v4175
    %5539 = vmatpush.bf16.msra.mxu0 %v4174
    %5540 = vmatpush.bf16.msra.mxu0 %v4173
    %5541 = vmatmul.bf16.gmra.mxu0 %v270
    %v5542 = vpop.f32.mrf.mxu0
    %v5543 = vadd.f32 %v5530, %v5542
    %v5544 = vpop.f32.mrf.mxu0
    %5545 = vdwg.mxu0
    %5546 = vmatpush.bf16.msra.mxu0 %v4188
    %5547 = vmatpush.bf16.msra.mxu0 %v4187
    %5548 = vmatpush.bf16.msra.mxu0 %v4186
    %5549 = vmatpush.bf16.msra.mxu0 %v4185
    %5550 = vmatpush.bf16.msra.mxu0 %v4184
    %5551 = vmatpush.bf16.msra.mxu0 %v4183
    %5552 = vmatpush.bf16.msra.mxu0 %v4182
    %5553 = vmatpush.bf16.msra.mxu0 %v4181
    %5554 = vmatmul.bf16.gmra.mxu0 %v271
    %v5555 = vpop.f32.mrf.mxu0
    %v5556 = vadd.f32 %v5543, %v5555
    %v5557 = vpop.f32.mrf.mxu0
    %5558 = vdwg.mxu0
    %5559 = vmatpush.bf16.msra.mxu0 %v4196
    %5560 = vmatpush.bf16.msra.mxu0 %v4195
    %5561 = vmatpush.bf16.msra.mxu0 %v4194
    %5562 = vmatpush.bf16.msra.mxu0 %v4193
    %5563 = vmatpush.bf16.msra.mxu0 %v4192
    %5564 = vmatpush.bf16.msra.mxu0 %v4191
    %5565 = vmatpush.bf16.msra.mxu0 %v4190
    %5566 = vmatpush.bf16.msra.mxu0 %v4189
    %5567 = vmatmul.bf16.gmra.mxu0 %v272
    %v5568 = vpop.f32.mrf.mxu0
    %v5569 = vadd.f32 %v5556, %v5568
    %v5570 = vpop.f32.mrf.mxu0
    %5571 = vdwg.mxu0
    %5572 = vmatpush.bf16.msra.mxu0 %v4204
    %5573 = vmatpush.bf16.msra.mxu0 %v4203
    %5574 = vmatpush.bf16.msra.mxu0 %v4202
    %5575 = vmatpush.bf16.msra.mxu0 %v4201
    %5576 = vmatpush.bf16.msra.mxu0 %v4200
    %5577 = vmatpush.bf16.msra.mxu0 %v4199
    %5578 = vmatpush.bf16.msra.mxu0 %v4198
    %5579 = vmatpush.bf16.msra.mxu0 %v4197
    %5580 = vmatmul.bf16.gmra.mxu0 %v273
    %v5581 = vpop.f32.mrf.mxu0
    %v5582 = vadd.f32 %v5569, %v5581
    %v5583 = vpop.f32.mrf.mxu0
    %5584 = vdwg.mxu0
    %5585 = vmatpush.bf16.msra.mxu0 %v4212
    %5586 = vmatpush.bf16.msra.mxu0 %v4211
    %5587 = vmatpush.bf16.msra.mxu0 %v4210
    %5588 = vmatpush.bf16.msra.mxu0 %v4209
    %5589 = vmatpush.bf16.msra.mxu0 %v4208
    %5590 = vmatpush.bf16.msra.mxu0 %v4207
    %5591 = vmatpush.bf16.msra.mxu0 %v4206
    %5592 = vmatpush.bf16.msra.mxu0 %v4205
    %5593 = vmatmul.bf16.gmra.mxu0 %v274
    %v5594 = vpop.f32.mrf.mxu0
    %v5595 = vadd.f32 %v5582, %v5594
    %v5596 = vpop.f32.mrf.mxu0
    %5597 = vdwg.mxu0
    %5598 = vmatpush.bf16.msra.mxu0 %v4220
    %5599 = vmatpush.bf16.msra.mxu0 %v4219
    %5600 = vmatpush.bf16.msra.mxu0 %v4218
    %5601 = vmatpush.bf16.msra.mxu0 %v4217
    %5602 = vmatpush.bf16.msra.mxu0 %v4216
    %5603 = vmatpush.bf16.msra.mxu0 %v4215
    %5604 = vmatpush.bf16.msra.mxu0 %v4214
    %5605 = vmatpush.bf16.msra.mxu0 %v4213
    %5606 = vmatmul.bf16.gmra.mxu0 %v275
    %v5607 = vpop.f32.mrf.mxu0
    %v5608 = vadd.f32 %v5595, %v5607
    %v5609 = vpop.f32.mrf.mxu0
    %5610 = vdwg.mxu0
    %5611 = vmatpush.bf16.msra.mxu0 %v4228
    %5612 = vmatpush.bf16.msra.mxu0 %v4227
    %5613 = vmatpush.bf16.msra.mxu0 %v4226
    %5614 = vmatpush.bf16.msra.mxu0 %v4225
    %5615 = vmatpush.bf16.msra.mxu0 %v4224
    %5616 = vmatpush.bf16.msra.mxu0 %v4223
    %5617 = vmatpush.bf16.msra.mxu0 %v4222
    %5618 = vmatpush.bf16.msra.mxu0 %v4221
    %5619 = vmatmul.bf16.gmra.mxu0 %v276
    %v5620 = vpop.f32.mrf.mxu0
    %v5621 = vadd.f32 %v5608, %v5620
    %v5622 = vpop.f32.mrf.mxu0
    %5623 = vdwg.mxu0
    %5624 = vmatpush.bf16.msra.mxu0 %v4236
    %5625 = vmatpush.bf16.msra.mxu0 %v4235
    %5626 = vmatpush.bf16.msra.mxu0 %v4234
    %5627 = vmatpush.bf16.msra.mxu0 %v4233
    %5628 = vmatpush.bf16.msra.mxu0 %v4232
    %5629 = vmatpush.bf16.msra.mxu0 %v4231
    %5630 = vmatpush.bf16.msra.mxu0 %v4230
    %5631 = vmatpush.bf16.msra.mxu0 %v4229
    %5632 = vmatmul.bf16.gmra.mxu0 %v277
    %v5633 = vpop.f32.mrf.mxu0
    %v5634 = vadd.f32 %v5621, %v5633
    %v5635 = vpop.f32.mrf.mxu0
    %5636 = vdwg.mxu0
    %5637 = vmatpush.bf16.msra.mxu0 %v4244
    %5638 = vmatpush.bf16.msra.mxu0 %v4243
    %5639 = vmatpush.bf16.msra.mxu0 %v4242
    %5640 = vmatpush.bf16.msra.mxu0 %v4241
    %5641 = vmatpush.bf16.msra.mxu0 %v4240
    %5642 = vmatpush.bf16.msra.mxu0 %v4239
    %5643 = vmatpush.bf16.msra.mxu0 %v4238
    %5644 = vmatpush.bf16.msra.mxu0 %v4237
    %5645 = vmatmul.bf16.gmra.mxu0 %v278
    %v5646 = vpop.f32.mrf.mxu0
    %v5647 = vadd.f32 %v5634, %v5646
    %v5648 = vpop.f32.mrf.mxu0
    %5649 = vdwg.mxu0
    %5650 = vmatpush.bf16.msra.mxu0 %v4252
    %5651 = vmatpush.bf16.msra.mxu0 %v4251
    %5652 = vmatpush.bf16.msra.mxu0 %v4250
    %5653 = vmatpush.bf16.msra.mxu0 %v4249
    %5654 = vmatpush.bf16.msra.mxu0 %v4248
    %5655 = vmatpush.bf16.msra.mxu0 %v4247
    %5656 = vmatpush.bf16.msra.mxu0 %v4246
    %5657 = vmatpush.bf16.msra.mxu0 %v4245
    %5658 = vmatmul.bf16.gmra.mxu0 %v279
    %v5659 = vpop.f32.mrf.mxu0
    %v5660 = vadd.f32 %v5647, %v5659
    %v5661 = vpop.f32.mrf.mxu0
    %5662 = vdwg.mxu0
    %5663 = vmatpush.bf16.msra.mxu0 %v4260
    %5664 = vmatpush.bf16.msra.mxu0 %v4259
    %5665 = vmatpush.bf16.msra.mxu0 %v4258
    %5666 = vmatpush.bf16.msra.mxu0 %v4257
    %5667 = vmatpush.bf16.msra.mxu0 %v4256
    %5668 = vmatpush.bf16.msra.mxu0 %v4255
    %5669 = vmatpush.bf16.msra.mxu0 %v4254
    %5670 = vmatpush.bf16.msra.mxu0 %v4253
    %5671 = vmatmul.bf16.gmra.mxu0 %v280
    %v5672 = vpop.f32.mrf.mxu0
    %v5673 = vadd.f32 %v5660, %v5672
    %v5674 = vpop.f32.mrf.mxu0
    %5675 = vdwg.mxu0
    %5676 = vmatpush.bf16.msra.mxu0 %v4268
    %5677 = vmatpush.bf16.msra.mxu0 %v4267
    %5678 = vmatpush.bf16.msra.mxu0 %v4266
    %5679 = vmatpush.bf16.msra.mxu0 %v4265
    %5680 = vmatpush.bf16.msra.mxu0 %v4264
    %5681 = vmatpush.bf16.msra.mxu0 %v4263
    %5682 = vmatpush.bf16.msra.mxu0 %v4262
    %5683 = vmatpush.bf16.msra.mxu0 %v4261
    %5684 = vmatmul.bf16.gmra.mxu0 %v281
    %v5685 = vpop.f32.mrf.mxu0
    %v5686 = vadd.f32 %v5673, %v5685
    %v5687 = vpop.f32.mrf.mxu0
    %5688 = vdwg.mxu0
    %5689 = vmatpush.bf16.msra.mxu0 %v4276
    %5690 = vmatpush.bf16.msra.mxu0 %v4275
    %5691 = vmatpush.bf16.msra.mxu0 %v4274
    %5692 = vmatpush.bf16.msra.mxu0 %v4273
    %5693 = vmatpush.bf16.msra.mxu0 %v4272
    %5694 = vmatpush.bf16.msra.mxu0 %v4271
    %5695 = vmatpush.bf16.msra.mxu0 %v4270
    %5696 = vmatpush.bf16.msra.mxu0 %v4269
    %5697 = vmatmul.bf16.gmra.mxu0 %v282
    %v5698 = vpop.f32.mrf.mxu0
    %v5699 = vadd.f32 %v5686, %v5698
    %v5700 = vpop.f32.mrf.mxu0
    %5701 = vdwg.mxu0
    %5702 = vmatpush.bf16.msra.mxu0 %v4284
    %5703 = vmatpush.bf16.msra.mxu0 %v4283
    %5704 = vmatpush.bf16.msra.mxu0 %v4282
    %5705 = vmatpush.bf16.msra.mxu0 %v4281
    %5706 = vmatpush.bf16.msra.mxu0 %v4280
    %5707 = vmatpush.bf16.msra.mxu0 %v4279
    %5708 = vmatpush.bf16.msra.mxu0 %v4278
    %5709 = vmatpush.bf16.msra.mxu0 %v4277
    %5710 = vmatmul.bf16.gmra.mxu0 %v283
    %v5711 = vpop.f32.mrf.mxu0
    %v5712 = vadd.f32 %v5699, %v5711
    %v5713 = vpop.f32.mrf.mxu0
    %5714 = vdwg.mxu0
    %5715 = vmatpush.bf16.msra.mxu0 %v4292
    %5716 = vmatpush.bf16.msra.mxu0 %v4291
    %5717 = vmatpush.bf16.msra.mxu0 %v4290
    %5718 = vmatpush.bf16.msra.mxu0 %v4289
    %5719 = vmatpush.bf16.msra.mxu0 %v4288
    %5720 = vmatpush.bf16.msra.mxu0 %v4287
    %5721 = vmatpush.bf16.msra.mxu0 %v4286
    %5722 = vmatpush.bf16.msra.mxu0 %v4285
    %5723 = vmatmul.bf16.gmra.mxu0 %v284
    %v5724 = vpop.f32.mrf.mxu0
    %v5725 = vadd.f32 %v5712, %v5724
    %v5726 = vpop.f32.mrf.mxu0
    %5727 = vdwg.mxu0
    %5728 = vmatpush.bf16.msra.mxu0 %v4300
    %5729 = vmatpush.bf16.msra.mxu0 %v4299
    %5730 = vmatpush.bf16.msra.mxu0 %v4298
    %5731 = vmatpush.bf16.msra.mxu0 %v4297
    %5732 = vmatpush.bf16.msra.mxu0 %v4296
    %5733 = vmatpush.bf16.msra.mxu0 %v4295
    %5734 = vmatpush.bf16.msra.mxu0 %v4294
    %5735 = vmatpush.bf16.msra.mxu0 %v4293
    %5736 = vmatmul.bf16.gmra.mxu0 %v285
    %v5737 = vpop.f32.mrf.mxu0
    %v5738 = vadd.f32 %v5725, %v5737
    %v5739 = vpop.f32.mrf.mxu0
    %5740 = vdwg.mxu0
    %5741 = vmatpush.bf16.msra.mxu0 %v4308
    %5742 = vmatpush.bf16.msra.mxu0 %v4307
    %5743 = vmatpush.bf16.msra.mxu0 %v4306
    %5744 = vmatpush.bf16.msra.mxu0 %v4305
    %5745 = vmatpush.bf16.msra.mxu0 %v4304
    %5746 = vmatpush.bf16.msra.mxu0 %v4303
    %5747 = vmatpush.bf16.msra.mxu0 %v4302
    %5748 = vmatpush.bf16.msra.mxu0 %v4301
    %5749 = vmatmul.bf16.gmra.mxu0 %v286
    %v5750 = vpop.f32.mrf.mxu0
    %v5751 = vadd.f32 %v5738, %v5750
    %v5752 = vpop.f32.mrf.mxu0
    %5753 = vdwg.mxu0
    %5754 = vmatpush.bf16.msra.mxu0 %v4316
    %5755 = vmatpush.bf16.msra.mxu0 %v4315
    %5756 = vmatpush.bf16.msra.mxu0 %v4314
    %5757 = vmatpush.bf16.msra.mxu0 %v4313
    %5758 = vmatpush.bf16.msra.mxu0 %v4312
    %5759 = vmatpush.bf16.msra.mxu0 %v4311
    %5760 = vmatpush.bf16.msra.mxu0 %v4310
    %5761 = vmatpush.bf16.msra.mxu0 %v4309
    %5762 = vmatmul.bf16.gmra.mxu0 %v287
    %v5763 = vpop.f32.mrf.mxu0
    %v5764 = vadd.f32 %v5751, %v5763
    %v5765 = vpop.f32.mrf.mxu0
    %5766 = vdwg.mxu0
    %5767 = vmatpush.bf16.msra.mxu0 %v4324
    %5768 = vmatpush.bf16.msra.mxu0 %v4323
    %5769 = vmatpush.bf16.msra.mxu0 %v4322
    %5770 = vmatpush.bf16.msra.mxu0 %v4321
    %5771 = vmatpush.bf16.msra.mxu0 %v4320
    %5772 = vmatpush.bf16.msra.mxu0 %v4319
    %5773 = vmatpush.bf16.msra.mxu0 %v4318
    %5774 = vmatpush.bf16.msra.mxu0 %v4317
    %5775 = vmatmul.bf16.gmra.mxu0 %v288
    %v5776 = vpop.f32.mrf.mxu0
    %v5777 = vadd.f32 %v5764, %v5776
    %v5778 = vpop.f32.mrf.mxu0
    %5779 = vdwg.mxu0
    %5780 = vmatpush.bf16.msra.mxu0 %v4332
    %5781 = vmatpush.bf16.msra.mxu0 %v4331
    %5782 = vmatpush.bf16.msra.mxu0 %v4330
    %5783 = vmatpush.bf16.msra.mxu0 %v4329
    %5784 = vmatpush.bf16.msra.mxu0 %v4328
    %5785 = vmatpush.bf16.msra.mxu0 %v4327
    %5786 = vmatpush.bf16.msra.mxu0 %v4326
    %5787 = vmatpush.bf16.msra.mxu0 %v4325
    %5788 = vmatmul.bf16.gmra.mxu0 %v289
    %v5789 = vpop.f32.mrf.mxu0
    %v5790 = vadd.f32 %v5777, %v5789
    %v5791 = vpop.f32.mrf.mxu0
    %5792 = vdwg.mxu0
    %5793 = vmatpush.bf16.msra.mxu0 %v4340
    %5794 = vmatpush.bf16.msra.mxu0 %v4339
    %5795 = vmatpush.bf16.msra.mxu0 %v4338
    %5796 = vmatpush.bf16.msra.mxu0 %v4337
    %5797 = vmatpush.bf16.msra.mxu0 %v4336
    %5798 = vmatpush.bf16.msra.mxu0 %v4335
    %5799 = vmatpush.bf16.msra.mxu0 %v4334
    %5800 = vmatpush.bf16.msra.mxu0 %v4333
    %5801 = vmatmul.bf16.gmra.mxu0 %v290
    %v5802 = vpop.f32.mrf.mxu0
    %v5803 = vadd.f32 %v5790, %v5802
    %v5804 = vpop.f32.mrf.mxu0
    %5805 = vdwg.mxu0
    %5806 = vmatpush.bf16.msra.mxu0 %v4348
    %5807 = vmatpush.bf16.msra.mxu0 %v4347
    %5808 = vmatpush.bf16.msra.mxu0 %v4346
    %5809 = vmatpush.bf16.msra.mxu0 %v4345
    %5810 = vmatpush.bf16.msra.mxu0 %v4344
    %5811 = vmatpush.bf16.msra.mxu0 %v4343
    %5812 = vmatpush.bf16.msra.mxu0 %v4342
    %5813 = vmatpush.bf16.msra.mxu0 %v4341
    %5814 = vmatmul.bf16.gmra.mxu0 %v291
    %v5815 = vpop.f32.mrf.mxu0
    %v5816 = vadd.f32 %v5803, %v5815
    %v5817 = vpop.f32.mrf.mxu0
    %5818 = vdwg.mxu0
    %5819 = vmatpush.bf16.msra.mxu0 %v4356
    %5820 = vmatpush.bf16.msra.mxu0 %v4355
    %5821 = vmatpush.bf16.msra.mxu0 %v4354
    %5822 = vmatpush.bf16.msra.mxu0 %v4353
    %5823 = vmatpush.bf16.msra.mxu0 %v4352
    %5824 = vmatpush.bf16.msra.mxu0 %v4351
    %5825 = vmatpush.bf16.msra.mxu0 %v4350
    %5826 = vmatpush.bf16.msra.mxu0 %v4349
    %5827 = vmatmul.bf16.gmra.mxu0 %v292
    %v5828 = vpop.f32.mrf.mxu0
    %v5829 = vadd.f32 %v5816, %v5828
    %v5830 = vpop.f32.mrf.mxu0
    %5831 = vdwg.mxu0
    %5832 = vmatpush.bf16.msra.mxu0 %v4364
    %5833 = vmatpush.bf16.msra.mxu0 %v4363
    %5834 = vmatpush.bf16.msra.mxu0 %v4362
    %5835 = vmatpush.bf16.msra.mxu0 %v4361
    %5836 = vmatpush.bf16.msra.mxu0 %v4360
    %5837 = vmatpush.bf16.msra.mxu0 %v4359
    %5838 = vmatpush.bf16.msra.mxu0 %v4358
    %5839 = vmatpush.bf16.msra.mxu0 %v4357
    %5840 = vmatmul.bf16.gmra.mxu0 %v293
    %v5841 = vpop.f32.mrf.mxu0
    %v5842 = vadd.f32 %v5829, %v5841
    %v5843 = vpop.f32.mrf.mxu0
    %5844 = vdwg.mxu0
    %5845 = vmatpush.bf16.msra.mxu0 %v4372
    %5846 = vmatpush.bf16.msra.mxu0 %v4371
    %5847 = vmatpush.bf16.msra.mxu0 %v4370
    %5848 = vmatpush.bf16.msra.mxu0 %v4369
    %5849 = vmatpush.bf16.msra.mxu0 %v4368
    %5850 = vmatpush.bf16.msra.mxu0 %v4367
    %5851 = vmatpush.bf16.msra.mxu0 %v4366
    %5852 = vmatpush.bf16.msra.mxu0 %v4365
    %5853 = vmatmul.bf16.gmra.mxu0 %v294
    %v5854 = vpop.f32.mrf.mxu0
    %v5855 = vadd.f32 %v5842, %v5854
    %v5856 = vpop.f32.mrf.mxu0
    %5857 = vdwg.mxu0
    %5858 = vmatpush.bf16.msra.mxu0 %v4380
    %5859 = vmatpush.bf16.msra.mxu0 %v4379
    %5860 = vmatpush.bf16.msra.mxu0 %v4378
    %5861 = vmatpush.bf16.msra.mxu0 %v4377
    %5862 = vmatpush.bf16.msra.mxu0 %v4376
    %5863 = vmatpush.bf16.msra.mxu0 %v4375
    %5864 = vmatpush.bf16.msra.mxu0 %v4374
    %5865 = vmatpush.bf16.msra.mxu0 %v4373
    %5866 = vmatmul.bf16.gmra.mxu0 %v295
    %v5867 = vpop.f32.mrf.mxu0
    %v5868 = vadd.f32 %v5855, %v5867
    %v5869 = vpop.f32.mrf.mxu0
    %5870 = vdwg.mxu0
    %5871 = vmatpush.bf16.msra.mxu0 %v4388
    %5872 = vmatpush.bf16.msra.mxu0 %v4387
    %5873 = vmatpush.bf16.msra.mxu0 %v4386
    %5874 = vmatpush.bf16.msra.mxu0 %v4385
    %5875 = vmatpush.bf16.msra.mxu0 %v4384
    %5876 = vmatpush.bf16.msra.mxu0 %v4383
    %5877 = vmatpush.bf16.msra.mxu0 %v4382
    %5878 = vmatpush.bf16.msra.mxu0 %v4381
    %5879 = vmatmul.bf16.gmra.mxu0 %v296
    %v5880 = vpop.f32.mrf.mxu0
    %v5881 = vadd.f32 %v5868, %v5880
    %v5882 = vpop.f32.mrf.mxu0
    %5883 = vdwg.mxu0
    %5884 = vmatpush.bf16.msra.mxu0 %v4396
    %5885 = vmatpush.bf16.msra.mxu0 %v4395
    %5886 = vmatpush.bf16.msra.mxu0 %v4394
    %5887 = vmatpush.bf16.msra.mxu0 %v4393
    %5888 = vmatpush.bf16.msra.mxu0 %v4392
    %5889 = vmatpush.bf16.msra.mxu0 %v4391
    %5890 = vmatpush.bf16.msra.mxu0 %v4390
    %5891 = vmatpush.bf16.msra.mxu0 %v4389
    %5892 = vmatmul.bf16.gmra.mxu0 %v297
    %v5893 = vpop.f32.mrf.mxu0
    %v5894 = vadd.f32 %v5881, %v5893
    %v5895 = vpop.f32.mrf.mxu0
    %5896 = vdwg.mxu0
    %5897 = vmatpush.bf16.msra.mxu0 %v4404
    %5898 = vmatpush.bf16.msra.mxu0 %v4403
    %5899 = vmatpush.bf16.msra.mxu0 %v4402
    %5900 = vmatpush.bf16.msra.mxu0 %v4401
    %5901 = vmatpush.bf16.msra.mxu0 %v4400
    %5902 = vmatpush.bf16.msra.mxu0 %v4399
    %5903 = vmatpush.bf16.msra.mxu0 %v4398
    %5904 = vmatpush.bf16.msra.mxu0 %v4397
    %5905 = vmatmul.bf16.gmra.mxu0 %v298
    %v5906 = vpop.f32.mrf.mxu0
    %v5907 = vadd.f32 %v5894, %v5906
    %v5908 = vpop.f32.mrf.mxu0
    %5909 = vdwg.mxu0
    %5910 = vmatpush.bf16.msra.mxu0 %v4412
    %5911 = vmatpush.bf16.msra.mxu0 %v4411
    %5912 = vmatpush.bf16.msra.mxu0 %v4410
    %5913 = vmatpush.bf16.msra.mxu0 %v4409
    %5914 = vmatpush.bf16.msra.mxu0 %v4408
    %5915 = vmatpush.bf16.msra.mxu0 %v4407
    %5916 = vmatpush.bf16.msra.mxu0 %v4406
    %5917 = vmatpush.bf16.msra.mxu0 %v4405
    %5918 = vmatmul.bf16.gmra.mxu0 %v299
    %v5919 = vpop.f32.mrf.mxu0
    %v5920 = vadd.f32 %v5907, %v5919
    %v5921 = vpop.f32.mrf.mxu0
    %5922 = vdwg.mxu0
    %5923 = vmatpush.bf16.msra.mxu0 %v4420
    %5924 = vmatpush.bf16.msra.mxu0 %v4419
    %5925 = vmatpush.bf16.msra.mxu0 %v4418
    %5926 = vmatpush.bf16.msra.mxu0 %v4417
    %5927 = vmatpush.bf16.msra.mxu0 %v4416
    %5928 = vmatpush.bf16.msra.mxu0 %v4415
    %5929 = vmatpush.bf16.msra.mxu0 %v4414
    %5930 = vmatpush.bf16.msra.mxu0 %v4413
    %5931 = vmatmul.bf16.gmra.mxu0 %v300
    %v5932 = vpop.f32.mrf.mxu0
    %v5933 = vadd.f32 %v5920, %v5932
    %v5934 = vpop.f32.mrf.mxu0
    %5935 = vdwg.mxu0
    %5936 = vmatpush.bf16.msra.mxu0 %v4428
    %5937 = vmatpush.bf16.msra.mxu0 %v4427
    %5938 = vmatpush.bf16.msra.mxu0 %v4426
    %5939 = vmatpush.bf16.msra.mxu0 %v4425
    %5940 = vmatpush.bf16.msra.mxu0 %v4424
    %5941 = vmatpush.bf16.msra.mxu0 %v4423
    %5942 = vmatpush.bf16.msra.mxu0 %v4422
    %5943 = vmatpush.bf16.msra.mxu0 %v4421
    %5944 = vmatmul.bf16.gmra.mxu0 %v301
    %v5945 = vpop.f32.mrf.mxu0
    %v5946 = vadd.f32 %v5933, %v5945
    %v5947 = vpop.f32.mrf.mxu0
    %5948 = vdwg.mxu0
    %5949 = vmatpush.bf16.msra.mxu0 %v4436
    %5950 = vmatpush.bf16.msra.mxu0 %v4435
    %5951 = vmatpush.bf16.msra.mxu0 %v4434
    %5952 = vmatpush.bf16.msra.mxu0 %v4433
    %5953 = vmatpush.bf16.msra.mxu0 %v4432
    %5954 = vmatpush.bf16.msra.mxu0 %v4431
    %5955 = vmatpush.bf16.msra.mxu0 %v4430
    %5956 = vmatpush.bf16.msra.mxu0 %v4429
    %5957 = vmatmul.bf16.gmra.mxu0 %v302
    %v5958 = vpop.f32.mrf.mxu0
    %v5959 = vadd.f32 %v5946, %v5958
    %v5960 = vpop.f32.mrf.mxu0
    %5961 = vdwg.mxu0
    %5962 = vmatpush.bf16.msra.mxu0 %v4444
    %5963 = vmatpush.bf16.msra.mxu0 %v4443
    %5964 = vmatpush.bf16.msra.mxu0 %v4442
    %5965 = vmatpush.bf16.msra.mxu0 %v4441
    %5966 = vmatpush.bf16.msra.mxu0 %v4440
    %5967 = vmatpush.bf16.msra.mxu0 %v4439
    %5968 = vmatpush.bf16.msra.mxu0 %v4438
    %5969 = vmatpush.bf16.msra.mxu0 %v4437
    %5970 = vmatmul.bf16.gmra.mxu0 %v303
    %v5971 = vpop.f32.mrf.mxu0
    %v5972 = vadd.f32 %v5959, %v5971
    %v5973 = vpop.f32.mrf.mxu0
    %5974 = vdwg.mxu0
    %5975 = vmatpush.bf16.msra.mxu0 %v4452
    %5976 = vmatpush.bf16.msra.mxu0 %v4451
    %5977 = vmatpush.bf16.msra.mxu0 %v4450
    %5978 = vmatpush.bf16.msra.mxu0 %v4449
    %5979 = vmatpush.bf16.msra.mxu0 %v4448
    %5980 = vmatpush.bf16.msra.mxu0 %v4447
    %5981 = vmatpush.bf16.msra.mxu0 %v4446
    %5982 = vmatpush.bf16.msra.mxu0 %v4445
    %5983 = vmatmul.bf16.gmra.mxu0 %v304
    %v5984 = vpop.f32.mrf.mxu0
    %v5985 = vadd.f32 %v5972, %v5984
    %v5986 = vpop.f32.mrf.mxu0
    %5987 = vdwg.mxu0
    %5988 = vmatpush.bf16.msra.mxu0 %v4460
    %5989 = vmatpush.bf16.msra.mxu0 %v4459
    %5990 = vmatpush.bf16.msra.mxu0 %v4458
    %5991 = vmatpush.bf16.msra.mxu0 %v4457
    %5992 = vmatpush.bf16.msra.mxu0 %v4456
    %5993 = vmatpush.bf16.msra.mxu0 %v4455
    %5994 = vmatpush.bf16.msra.mxu0 %v4454
    %5995 = vmatpush.bf16.msra.mxu0 %v4453
    %5996 = vmatmul.bf16.gmra.mxu0 %v305
    %v5997 = vpop.f32.mrf.mxu0
    %v5998 = vadd.f32 %v5985, %v5997
    %v5999 = vpop.f32.mrf.mxu0
    %6000 = vdwg.mxu0
    %6001 = vmatpush.bf16.msra.mxu0 %v4468
    %6002 = vmatpush.bf16.msra.mxu0 %v4467
    %6003 = vmatpush.bf16.msra.mxu0 %v4466
    %6004 = vmatpush.bf16.msra.mxu0 %v4465
    %6005 = vmatpush.bf16.msra.mxu0 %v4464
    %6006 = vmatpush.bf16.msra.mxu0 %v4463
    %6007 = vmatpush.bf16.msra.mxu0 %v4462
    %6008 = vmatpush.bf16.msra.mxu0 %v4461
    %6009 = vmatmul.bf16.gmra.mxu0 %v306
    %v6010 = vpop.f32.mrf.mxu0
    %v6011 = vadd.f32 %v5998, %v6010
    %v6012 = vpop.f32.mrf.mxu0
    %6013 = vdwg.mxu0
    %6014 = vmatpush.bf16.msra.mxu0 %v4476
    %6015 = vmatpush.bf16.msra.mxu0 %v4475
    %6016 = vmatpush.bf16.msra.mxu0 %v4474
    %6017 = vmatpush.bf16.msra.mxu0 %v4473
    %6018 = vmatpush.bf16.msra.mxu0 %v4472
    %6019 = vmatpush.bf16.msra.mxu0 %v4471
    %6020 = vmatpush.bf16.msra.mxu0 %v4470
    %6021 = vmatpush.bf16.msra.mxu0 %v4469
    %6022 = vmatmul.bf16.gmra.mxu0 %v307
    %v6023 = vpop.f32.mrf.mxu0
    %v6024 = vadd.f32 %v6011, %v6023
    %v6025 = vpop.f32.mrf.mxu0
    %6026 = vdwg.mxu0
    %6027 = vmatpush.bf16.msra.mxu0 %v4484
    %6028 = vmatpush.bf16.msra.mxu0 %v4483
    %6029 = vmatpush.bf16.msra.mxu0 %v4482
    %6030 = vmatpush.bf16.msra.mxu0 %v4481
    %6031 = vmatpush.bf16.msra.mxu0 %v4480
    %6032 = vmatpush.bf16.msra.mxu0 %v4479
    %6033 = vmatpush.bf16.msra.mxu0 %v4478
    %6034 = vmatpush.bf16.msra.mxu0 %v4477
    %6035 = vmatmul.bf16.gmra.mxu0 %v308
    %v6036 = vpop.f32.mrf.mxu0
    %v6037 = vadd.f32 %v6024, %v6036
    %v6038 = vpop.f32.mrf.mxu0
    %6039 = vdwg.mxu0
    %6040 = vmatpush.bf16.msra.mxu0 %v4492
    %6041 = vmatpush.bf16.msra.mxu0 %v4491
    %6042 = vmatpush.bf16.msra.mxu0 %v4490
    %6043 = vmatpush.bf16.msra.mxu0 %v4489
    %6044 = vmatpush.bf16.msra.mxu0 %v4488
    %6045 = vmatpush.bf16.msra.mxu0 %v4487
    %6046 = vmatpush.bf16.msra.mxu0 %v4486
    %6047 = vmatpush.bf16.msra.mxu0 %v4485
    %6048 = vmatmul.bf16.gmra.mxu0 %v309
    %v6049 = vpop.f32.mrf.mxu0
    %v6050 = vadd.f32 %v6037, %v6049
    %v6051 = vpop.f32.mrf.mxu0
    %6052 = vdwg.mxu0
    %6053 = vmatpush.bf16.msra.mxu0 %v4500
    %6054 = vmatpush.bf16.msra.mxu0 %v4499
    %6055 = vmatpush.bf16.msra.mxu0 %v4498
    %6056 = vmatpush.bf16.msra.mxu0 %v4497
    %6057 = vmatpush.bf16.msra.mxu0 %v4496
    %6058 = vmatpush.bf16.msra.mxu0 %v4495
    %6059 = vmatpush.bf16.msra.mxu0 %v4494
    %6060 = vmatpush.bf16.msra.mxu0 %v4493
    %6061 = vmatmul.bf16.gmra.mxu0 %v310
    %v6062 = vpop.f32.mrf.mxu0
    %v6063 = vadd.f32 %v6050, %v6062
    %v6064 = vpop.f32.mrf.mxu0
    %6065 = vdwg.mxu0
    %6066 = vmatpush.bf16.msra.mxu0 %v4508
    %6067 = vmatpush.bf16.msra.mxu0 %v4507
    %6068 = vmatpush.bf16.msra.mxu0 %v4506
    %6069 = vmatpush.bf16.msra.mxu0 %v4505
    %6070 = vmatpush.bf16.msra.mxu0 %v4504
    %6071 = vmatpush.bf16.msra.mxu0 %v4503
    %6072 = vmatpush.bf16.msra.mxu0 %v4502
    %6073 = vmatpush.bf16.msra.mxu0 %v4501
    %6074 = vmatmul.bf16.gmra.mxu0 %v311
    %v6075 = vpop.f32.mrf.mxu0
    %v6076 = vadd.f32 %v6063, %v6075
    %v6077 = vpop.f32.mrf.mxu0
    %6078 = vdwg.mxu0
    %6079 = vmatpush.bf16.msra.mxu0 %v4516
    %6080 = vmatpush.bf16.msra.mxu0 %v4515
    %6081 = vmatpush.bf16.msra.mxu0 %v4514
    %6082 = vmatpush.bf16.msra.mxu0 %v4513
    %6083 = vmatpush.bf16.msra.mxu0 %v4512
    %6084 = vmatpush.bf16.msra.mxu0 %v4511
    %6085 = vmatpush.bf16.msra.mxu0 %v4510
    %6086 = vmatpush.bf16.msra.mxu0 %v4509
    %6087 = vmatmul.bf16.gmra.mxu0 %v312
    %v6088 = vpop.f32.mrf.mxu0
    %v6089 = vadd.f32 %v6076, %v6088
    %v6090 = vpop.f32.mrf.mxu0
    %6091 = vdwg.mxu0
    %v6092 = vmax.f32 %v6089, 0.0
    %v6093 = vpack.c.bf16 %v6092, %v6092
    %v6094 = vld [vmem:[#allocation8] sm:$0xf]
    %v6095 = vld [vmem:[#allocation8 + $0x4] sm:$0xf]
    %v6096 = vld [vmem:[#allocation8 + $0x8] sm:$0xf]
    %v6097 = vld [vmem:[#allocation8 + $0xc] sm:$0xf]
    %v6098 = vld [vmem:[#allocation8 + $0x10] sm:$0xf]
    %v6099 = vld [vmem:[#allocation8 + $0x14] sm:$0xf]
    %v6100 = vld [vmem:[#allocation8 + $0x18] sm:$0xf]
    %v6101 = vld [vmem:[#allocation8 + $0x1c] sm:$0xf]
    %v6102 = vld [vmem:[#allocation8 + $0x20] sm:$0xf]
    %v6103 = vld [vmem:[#allocation8 + $0x24] sm:$0xf]
    %v6104 = vld [vmem:[#allocation8 + $0x28] sm:$0xf]
    %v6105 = vld [vmem:[#allocation8 + $0x2c] sm:$0xf]
    %v6106 = vld [vmem:[#allocation8 + $0x30] sm:$0xf]
    %v6107 = vld [vmem:[#allocation8 + $0x34] sm:$0xf]
    %v6108 = vld [vmem:[#allocation8 + $0x38] sm:$0xf]
    %v6109 = vld [vmem:[#allocation8 + $0x3c] sm:$0xf]
    %v6110 = vld [vmem:[#allocation10] sm:$0x1]
    %v6112 = vperm.slane %v6110, 0
    %v6130 = vunpack.c.l.b16 %v6094
    %v6131 = vunpack.c.l.b16 %v6095
    %v6132 = vunpack.c.l.b16 %v6096
    %v6133 = vunpack.c.l.b16 %v6097
    %v6134 = vunpack.c.l.b16 %v6098
    %v6135 = vunpack.c.l.b16 %v6099
    %v6136 = vunpack.c.l.b16 %v6100
    %v6137 = vunpack.c.l.b16 %v6101
    %v6138 = vunpack.c.l.b16 %v6102
    %v6139 = vunpack.c.l.b16 %v6103
    %v6140 = vunpack.c.l.b16 %v6104
    %v6141 = vunpack.c.l.b16 %v6105
    %v6142 = vunpack.c.l.b16 %v6106
    %v6143 = vunpack.c.l.b16 %v6107
    %v6144 = vunpack.c.l.b16 %v6108
    %v6145 = vunpack.c.l.b16 %v6109
    %v6146 = vpack.c.b16 %v6131, %v6130
    %v6147 = vpack.c.b16 %v6133, %v6132
    %v6148 = vpack.c.b16 %v6135, %v6134
    %v6149 = vpack.c.b16 %v6137, %v6136
    %v6150 = vpack.c.b16 %v6139, %v6138
    %v6151 = vpack.c.b16 %v6141, %v6140
    %v6152 = vpack.c.b16 %v6143, %v6142
    %v6153 = vpack.c.b16 %v6145, %v6144
    %6162 = vmatpush.bf16.msra.mxu0 %v6153
    %6163 = vmatpush.bf16.msra.mxu0 %v6152
    %6164 = vmatpush.bf16.msra.mxu0 %v6151
    %6165 = vmatpush.bf16.msra.mxu0 %v6150
    %6166 = vmatpush.bf16.msra.mxu0 %v6149
    %6167 = vmatpush.bf16.msra.mxu0 %v6148
    %6168 = vmatpush.bf16.msra.mxu0 %v6147
    %6169 = vmatpush.bf16.msra.mxu0 %v6146
    %6170 = vmatmul.bf16.gmra.mxu0 %v6093
    %v6171 = vpop.f32.mrf.mxu0
    %v6172 = vadd.f32 %v6112, %v6171
    %v6173 = vpop.f32.mrf.mxu0
    %6174 = vdwg.mxu0
    %v6175 = vtanh.pop %v6172
    %v6176 = vpack.c.bf16 %v6175, %v6175
    %v6177 = vld [vmem:[#allocation11] sm:$0xf]
    %v6178 = vld [vmem:[#allocation11 + $0x4] sm:$0xf]
    %v6179 = vld [vmem:[#allocation11 + $0x8] sm:$0xf]
    %v6180 = vld [vmem:[#allocation11 + $0xc] sm:$0xf]
    %v6181 = vld [vmem:[#allocation11 + $0x10] sm:$0xf]
    %v6182 = vld [vmem:[#allocation11 + $0x14] sm:$0xf]
    %v6183 = vld [vmem:[#allocation11 + $0x18] sm:$0xf]
    %v6184 = vld [vmem:[#allocation11 + $0x1c] sm:$0xf]
    %v6185 = vld [vmem:[#allocation11 + $0x20] sm:$0xf]
    %v6186 = vld [vmem:[#allocation11 + $0x24] sm:$0xf]
    %v6187 = vld [vmem:[#allocation11 + $0x28] sm:$0xf]
    %v6188 = vld [vmem:[#allocation11 + $0x2c] sm:$0xf]
    %v6189 = vld [vmem:[#allocation11 + $0x30] sm:$0xf]
    %v6190 = vld [vmem:[#allocation11 + $0x34] sm:$0xf]
    %v6191 = vld [vmem:[#allocation11 + $0x38] sm:$0xf]
    %v6192 = vld [vmem:[#allocation11 + $0x3c] sm:$0xf]
    %v6193 = vld [vmem:[#allocation13] sm:$0x1]
    %v6195 = vperm.slane %v6193, 0
    %v6213 = vunpack.c.l.b16 %v6177
    %v6214 = vunpack.c.l.b16 %v6178
    %v6215 = vunpack.c.l.b16 %v6179
    %v6216 = vunpack.c.l.b16 %v6180
    %v6217 = vunpack.c.l.b16 %v6181
    %v6218 = vunpack.c.l.b16 %v6182
    %v6219 = vunpack.c.l.b16 %v6183
    %v6220 = vunpack.c.l.b16 %v6184
    %v6221 = vunpack.c.l.b16 %v6185
    %v6222 = vunpack.c.l.b16 %v6186
    %v6223 = vunpack.c.l.b16 %v6187
    %v6224 = vunpack.c.l.b16 %v6188
    %v6225 = vunpack.c.l.b16 %v6189
    %v6226 = vunpack.c.l.b16 %v6190
    %v6227 = vunpack.c.l.b16 %v6191
    %v6228 = vunpack.c.l.b16 %v6192
    %v6229 = vpack.c.b16 %v6214, %v6213
    %v6230 = vpack.c.b16 %v6216, %v6215
    %v6231 = vpack.c.b16 %v6218, %v6217
    %v6232 = vpack.c.b16 %v6220, %v6219
    %v6233 = vpack.c.b16 %v6222, %v6221
    %v6234 = vpack.c.b16 %v6224, %v6223
    %v6235 = vpack.c.b16 %v6226, %v6225
    %v6236 = vpack.c.b16 %v6228, %v6227
    %6245 = vmatpush.bf16.msra.mxu0 %v6236
    %6246 = vmatpush.bf16.msra.mxu0 %v6235
    %6247 = vmatpush.bf16.msra.mxu0 %v6234
    %6248 = vmatpush.bf16.msra.mxu0 %v6233
    %6249 = vmatpush.bf16.msra.mxu0 %v6232
    %6250 = vmatpush.bf16.msra.mxu0 %v6231
    %6251 = vmatpush.bf16.msra.mxu0 %v6230
    %6252 = vmatpush.bf16.msra.mxu0 %v6229
    %6253 = vmatmul.bf16.gmra.mxu0 %v6176
    %v6254 = vpop.f32.mrf.mxu0
    %v6255 = vadd.f32 %v6195, %v6254
    %v6256 = vpop.f32.mrf.mxu0
    %6257 = vdwg.mxu0
    %v6258 = vmax.f32 %v6255, 0.0
    %v6259 = vpack.c.bf16 %v6258, %v6258
    %v6260 = vld [vmem:[#allocation14] sm:$0xf]
    %v6261 = vld [vmem:[#allocation14 + $0x4] sm:$0xf]
    %v6262 = vld [vmem:[#allocation14 + $0x8] sm:$0xf]
    %v6263 = vld [vmem:[#allocation14 + $0xc] sm:$0xf]
    %v6264 = vld [vmem:[#allocation14 + $0x10] sm:$0xf]
    %v6265 = vld [vmem:[#allocation14 + $0x14] sm:$0xf]
    %v6266 = vld [vmem:[#allocation14 + $0x18] sm:$0xf]
    %v6267 = vld [vmem:[#allocation14 + $0x1c] sm:$0xf]
    %v6268 = vld [vmem:[#allocation14 + $0x20] sm:$0xf]
    %v6269 = vld [vmem:[#allocation14 + $0x24] sm:$0xf]
    %v6270 = vld [vmem:[#allocation14 + $0x28] sm:$0xf]
    %v6271 = vld [vmem:[#allocation14 + $0x2c] sm:$0xf]
    %v6272 = vld [vmem:[#allocation14 + $0x30] sm:$0xf]
    %v6273 = vld [vmem:[#allocation14 + $0x34] sm:$0xf]
    %v6274 = vld [vmem:[#allocation14 + $0x38] sm:$0xf]
    %v6275 = vld [vmem:[#allocation14 + $0x3c] sm:$0xf]
    %v6276 = vld [vmem:[#allocation16] sm:$0x1]
    %v6278 = vperm.slane %v6276, 0
    %v6296 = vunpack.c.l.b16 %v6260
    %v6297 = vunpack.c.l.b16 %v6261
    %v6298 = vunpack.c.l.b16 %v6262
    %v6299 = vunpack.c.l.b16 %v6263
    %v6300 = vunpack.c.l.b16 %v6264
    %v6301 = vunpack.c.l.b16 %v6265
    %v6302 = vunpack.c.l.b16 %v6266
    %v6303 = vunpack.c.l.b16 %v6267
    %v6304 = vunpack.c.l.b16 %v6268
    %v6305 = vunpack.c.l.b16 %v6269
    %v6306 = vunpack.c.l.b16 %v6270
    %v6307 = vunpack.c.l.b16 %v6271
    %v6308 = vunpack.c.l.b16 %v6272
    %v6309 = vunpack.c.l.b16 %v6273
    %v6310 = vunpack.c.l.b16 %v6274
    %v6311 = vunpack.c.l.b16 %v6275
    %v6312 = vpack.c.b16 %v6297, %v6296
    %v6313 = vpack.c.b16 %v6299, %v6298
    %v6314 = vpack.c.b16 %v6301, %v6300
    %v6315 = vpack.c.b16 %v6303, %v6302
    %v6316 = vpack.c.b16 %v6305, %v6304
    %v6317 = vpack.c.b16 %v6307, %v6306
    %v6318 = vpack.c.b16 %v6309, %v6308
    %v6319 = vpack.c.b16 %v6311, %v6310
    %6328 = vmatpush.bf16.msra.mxu0 %v6319
    %6329 = vmatpush.bf16.msra.mxu0 %v6318
    %6330 = vmatpush.bf16.msra.mxu0 %v6317
    %6331 = vmatpush.bf16.msra.mxu0 %v6316
    %6332 = vmatpush.bf16.msra.mxu0 %v6315
    %6333 = vmatpush.bf16.msra.mxu0 %v6314
    %6334 = vmatpush.bf16.msra.mxu0 %v6313
    %6335 = vmatpush.bf16.msra.mxu0 %v6312
    %6336 = vmatmul.bf16.gmra.mxu0 %v6259
    %v6337 = vpop.f32.mrf.mxu0
    %v6338 = vadd.f32 %v6278, %v6337
    %v6339 = vpop.f32.mrf.mxu0
    %6340 = vdwg.mxu0
    %v6341 = vxor.u32 %v6338, 2147483648
    %v6342 = vmul.f32 %v6341, 1.442695
    %v6343 = vpow.pop %v6342
    %v6344 = vadd.f32 %v6343, 1.0
    %v6345 = vrcp.pop %v6344
    %v6346 = vmul.f32 %v6344, %v6345
    %v6347 = vsub.f32 1.0, %v6346
    %v6348 = vmul.f32 %v6345, %v6347
    %v6349 = vadd.f32 %v6345, %v6348
    %vm6350 = vweird.f32 %v6344
    %vm6351 = vweird.f32 %v6345
    %vm6352 = vmor %vm6350, %vm6351
    %v6353 = vsel %vm6352, %v6345, %v6349
    %v6354 = vand.u32 2147483647, %v6344
    %vm6355 = vcmp.eq.f32.partialorder %v6354, 8.507059e+37
    %v6356 = vand.u32 %v6344, 2147483648
    %v6357 = vor.u32 1.1754944e-38, %v6356
    %v6358 = vsel %vm6355, %v6357, %v6353
    %v6359 = vmul.f32 1.0, %v6358
    %v6360 = vpack.c.bf16 %v6359, %v6359
    %6361 = vst [vmem:[#allocation17] sm:$0xf] %v6360
    // Predicated region
    $region74: #{tpu_custom_call.1} parent=1 // pred_check
      _
    $region75: #{tpu_custom_call.1} parent=1 // pred_check_branch
      %6363 = sbr.rel (0) target = $region77
    $region76: #{tpu_custom_call.1} parent=1 // pred_region
      %6365 = vsyncadd [#allocation4], 0
      %s6367 = sshll.u32 [#allocation17], 4
      %s6368 = int_to_ptr.vmem [resolvable:$true] %s6367
      %s6369 = sshll.u32 %s9, 4
      %s6370 = int_to_ptr.hbm [resolvable:$true] %s6369
      %6372 = dma.vmem_to_hbm [thread:$0]  %s6368, 64, %s6370, [#allocation4]
    $region77: #{tpu_custom_call.1} parent=1 // pred_fallthru
      _
    // Predicated region
    $region78: #{tpu_custom_call.1} parent=1 // pred_check
      _
    $region79: #{tpu_custom_call.1} parent=1 // pred_check_branch
      %6374 = sbr.rel (0) target = $region81
    $region80: #{tpu_custom_call.1} parent=1 // pred_region
      %6376 = dma.done [#allocation4], 64
    $region81: #{tpu_custom_call.1} parent=1 // pred_fallthru
      _
    %6377 = vsyncpa [#allocation3], 1
    %6378 = vsyncpa [#allocation6], 1
    %6379 = vsyncpa [#allocation9], 1
    %6380 = vsyncpa [#allocation12], 1
    %6381 = vsyncpa [#allocation15], 1
    %6382 = vsyncpa [#allocation4], 1

</llo_original>
